<compile_context>
chip_gen: v7x
topology: tpu7x:2x2x1
jax: 0.10.0
libtpu: 0.0.40
codegen_flags: <defaults>
</compile_context>

<pallas_src>
import functools

import jax
import jax.numpy as jnp
from jax.experimental import pallas as pl
from jax.experimental.pallas import tpu as pltpu

VMEM_LIMIT = 32 * 1024 * 1024      # scoped-VMEM budget (headroom on v5e/v6e/v7x)
DENSE_TILE_BYTES = 2 * 1024 * 1024  # target bytes per streamed block (dense path)
SPEC_TILE_BYTES = 4 * 1024 * 1024   # target bytes per mode tile (spectral mix)
FUSE_BN_BYTES = 2 * 1024 * 1024     # fuse BN into one call if B*C*S*4 <= this


def _cparams(semantics):
    return pltpu.CompilerParams(
        dimension_semantics=semantics, vmem_limit_bytes=VMEM_LIMIT
    )


def _col_tile(S, bytes_per_col, budget):
    """Largest multiple of 128 that divides S and keeps a block under `budget`.

    Falls back to the full extent S when S is not a multiple of 128 (the block
    then equals the array dim, which also satisfies the (8,128) tiling rule).
    """
    if S % 128 != 0:
        return S
    target = max(128, budget // max(1, bytes_per_col))
    target = min(target, S)
    target -= target % 128
    for cand in range(target, 127, -128):
        if S % cand == 0:
            return cand
    return 128


def _vpu_matmul(w, x):
    """(Co, K) @ (K, S) as K unrolled broadcast-FMAs on the VPU.

    K here is tiny (4 or 8): an MXU dot would be <4% filled and only adds
    push/pop latency to memory-bound kernels; the VPU form also keeps full
    f32 precision.
    """
    K = x.shape[0]
    acc = w[:, 0:1] * x[0:1, :]
    for k in range(1, K):
        acc = acc + w[:, k : k + 1] * x[k : k + 1, :]
    return acc


# -----------------------------------------------------------------------------
# fc0: Linear(4 -> width), channel-major output (B, C, S)
# -----------------------------------------------------------------------------
def _fc0_kernel(x_ref, w_ref, b_ref, o_ref):
    x = x_ref[0]                 # (K, tS)  lane-dense over spatial
    w = w_ref[...]               # (C, K)
    o_ref[0] = _vpu_matmul(w, x) + b_ref[...]


def pallas_fc0(x_t, w, b, budget=DENSE_TILE_BYTES):
    """x_t: (B, 4, S) -> (B, C, S)."""
    B, K, S = x_t.shape
    C = w.shape[0]
    tS = _col_tile(S, 4 * 2 * (K + C), budget)
    return pl.pallas_call(
        _fc0_kernel,
        out_shape=jax.ShapeDtypeStruct((B, C, S), jnp.float32),
        grid=(B, S // tS),
        in_specs=[
            pl.BlockSpec((1, K, tS), lambda bi, t: (bi, 0, t)),
            pl.BlockSpec((C, K), lambda bi, t: (0, 0)),
            pl.BlockSpec((C, 1), lambda bi, t: (0, 0)),
        ],
        out_specs=pl.BlockSpec((1, C, tS), lambda bi, t: (bi, 0, t)),
        compiler_params=_cparams(("parallel", "parallel")),
    )(x_t, w, b.reshape(C, 1))


# -----------------------------------------------------------------------------
# Fused (1x1 conv + residual + BatchNorm(train batch stats) + ReLU)
# -----------------------------------------------------------------------------
def _resid_bn_relu_fused_kernel(x1_ref, h_ref, w_ref, b_ref, g_ref, bt_ref,
                                o_ref, *, relu, eps, inv_n):
    """Whole activation resident in VMEM: stats + normalize in one invocation."""
    B = x1_ref.shape[0]
    w = w_ref[...]
    bias = b_ref[...]
    # s[b] = x1[b] + W @ h[b] + bias   (channel-major, lane-dense over spatial)
    s = [x1_ref[i] + _vpu_matmul(w, h_ref[i]) + bias for i in range(B)]

    # Per-channel batch statistics over (batch, spatial); centered 2nd moment.
    tot = s[0].sum(axis=1, keepdims=True)
    for i in range(1, B):
        tot = tot + s[i].sum(axis=1, keepdims=True)
    mean = tot * inv_n
    m2 = ((s[0] - mean) ** 2).sum(axis=1, keepdims=True)
    for i in range(1, B):
        m2 = m2 + ((s[i] - mean) ** 2).sum(axis=1, keepdims=True)
    var = m2 * inv_n

    scale = g_ref[...] * jax.lax.rsqrt(var + eps)
    shift = bt_ref[...] - mean * scale
    for i in range(B):
        y = s[i] * scale + shift
        if relu:
            y = jnp.maximum(y, 0.0)
        o_ref[i] = y


def _resid_stats_kernel(x1_ref, h_ref, w_ref, b_ref, s_ref, sum_ref, m2_ref,
                        *, inv_cnt):
    """Tiled pass 1: write s and per-tile centered stats (fully parallel)."""
    B = x1_ref.shape[0]
    w = w_ref[...]
    bias = b_ref[...]
    s = [x1_ref[i] + _vpu_matmul(w, h_ref[i]) + bias for i in range(B)]
    tot = s[0].sum(axis=1, keepdims=True)
    for i in range(1, B):
        tot = tot + s[i].sum(axis=1, keepdims=True)
    tmean = tot * inv_cnt
    m2 = ((s[0] - tmean) ** 2).sum(axis=1, keepdims=True)
    for i in range(1, B):
        m2 = m2 + ((s[i] - tmean) ** 2).sum(axis=1, keepdims=True)
    for i in range(B):
        s_ref[i] = s[i]
    sum_ref[0] = tot
    m2_ref[0] = m2


def _bn_apply_kernel(s_ref, sc_ref, sh_ref, o_ref, *, relu):
    """Tiled pass 2: y = s * scale + shift (+ ReLU); reads only s."""
    B = s_ref.shape[0]
    scale = sc_ref[...]
    shift = sh_ref[...]
    for i in range(B):
        y = s_ref[i] * scale + shift
        if relu:
            y = jnp.maximum(y, 0.0)
        o_ref[i] = y


def pallas_resid_bn_relu(x1, h, w, b, gamma, beta, relu, eps=1e-5,
                         fuse_bytes=FUSE_BN_BYTES, tile_budget=DENSE_TILE_BYTES):
    """relu(BN(x1 + W @ h + b)), BatchNorm3d with training-mode batch stats.

    x1, h: (B, C, S) channel-major.  w: (C_out, C_in).  Stats over (B, S).
    NOTE: running_mean/var are not tracked (forward-only, training-mode BN).
    """
    B, C, S = x1.shape
    b2 = b.reshape(C, 1)

    if B * C * S * 4 <= fuse_bytes:
        # Single pallas_call: s never touches HBM, centered variance.
        kern = functools.partial(
            _resid_bn_relu_fused_kernel, relu=relu, eps=eps, inv_n=1.0 / (B * S)
        )
        return pl.pallas_call(
            kern,
            out_shape=jax.ShapeDtypeStruct((B, C, S), jnp.float32),
            compiler_params=pltpu.CompilerParams(vmem_limit_bytes=VMEM_LIMIT),
        )(x1, h, w, b2, gamma.reshape(C, 1), beta.reshape(C, 1))

    # --- Large-activation fallback: two tiled passes + tiny XLA combine. ---
    tS = _col_tile(S, 4 * 2 * (3 * B * C), tile_budget)
    n_t = S // tS
    cnt = B * tS

    s_buf, tile_sum, tile_m2 = pl.pallas_call(
        functools.partial(_resid_stats_kernel, inv_cnt=1.0 / cnt),
        out_shape=[
            jax.ShapeDtypeStruct((B, C, S), jnp.float32),
            jax.ShapeDtypeStruct((n_t, C, 1), jnp.float32),
            jax.ShapeDtypeStruct((n_t, C, 1), jnp.float32),
        ],
        grid=(n_t,),
        in_specs=[
            pl.BlockSpec((B, C, tS), lambda t: (0, 0, t)),
            pl.BlockSpec((B, C, tS), lambda t: (0, 0, t)),
            pl.BlockSpec((C, C), lambda t: (0, 0)),
            pl.BlockSpec((C, 1), lambda t: (0, 0)),
        ],
        out_specs=[
            pl.BlockSpec((B, C, tS), lambda t: (0, 0, t)),
            pl.BlockSpec((1, C, 1), lambda t: (t, 0, 0)),
            pl.BlockSpec((1, C, 1), lambda t: (t, 0, 0)),
        ],
        compiler_params=_cparams(("parallel",)),
    )(x1, h, w, b2)

    # Pooled (Chan) combine of per-tile centered stats -> per-channel scale/shift.
    tile_sum = tile_sum[:, :, 0]            # (n_t, C)
    tile_m2 = tile_m2[:, :, 0]
    n_total = B * S
    mean = jnp.sum(tile_sum, axis=0) / n_total
    tile_mean = tile_sum / cnt
    m2 = jnp.sum(tile_m2, axis=0) + cnt * jnp.sum((tile_mean - mean[None, :]) ** 2,
                                                  axis=0)
    var = m2 / n_total
    scale = gamma * jax.lax.rsqrt(var + eps)
    shift = beta - mean * scale

    return pl.pallas_call(
        functools.partial(_bn_apply_kernel, relu=relu),
        out_shape=jax.ShapeDtypeStruct((B, C, S), jnp.float32),
        grid=(n_t,),
        in_specs=[
            pl.BlockSpec((B, C, tS), lambda t: (0, 0, t)),
            pl.BlockSpec((C, 1), lambda t: (0, 0)),
            pl.BlockSpec((C, 1), lambda t: (0, 0)),
        ],
        out_specs=pl.BlockSpec((B, C, tS), lambda t: (0, 0, t)),
        compiler_params=_cparams(("parallel",)),
    )(s_buf, scale.reshape(C, 1), shift.reshape(C, 1))


# -----------------------------------------------------------------------------
# Fused fc1(+ReLU) + fc2 head; output written lane-dense as (B, 1, S)
# -----------------------------------------------------------------------------
def _fc_head_kernel(h_ref, w1_ref, b1_ref, w2_ref, b2_ref, o_ref):
    h = h_ref[0]                                               # (C, tS)
    hidden = jnp.dot(w1_ref[...], h, preferred_element_type=jnp.float32)
    hidden = jnp.maximum(hidden + b1_ref[...], 0.0)            # (128, tS)
    # fc2: M=1 output -> multiply + cross-sublane reduce (MXU would be ~0% fill).
    y = jnp.sum(w2_ref[...] * hidden, axis=0, keepdims=True)   # (1, tS)
    o_ref[0] = y + b2_ref[...]


def pallas_fc_head(h, w1, b1, w2, b2, budget=DENSE_TILE_BYTES):
    """h: (B, C, S) -> (B, 1, S)."""
    B, C, S = h.shape
    H = w1.shape[0]
    tS = _col_tile(S, 4 * 2 * (C + H + 1), budget)
    return pl.pallas_call(
        _fc_head_kernel,
        out_shape=jax.ShapeDtypeStruct((B, 1, S), jnp.float32),
        grid=(B, S // tS),
        in_specs=[
            pl.BlockSpec((1, C, tS), lambda bi, t: (bi, 0, t)),
            pl.BlockSpec((H, C), lambda bi, t: (0, 0)),
            pl.BlockSpec((H, 1), lambda bi, t: (0, 0)),
            pl.BlockSpec((H, 1), lambda bi, t: (0, 0)),
            pl.BlockSpec((1, 1), lambda bi, t: (0, 0)),
        ],
        out_specs=pl.BlockSpec((1, 1, tS), lambda bi, t: (bi, 0, t)),
        compiler_params=_cparams(("parallel", "parallel")),
    )(h, w1, b1.reshape(H, 1), w2.reshape(H, 1), b2.reshape(1, 1))


# -----------------------------------------------------------------------------
# SpectralConv3d mode mixing: modes lane-dense, per-input-channel accumulation.
# -----------------------------------------------------------------------------
def _spectral_mix_kernel(xr_ref, xi_ref, wr_ref, wi_ref, or_ref, oi_ref):
    xr = xr_ref[...]          # (B, Ci, T)
    xi = xi_ref[...]
    Ci = xr.shape[1]
    acc_r = None
    acc_i = None
    # Accumulate over Ci without materializing a (B, Ci, Co, T) broadcast.
    for i in range(Ci):
        xri = xr[:, i : i + 1, :]          # (B, 1, T)
        xii = xi[:, i : i + 1, :]
        wri = wr_ref[i][None]              # (1, Co, T)
        wii = wi_ref[i][None]
        tr = xri * wri - xii * wii
        ti = xri * wii + xii * wri
        acc_r = tr if acc_r is None else acc_r + tr
        acc_i = ti if acc_i is None else acc_i + ti
    or_ref[...] = acc_r
    oi_ref[...] = acc_i


def pallas_spectral_mix(xr, xi, wr, wi, budget=SPEC_TILE_BYTES):
    """xr, xi: (B, Ci, M)   wr, wi: (Ci, Co, M)  ->  (B, Co, M) real / imag."""
    B, Ci, Mtot = xr.shape
    Co = wr.shape[1]
    bytes_per_mode = 4 * 2 * (2 * Ci * Co + 2 * B * Ci + 2 * B * Co)
    tT = _col_tile(Mtot, bytes_per_mode, budget)
    x_spec = pl.BlockSpec((B, Ci, tT), lambda m: (0, 0, m))
    w_spec = pl.BlockSpec((Ci, Co, tT), lambda m: (0, 0, m))
    o_spec = pl.BlockSpec((B, Co, tT), lambda m: (0, 0, m))
    return pl.pallas_call(
        _spectral_mix_kernel,
        out_shape=[
            jax.ShapeDtypeStruct((B, Co, Mtot), jnp.float32),
            jax.ShapeDtypeStruct((B, Co, Mtot), jnp.float32),
        ],
        grid=(Mtot // tT,),
        in_specs=[x_spec, x_spec, w_spec, w_spec],
        out_specs=[o_spec, o_spec],
        compiler_params=_cparams(("parallel",)),
    )(xr, xi, wr, wi)


def spectral_conv3d(h, wr, wi, m1, m2, m3):
    """h: (B, C, X, Y, Z) real.  wr/wi: (Cin, Cout, 4*m1*m2*m3), corners 1..4."""
    B, C, X, Y, Z = h.shape
    Zr = Z // 2 + 1
    Co = wr.shape[1]
    Mc = m1 * m2 * m3

    # TODO(synk): rfftn / irfftn have no Pallas equivalent; plain-JAX (XLA) FFT.
    # torch.rfft(..., normalized=True) == norm="ortho".
    x_ft = jnp.fft.rfftn(h, axes=(2, 3, 4), norm="ortho")   # (B,C,X,Y,Zr) c64

    # TODO(synk): the corner gather stays in XLA: the (m1,m2,m3) slabs are far
    # below the (8,128) tile so they cannot be expressed as BlockSpec tiles.
    corners = [
        x_ft[:, :, :m1, :m2, :m3],
        x_ft[:, :, X - m1:, :m2, :m3],
        x_ft[:, :, :m1, Y - m2:, :m3],
        x_ft[:, :, X - m1:, Y - m2:, :m3],
    ]
    xs = jnp.concatenate([c.reshape(B, C, Mc) for c in corners], axis=2)

    out_r, out_i = pallas_spectral_mix(jnp.real(xs), jnp.imag(xs), wr, wi)
    out = jax.lax.complex(out_r, out_i)                      # (B, Co, 4*Mc)

    chunks = [c.reshape(B, Co, m1, m2, m3) for c in jnp.split(out, 4, axis=2)]

    if 2 * m1 <= X and 2 * m2 <= Y and m3 <= Zr:
        # Assemble out_ft by zero-pad + concatenation (no dynamic-update-slice).
        padz = lambda c: jnp.pad(c, ((0, 0), (0, 0), (0, 0), (0, 0), (0, Zr - m3)))
        zy = jnp.zeros((B, Co, m1, Y - 2 * m2, Zr), out.dtype)
        row_lo = jnp.concatenate([padz(chunks[0]), zy, padz(chunks[2])], axis=3)
        row_hi = jnp.concatenate([padz(chunks[1]), zy, padz(chunks[3])], axis=3)
        zx = jnp.zeros((B, Co, X - 2 * m1, Y, Zr), out.dtype)
        out_ft = jnp.concatenate([row_lo, zx, row_hi], axis=2)
    else:
        # Fallback (overlapping modes): scatter in the PyTorch write order.
        out_ft = jnp.zeros((B, Co, X, Y, Zr), out.dtype)
        sls = [
            (slice(None), slice(None), slice(0, m1), slice(0, m2), slice(0, m3)),
            (slice(None), slice(None), slice(X - m1, X), slice(0, m2), slice(0, m3)),
            (slice(None), slice(None), slice(0, m1), slice(Y - m2, Y), slice(0, m3)),
            (slice(None), slice(None), slice(X - m1, X), slice(Y - m2, Y), slice(0, m3)),
        ]
        for ch, sl in zip(chunks, sls):
            out_ft = out_ft.at[sl].set(ch)

    return jnp.fft.irfftn(out_ft, s=(X, Y, Z), axes=(2, 3, 4), norm="ortho")


# -----------------------------------------------------------------------------
# SimpleBlock2d forward
# -----------------------------------------------------------------------------
def simple_block_forward(x, params, m1, m2, m3, width,
                         fuse_bn_bytes=FUSE_BN_BYTES,
                         bn_tile_budget=DENSE_TILE_BYTES):
    B, X, Y, Z, Cin = x.shape
    S = X * Y * Z

    # Channel-major (B, C, S): channels in sublanes, spatial lane-dense.
    x_t = jnp.transpose(x.reshape(B, S, Cin), (0, 2, 1))          # (B, 4, S)
    h = pallas_fc0(x_t, params["fc0_w"], params["fc0_b"])         # (B, W, S)

    for i in range(4):
        x1 = spectral_conv3d(
            h.reshape(B, width, X, Y, Z),
            params[f"conv{i}_wr"], params[f"conv{i}_wi"], m1, m2, m3,
        ).reshape(B, width, S)
        h = pallas_resid_bn_relu(
            x1, h,
            params[f"w{i}_w"], params[f"w{i}_b"],
            params[f"bn{i}_g"], params[f"bn{i}_b"],
            relu=(i < 3),                       # PyTorch: no ReLU after bn3
            fuse_bytes=fuse_bn_bytes, tile_budget=bn_tile_budget,
        )

    out = pallas_fc_head(h, params["fc1_w"], params["fc1_b"],
                         params["fc2_w"], params["fc2_b"])        # (B, 1, S)
    return out.reshape(B, X, Y, Z, 1)


# -----------------------------------------------------------------------------
# Pure-JAX (XLA) reference of the PyTorch forward, for correctness checking.
# -----------------------------------------------------------------------------
def reference_forward(x, params, m1, m2, m3, width):
    hp = jax.lax.Precision.HIGHEST
    B, X, Y, Z, _ = x.shape
    Zr = Z // 2 + 1
    h = (jnp.einsum("bxyzk,ck->bcxyz", x, params["fc0_w"], precision=hp)
         + params["fc0_b"].reshape(1, width, 1, 1, 1))
    for i in range(4):
        x_ft = jnp.fft.rfftn(h, axes=(2, 3, 4), norm="ortho")
        wr = params[f"conv{i}_wr"].reshape(width, width, 4, m1, m2, m3)
        wi = params[f"conv{i}_wi"].reshape(width, width, 4, m1, m2, m3)
        out_ft = jnp.zeros((B, width, X, Y, Zr), jnp.complex64)
        corner_sl = [
            (slice(0, m1), slice(0, m2)),
            (slice(X - m1, X), slice(0, m2)),
            (slice(0, m1), slice(Y - m2, Y)),
            (slice(X - m1, X), slice(Y - m2, Y)),
        ]
        for ci, (sx, sy) in enumerate(corner_sl):
            seg = x_ft[:, :, sx, sy, :m3]
            ar, ai = jnp.real(seg), jnp.imag(seg)

            def op(a, b):
                return jnp.einsum("bixyz,ioxyz->boxyz", a, b, precision=hp)

            mr = op(ar, wr[:, :, ci]) - op(ai, wi[:, :, ci])
            mi = op(ai, wr[:, :, ci]) + op(ar, wi[:, :, ci])
            out_ft = out_ft.at[:, :, sx, sy, :m3].set(jax.lax.complex(mr, mi))
        x1 = jnp.fft.irfftn(out_ft, s=(X, Y, Z), axes=(2, 3, 4), norm="ortho")
        x2 = (jnp.einsum("oc,bcxyz->boxyz", params[f"w{i}_w"], h, precision=hp)
              + params[f"w{i}_b"].reshape(1, width, 1, 1, 1))
        s = x1 + x2
        mean = jnp.mean(s, axis=(0, 2, 3, 4), keepdims=True)
        var = jnp.mean((s - mean) ** 2, axis=(0, 2, 3, 4), keepdims=True)
        y = ((s - mean) * jax.lax.rsqrt(var + 1e-5)
             * params[f"bn{i}_g"].reshape(1, width, 1, 1, 1)
             + params[f"bn{i}_b"].reshape(1, width, 1, 1, 1))
        h = jnp.maximum(y, 0.0) if i < 3 else y
    hid = (jnp.einsum("jc,bcxyz->bjxyz", params["fc1_w"], h, precision=hp)
           + params["fc1_b"].reshape(1, 128, 1, 1, 1))
    hid = jnp.maximum(hid, 0.0)
    out = (jnp.einsum("oj,bjxyz->boxyz", params["fc2_w"], hid, precision=hp)
           + params["fc2_b"].reshape(1, 1, 1, 1, 1))
    return jnp.transpose(out, (0, 2, 3, 4, 1))


# -----------------------------------------------------------------------------
# Deterministic parameter construction (synthetic init, shapes per __init__)
# -----------------------------------------------------------------------------
def make_params(key, m1, m2, m3, width):
    keys = iter(jax.random.split(key, 64))
    p = {}

    def lin(k, fan_in, fan_out):
        kw, kb = jax.random.split(k)
        lim = 1.0 / jnp.sqrt(fan_in)
        w = jax.random.uniform(kw, (fan_out, fan_in), jnp.float32, -lim, lim)
        b = jax.random.uniform(kb, (fan_out,), jnp.float32, -lim, lim)
        return w, b

    p["fc0_w"], p["fc0_b"] = lin(next(keys), 4, width)        # (W,4)
    p["fc1_w"], p["fc1_b"] = lin(next(keys), width, 128)      # (128,W)
    p["fc2_w"], p["fc2_b"] = lin(next(keys), 128, 1)          # (1,128)

    scale = 1.0 / (width * width)
    Mm = m1 * m2 * m3
    for i in range(4):
        # SpectralConv3d_fast: 4 corner weight tensors (Cin, Cout, m1, m2, m3, 2)
        w = scale * jax.random.uniform(
            next(keys), (4, width, width, m1, m2, m3, 2), jnp.float32
        )
        # -> (Cin, Cout, 4*m1*m2*m3, 2): modes last (lane-dense), corner-major.
        w = jnp.transpose(w, (1, 2, 0, 3, 4, 5, 6)).reshape(width, width, 4 * Mm, 2)
        p[f"conv{i}_wr"] = w[..., 0]
        p[f"conv{i}_wi"] = w[..., 1]
        # Conv1d(width, width, 1): stored (Cout, Cin) for W @ h.
        p[f"w{i}_w"], p[f"w{i}_b"] = lin(next(keys), width, width)
        p[f"bn{i}_g"] = 1.0 + 0.1 * jax.random.uniform(next(keys), (width,), jnp.float32)
        p[f"bn{i}_b"] = 0.1 * jax.random.uniform(next(keys), (width,), jnp.float32)
    return p


# -----------------------------------------------------------------------------
if __name__ == "__main__":
    modes1 = modes2 = modes3 = 4
    width = 8
    B, X, Y, Z = 2, 8, 8, 8

    key = jax.random.PRNGKey(0)
    kx, kp = jax.random.split(key)
    x = jax.random.normal(kx, (B, X, Y, Z, 4), dtype=jnp.float32)
    params = make_params(kp, modes1, modes2, modes3, width)

    fwd = jax.jit(functools.partial(
        simple_block_forward, m1=modes1, m2=modes2, m3=modes3, width=width))
    out = fwd(x, params)
    jax.block_until_ready(out)
    assert out.shape == (B, X, Y, Z, 1)
    assert bool(jnp.all(jnp.isfinite(out)))

    # Exercise the tiled two-pass BN fallback (multi-tile stats + Chan combine)
    # and verify it matches the fully-fused path.
    fwd_tiled = jax.jit(functools.partial(
        simple_block_forward, m1=modes1, m2=modes2, m3=modes3, width=width,
        fuse_bn_bytes=0, bn_tile_budget=1))
    out_tiled = fwd_tiled(x, params)
    jax.block_until_ready(out_tiled)
    assert bool(jnp.allclose(out, out_tiled, atol=1e-3, rtol=1e-3))

    # Cross-check against a pure-JAX reference of the PyTorch forward.
    ref = jax.jit(functools.partial(
        reference_forward, m1=modes1, m2=modes2, m3=modes3, width=width))(x, params)
    jax.block_until_ready(ref)
    assert bool(jnp.allclose(out, ref, atol=1e-2, rtol=1e-2)), float(
        jnp.max(jnp.abs(out - ref)))

    print("KERNEL_OK")
</pallas_src>

<mosaic_0001>
module attributes {stable_mosaic.version = 11 : i64} {
  func.func @_fc0_kernel(%arg0: i32, %arg1: i32, %arg2: memref<1x4x512xf32, #tpu.memory_space<vmem>>, %arg3: memref<8x4xf32, #tpu.memory_space<vmem>>, %arg4: memref<8x1xf32, #tpu.memory_space<vmem>>, %arg5: memref<1x8x512xf32, #tpu.memory_space<vmem>>) attributes {dimension_semantics = [#tpu.dimension_semantics<parallel>, #tpu.dimension_semantics<parallel>], iteration_bounds = array<i64: 2, 1>, scalar_prefetch = 0 : i64, scratch_operands = 0 : i64, tpu.core_type = #tpu.core_type<tc>, window_params = [{transform_indices = @transform_0, window_bounds = array<i64: 1, 4, 512>}, {pipeline_mode = #tpu.pipeline_mode<synchronous>, transform_indices = @transform_1, window_bounds = array<i64: 8, 4>}, {pipeline_mode = #tpu.pipeline_mode<synchronous>, transform_indices = @transform_2, window_bounds = array<i64: 8, 1>}, {transform_indices = @transform_3, window_bounds = array<i64: 1, 8, 512>}]} {
    %c0 = arith.constant 0 : index
    %c0_0 = arith.constant 0 : index
    %c0_1 = arith.constant 0 : index
    %0 = vector.load %arg2[%c0, %c0_0, %c0_1] : memref<1x4x512xf32, #tpu.memory_space<vmem>>, vector<1x4x512xf32>
    %1 = vector.shape_cast %0 : vector<1x4x512xf32> to vector<4x512xf32>
    %c0_2 = arith.constant 0 : index
    %c0_3 = arith.constant 0 : index
    %2 = vector.load %arg3[%c0_2, %c0_3] : memref<8x4xf32, #tpu.memory_space<vmem>>, vector<8x4xf32>
    %3 = vector.extract_strided_slice %2 {offsets = [0, 0], sizes = [8, 1], strides = [1, 1]} : vector<8x4xf32> to vector<8x1xf32>
    %4 = vector.extract_strided_slice %1 {offsets = [0, 0], sizes = [1, 512], strides = [1, 1]} : vector<4x512xf32> to vector<1x512xf32>
    %5 = vector.broadcast %3 : vector<8x1xf32> to vector<8x512xf32>
    %6 = vector.broadcast %4 : vector<1x512xf32> to vector<8x512xf32>
    %7 = arith.mulf %5, %6 : vector<8x512xf32>
    %8 = vector.extract_strided_slice %2 {offsets = [0, 1], sizes = [8, 1], strides = [1, 1]} : vector<8x4xf32> to vector<8x1xf32>
    %9 = vector.extract_strided_slice %1 {offsets = [1, 0], sizes = [1, 512], strides = [1, 1]} : vector<4x512xf32> to vector<1x512xf32>
    %10 = vector.broadcast %8 : vector<8x1xf32> to vector<8x512xf32>
    %11 = vector.broadcast %9 : vector<1x512xf32> to vector<8x512xf32>
    %12 = arith.mulf %10, %11 : vector<8x512xf32>
    %13 = arith.addf %7, %12 : vector<8x512xf32>
    %14 = vector.extract_strided_slice %2 {offsets = [0, 2], sizes = [8, 1], strides = [1, 1]} : vector<8x4xf32> to vector<8x1xf32>
    %15 = vector.extract_strided_slice %1 {offsets = [2, 0], sizes = [1, 512], strides = [1, 1]} : vector<4x512xf32> to vector<1x512xf32>
    %16 = vector.broadcast %14 : vector<8x1xf32> to vector<8x512xf32>
    %17 = vector.broadcast %15 : vector<1x512xf32> to vector<8x512xf32>
    %18 = arith.mulf %16, %17 : vector<8x512xf32>
    %19 = arith.addf %13, %18 : vector<8x512xf32>
    %20 = vector.extract_strided_slice %2 {offsets = [0, 3], sizes = [8, 1], strides = [1, 1]} : vector<8x4xf32> to vector<8x1xf32>
    %21 = vector.extract_strided_slice %1 {offsets = [3, 0], sizes = [1, 512], strides = [1, 1]} : vector<4x512xf32> to vector<1x512xf32>
    %22 = vector.broadcast %20 : vector<8x1xf32> to vector<8x512xf32>
    %23 = vector.broadcast %21 : vector<1x512xf32> to vector<8x512xf32>
    %24 = arith.mulf %22, %23 : vector<8x512xf32>
    %25 = arith.addf %19, %24 : vector<8x512xf32>
    %c0_4 = arith.constant 0 : index
    %c0_5 = arith.constant 0 : index
    %26 = vector.load %arg4[%c0_4, %c0_5] : memref<8x1xf32, #tpu.memory_space<vmem>>, vector<8x1xf32>
    %27 = vector.broadcast %26 : vector<8x1xf32> to vector<8x512xf32>
    %28 = arith.addf %25, %27 : vector<8x512xf32>
    %c0_6 = arith.constant 0 : index
    %c0_7 = arith.constant 0 : index
    %c0_8 = arith.constant 0 : index
    %29 = vector.load %arg5[%c0_6, %c0_7, %c0_8] : memref<1x8x512xf32, #tpu.memory_space<vmem>>, vector<1x8x512xf32>
    %30 = vector.shape_cast %29 : vector<1x8x512xf32> to vector<8x512xf32>
    %31 = vector.shape_cast %28 : vector<8x512xf32> to vector<1x8x512xf32>
    tpu.vector_store %arg5[%c0_6, %c0_7, %c0_8], %31 {strides = array<i32>} : memref<1x8x512xf32, #tpu.memory_space<vmem>>, vector<1x8x512xf32>,
    return
  }
  func.func @transform_0(%arg0: i32, %arg1: i32) -> (i32, i32, i32) {
    %c0_i32 = arith.constant 0 : i32
    %c0_i32_0 = arith.constant 0 : i32
    return %arg0, %c0_i32, %arg1 : i32, i32, i32
  }
  func.func @transform_1(%arg0: i32, %arg1: i32) -> (i32, i32) {
    %c0_i32 = arith.constant 0 : i32
    %c0_i32_0 = arith.constant 0 : i32
    %c0_i32_1 = arith.constant 0 : i32
    return %c0_i32, %c0_i32_0 : i32, i32
  }
  func.func @transform_2(%arg0: i32, %arg1: i32) -> (i32, i32) {
    %c0_i32 = arith.constant 0 : i32
    %c0_i32_0 = arith.constant 0 : i32
    %c0_i32_1 = arith.constant 0 : i32
    return %c0_i32, %c0_i32_0 : i32, i32
  }
  func.func @transform_3(%arg0: i32, %arg1: i32) -> (i32, i32, i32) {
    %c0_i32 = arith.constant 0 : i32
    %c0_i32_0 = arith.constant 0 : i32
    return %arg0, %c0_i32, %arg1 : i32, i32, i32
  }
}

module attributes {stable_mosaic.version = 11 : i64} {
  func.func @_spectral_mix_kernel(%arg0: i32, %arg1: memref<2x8x256xf32, #tpu.memory_space<vmem>>, %arg2: memref<2x8x256xf32, #tpu.memory_space<vmem>>, %arg3: memref<8x8x256xf32, #tpu.memory_space<vmem>>, %arg4: memref<8x8x256xf32, #tpu.memory_space<vmem>>, %arg5: memref<2x8x256xf32, #tpu.memory_space<vmem>>, %arg6: memref<2x8x256xf32, #tpu.memory_space<vmem>>) attributes {dimension_semantics = [#tpu.dimension_semantics<parallel>], iteration_bounds = array<i64: 1>, scalar_prefetch = 0 : i64, scratch_operands = 0 : i64, tpu.core_type = #tpu.core_type<tc>, window_params = [{transform_indices = @transform_0, window_bounds = array<i64: 2, 8, 256>}, {transform_indices = @transform_1, window_bounds = array<i64: 2, 8, 256>}, {transform_indices = @transform_2, window_bounds = array<i64: 8, 8, 256>}, {transform_indices = @transform_3, window_bounds = array<i64: 8, 8, 256>}, {transform_indices = @transform_4, window_bounds = array<i64: 2, 8, 256>}, {transform_indices = @transform_5, window_bounds = array<i64: 2, 8, 256>}]} {
    %c0 = arith.constant 0 : index
    %c0_0 = arith.constant 0 : index
    %c0_1 = arith.constant 0 : index
    %0 = vector.load %arg1[%c0, %c0_0, %c0_1] : memref<2x8x256xf32, #tpu.memory_space<vmem>>, vector<2x8x256xf32>
    %c0_2 = arith.constant 0 : index
    %c0_3 = arith.constant 0 : index
    %c0_4 = arith.constant 0 : index
    %1 = vector.load %arg2[%c0_2, %c0_3, %c0_4] : memref<2x8x256xf32, #tpu.memory_space<vmem>>, vector<2x8x256xf32>
    %2 = vector.extract_strided_slice %0 {offsets = [0, 0, 0], sizes = [2, 1, 256], strides = [1, 1, 1]} : vector<2x8x256xf32> to vector<2x1x256xf32>
    %3 = vector.extract_strided_slice %1 {offsets = [0, 0, 0], sizes = [2, 1, 256], strides = [1, 1, 1]} : vector<2x8x256xf32> to vector<2x1x256xf32>
    %c0_5 = arith.constant 0 : index
    %c0_6 = arith.constant 0 : index
    %c0_7 = arith.constant 0 : index
    %4 = vector.load %arg3[%c0_5, %c0_6, %c0_7] : memref<8x8x256xf32, #tpu.memory_space<vmem>>, vector<1x8x256xf32>
    %5 = vector.shape_cast %4 : vector<1x8x256xf32> to vector<8x256xf32>
    %6 = vector.shape_cast %5 : vector<8x256xf32> to vector<1x8x256xf32>
    %c0_8 = arith.constant 0 : index
    %c0_9 = arith.constant 0 : index
    %c0_10 = arith.constant 0 : index
    %7 = vector.load %arg4[%c0_8, %c0_9, %c0_10] : memref<8x8x256xf32, #tpu.memory_space<vmem>>, vector<1x8x256xf32>
    %8 = vector.shape_cast %7 : vector<1x8x256xf32> to vector<8x256xf32>
    %9 = vector.shape_cast %8 : vector<8x256xf32> to vector<1x8x256xf32>
    %10 = vector.broadcast %2 : vector<2x1x256xf32> to vector<2x8x256xf32>
    %11 = vector.broadcast %6 : vector<1x8x256xf32> to vector<2x8x256xf32>
    %12 = arith.mulf %10, %11 : vector<2x8x256xf32>
    %13 = vector.broadcast %3 : vector<2x1x256xf32> to vector<2x8x256xf32>
    %14 = vector.broadcast %9 : vector<1x8x256xf32> to vector<2x8x256xf32>
    %15 = arith.mulf %13, %14 : vector<2x8x256xf32>
    %16 = arith.subf %12, %15 : vector<2x8x256xf32>
    %17 = vector.broadcast %2 : vector<2x1x256xf32> to vector<2x8x256xf32>
    %18 = vector.broadcast %9 : vector<1x8x256xf32> to vector<2x8x256xf32>
    %19 = arith.mulf %17, %18 : vector<2x8x256xf32>
    %20 = vector.broadcast %3 : vector<2x1x256xf32> to vector<2x8x256xf32>
    %21 = vector.broadcast %6 : vector<1x8x256xf32> to vector<2x8x256xf32>
    %22 = arith.mulf %20, %21 : vector<2x8x256xf32>
    %23 = arith.addf %19, %22 : vector<2x8x256xf32>
    %24 = vector.extract_strided_slice %0 {offsets = [0, 1, 0], sizes = [2, 1, 256], strides = [1, 1, 1]} : vector<2x8x256xf32> to vector<2x1x256xf32>
    %25 = vector.extract_strided_slice %1 {offsets = [0, 1, 0], sizes = [2, 1, 256], strides = [1, 1, 1]} : vector<2x8x256xf32> to vector<2x1x256xf32>
    %c1 = arith.constant 1 : index
    %c0_11 = arith.constant 0 : index
    %c0_12 = arith.constant 0 : index
    %26 = vector.load %arg3[%c1, %c0_11, %c0_12] : memref<8x8x256xf32, #tpu.memory_space<vmem>>, vector<1x8x256xf32>
    %27 = vector.shape_cast %26 : vector<1x8x256xf32> to vector<8x256xf32>
    %28 = vector.shape_cast %27 : vector<8x256xf32> to vector<1x8x256xf32>
    %c1_13 = arith.constant 1 : index
    %c0_14 = arith.constant 0 : index
    %c0_15 = arith.constant 0 : index
    %29 = vector.load %arg4[%c1_13, %c0_14, %c0_15] : memref<8x8x256xf32, #tpu.memory_space<vmem>>, vector<1x8x256xf32>
    %30 = vector.shape_cast %29 : vector<1x8x256xf32> to vector<8x256xf32>
    %31 = vector.shape_cast %30 : vector<8x256xf32> to vector<1x8x256xf32>
    %32 = vector.broadcast %24 : vector<2x1x256xf32> to vector<2x8x256xf32>
    %33 = vector.broadcast %28 : vector<1x8x256xf32> to vector<2x8x256xf32>
    %34 = arith.mulf %32, %33 : vector<2x8x256xf32>
    %35 = vector.broadcast %25 : vector<2x1x256xf32> to vector<2x8x256xf32>
    %36 = vector.broadcast %31 : vector<1x8x256xf32> to vector<2x8x256xf32>
    %37 = arith.mulf %35, %36 : vector<2x8x256xf32>
    %38 = arith.subf %34, %37 : vector<2x8x256xf32>
    %39 = vector.broadcast %24 : vector<2x1x256xf32> to vector<2x8x256xf32>
    %40 = vector.broadcast %31 : vector<1x8x256xf32> to vector<2x8x256xf32>
    %41 = arith.mulf %39, %40 : vector<2x8x256xf32>
    %42 = vector.broadcast %25 : vector<2x1x256xf32> to vector<2x8x256xf32>
    %43 = vector.broadcast %28 : vector<1x8x256xf32> to vector<2x8x256xf32>
    %44 = arith.mulf %42, %43 : vector<2x8x256xf32>
    %45 = arith.addf %41, %44 : vector<2x8x256xf32>
    %46 = arith.addf %16, %38 : vector<2x8x256xf32>
    %47 = arith.addf %23, %45 : vector<2x8x256xf32>
    %48 = vector.extract_strided_slice %0 {offsets = [0, 2, 0], sizes = [2, 1, 256], strides = [1, 1, 1]} : vector<2x8x256xf32> to vector<2x1x256xf32>
    %49 = vector.extract_strided_slice %1 {offsets = [0, 2, 0], sizes = [2, 1, 256], strides = [1, 1, 1]} : vector<2x8x256xf32> to vector<2x1x256xf32>
    %c2 = arith.constant 2 : index
    %c0_16 = arith.constant 0 : index
    %c0_17 = arith.constant 0 : index
    %50 = vector.load %arg3[%c2, %c0_16, %c0_17] : memref<8x8x256xf32, #tpu.memory_space<vmem>>, vector<1x8x256xf32>
    %51 = vector.shape_cast %50 : vector<1x8x256xf32> to vector<8x256xf32>
    %52 = vector.shape_cast %51 : vector<8x256xf32> to vector<1x8x256xf32>
    %c2_18 = arith.constant 2 : index
    %c0_19 = arith.constant 0 : index
    %c0_20 = arith.constant 0 : index
    %53 = vector.load %arg4[%c2_18, %c0_19, %c0_20] : memref<8x8x256xf32, #tpu.memory_space<vmem>>, vector<1x8x256xf32>
    %54 = vector.shape_cast %53 : vector<1x8x256xf32> to vector<8x256xf32>
    %55 = vector.shape_cast %54 : vector<8x256xf32> to vector<1x8x256xf32>
    %56 = vector.broadcast %48 : vector<2x1x256xf32> to vector<2x8x256xf32>
    %57 = vector.broadcast %52 : vector<1x8x256xf32> to vector<2x8x256xf32>
    %58 = arith.mulf %56, %57 : vector<2x8x256xf32>
    %59 = vector.broadcast %49 : vector<2x1x256xf32> to vector<2x8x256xf32>
    %60 = vector.broadcast %55 : vector<1x8x256xf32> to vector<2x8x256xf32>
    %61 = arith.mulf %59, %60 : vector<2x8x256xf32>
    %62 = arith.subf %58, %61 : vector<2x8x256xf32>
    %63 = vector.broadcast %48 : vector<2x1x256xf32> to vector<2x8x256xf32>
    %64 = vector.broadcast %55 : vector<1x8x256xf32> to vector<2x8x256xf32>
    %65 = arith.mulf %63, %64 : vector<2x8x256xf32>
    %66 = vector.broadcast %49 : vector<2x1x256xf32> to vector<2x8x256xf32>
    %67 = vector.broadcast %52 : vector<1x8x256xf32> to vector<2x8x256xf32>
    %68 = arith.mulf %66, %67 : vector<2x8x256xf32>
    %69 = arith.addf %65, %68 : vector<2x8x256xf32>
    %70 = arith.addf %46, %62 : vector<2x8x256xf32>
    %71 = arith.addf %47, %69 : vector<2x8x256xf32>
    %72 = vector.extract_strided_slice %0 {offsets = [0, 3, 0], sizes = [2, 1, 256], strides = [1, 1, 1]} : vector<2x8x256xf32> to vector<2x1x256xf32>
    %73 = vector.extract_strided_slice %1 {offsets = [0, 3, 0], sizes = [2, 1, 256], strides = [1, 1, 1]} : vector<2x8x256xf32> to vector<2x1x256xf32>
    %c3 = arith.constant 3 : index
    %c0_21 = arith.constant 0 : index
    %c0_22 = arith.constant 0 : index
    %74 = vector.load %arg3[%c3, %c0_21, %c0_22] : memref<8x8x256xf32, #tpu.memory_space<vmem>>, vector<1x8x256xf32>
    %75 = vector.shape_cast %74 : vector<1x8x256xf32> to vector<8x256xf32>
    %76 = vector.shape_cast %75 : vector<8x256xf32> to vector<1x8x256xf32>
    %c3_23 = arith.constant 3 : index
    %c0_24 = arith.constant 0 : index
    %c0_25 = arith.constant 0 : index
    %77 = vector.load %arg4[%c3_23, %c0_24, %c0_25] : memref<8x8x256xf32, #tpu.memory_space<vmem>>, vector<1x8x256xf32>
    %78 = vector.shape_cast %77 : vector<1x8x256xf32> to vector<8x256xf32>
    %79 = vector.shape_cast %78 : vector<8x256xf32> to vector<1x8x256xf32>
    %80 = vector.broadcast %72 : vector<2x1x256xf32> to vector<2x8x256xf32>
    %81 = vector.broadcast %76 : vector<1x8x256xf32> to vector<2x8x256xf32>
    %82 = arith.mulf %80, %81 : vector<2x8x256xf32>
    %83 = vector.broadcast %73 : vector<2x1x256xf32> to vector<2x8x256xf32>
    %84 = vector.broadcast %79 : vector<1x8x256xf32> to vector<2x8x256xf32>
    %85 = arith.mulf %83, %84 : vector<2x8x256xf32>
    %86 = arith.subf %82, %85 : vector<2x8x256xf32>
    %87 = vector.broadcast %72 : vector<2x1x256xf32> to vector<2x8x256xf32>
    %88 = vector.broadcast %79 : vector<1x8x256xf32> to vector<2x8x256xf32>
    %89 = arith.mulf %87, %88 : vector<2x8x256xf32>
    %90 = vector.broadcast %73 : vector<2x1x256xf32> to vector<2x8x256xf32>
    %91 = vector.broadcast %76 : vector<1x8x256xf32> to vector<2x8x256xf32>
    %92 = arith.mulf %90, %91 : vector<2x8x256xf32>
    %93 = arith.addf %89, %92 : vector<2x8x256xf32>
    %94 = arith.addf %70, %86 : vector<2x8x256xf32>
    %95 = arith.addf %71, %93 : vector<2x8x256xf32>
    %96 = vector.extract_strided_slice %0 {offsets = [0, 4, 0], sizes = [2, 1, 256], strides = [1, 1, 1]} : vector<2x8x256xf32> to vector<2x1x256xf32>
    %97 = vector.extract_strided_slice %1 {offsets = [0, 4, 0], sizes = [2, 1, 256], strides = [1, 1, 1]} : vector<2x8x256xf32> to vector<2x1x256xf32>
    %c4 = arith.constant 4 : index
    %c0_26 = arith.constant 0 : index
    %c0_27 = arith.constant 0 : index
    %98 = vector.load %arg3[%c4, %c0_26, %c0_27] : memref<8x8x256xf32, #tpu.memory_space<vmem>>, vector<1x8x256xf32>
    %99 = vector.shape_cast %98 : vector<1x8x256xf32> to vector<8x256xf32>
    %100 = vector.shape_cast %99 : vector<8x256xf32> to vector<1x8x256xf32>
    %c4_28 = arith.constant 4 : index
    %c0_29 = arith.constant 0 : index
    %c0_30 = arith.constant 0 : index
    %101 = vector.load %arg4[%c4_28, %c0_29, %c0_30] : memref<8x8x256xf32, #tpu.memory_space<vmem>>, vector<1x8x256xf32>
    %102 = vector.shape_cast %101 : vector<1x8x256xf32> to vector<8x256xf32>
    %103 = vector.shape_cast %102 : vector<8x256xf32> to vector<1x8x256xf32>
    %104 = vector.broadcast %96 : vector<2x1x256xf32> to vector<2x8x256xf32>
    %105 = vector.broadcast %100 : vector<1x8x256xf32> to vector<2x8x256xf32>
    %106 = arith.mulf %104, %105 : vector<2x8x256xf32>
    %107 = vector.broadcast %97 : vector<2x1x256xf32> to vector<2x8x256xf32>
    %108 = vector.broadcast %103 : vector<1x8x256xf32> to vector<2x8x256xf32>
    %109 = arith.mulf %107, %108 : vector<2x8x256xf32>
    %110 = arith.subf %106, %109 : vector<2x8x256xf32>
    %111 = vector.broadcast %96 : vector<2x1x256xf32> to vector<2x8x256xf32>
    %112 = vector.broadcast %103 : vector<1x8x256xf32> to vector<2x8x256xf32>
    %113 = arith.mulf %111, %112 : vector<2x8x256xf32>
    %114 = vector.broadcast %97 : vector<2x1x256xf32> to vector<2x8x256xf32>
    %115 = vector.broadcast %100 : vector<1x8x256xf32> to vector<2x8x256xf32>
    %116 = arith.mulf %114, %115 : vector<2x8x256xf32>
    %117 = arith.addf %113, %116 : vector<2x8x256xf32>
    %118 = arith.addf %94, %110 : vector<2x8x256xf32>
    %119 = arith.addf %95, %117 : vector<2x8x256xf32>
    %120 = vector.extract_strided_slice %0 {offsets = [0, 5, 0], sizes = [2, 1, 256], strides = [1, 1, 1]} : vector<2x8x256xf32> to vector<2x1x256xf32>
    %121 = vector.extract_strided_slice %1 {offsets = [0, 5, 0], sizes = [2, 1, 256], strides = [1, 1, 1]} : vector<2x8x256xf32> to vector<2x1x256xf32>
    %c5 = arith.constant 5 : index
    %c0_31 = arith.constant 0 : index
    %c0_32 = arith.constant 0 : index
    %122 = vector.load %arg3[%c5, %c0_31, %c0_32] : memref<8x8x256xf32, #tpu.memory_space<vmem>>, vector<1x8x256xf32>
    %123 = vector.shape_cast %122 : vector<1x8x256xf32> to vector<8x256xf32>
    %124 = vector.shape_cast %123 : vector<8x256xf32> to vector<1x8x256xf32>
    %c5_33 = arith.constant 5 : index
    %c0_34 = arith.constant 0 : index
    %c0_35 = arith.constant 0 : index
    %125 = vector.load %arg4[%c5_33, %c0_34, %c0_35] : memref<8x8x256xf32, #tpu.memory_space<vmem>>, vector<1x8x256xf32>
    %126 = vector.shape_cast %125 : vector<1x8x256xf32> to vector<8x256xf32>
    %127 = vector.shape_cast %126 : vector<8x256xf32> to vector<1x8x256xf32>
    %128 = vector.broadcast %120 : vector<2x1x256xf32> to vector<2x8x256xf32>
    %129 = vector.broadcast %124 : vector<1x8x256xf32> to vector<2x8x256xf32>
    %130 = arith.mulf %128, %129 : vector<2x8x256xf32>
    %131 = vector.broadcast %121 : vector<2x1x256xf32> to vector<2x8x256xf32>
    %132 = vector.broadcast %127 : vector<1x8x256xf32> to vector<2x8x256xf32>
    %133 = arith.mulf %131, %132 : vector<2x8x256xf32>
    %134 = arith.subf %130, %133 : vector<2x8x256xf32>
    %135 = vector.broadcast %120 : vector<2x1x256xf32> to vector<2x8x256xf32>
    %136 = vector.broadcast %127 : vector<1x8x256xf32> to vector<2x8x256xf32>
    %137 = arith.mulf %135, %136 : vector<2x8x256xf32>
    %138 = vector.broadcast %121 : vector<2x1x256xf32> to vector<2x8x256xf32>
    %139 = vector.broadcast %124 : vector<1x8x256xf32> to vector<2x8x256xf32>
    %140 = arith.mulf %138, %139 : vector<2x8x256xf32>
    %141 = arith.addf %137, %140 : vector<2x8x256xf32>
    %142 = arith.addf %118, %134 : vector<2x8x256xf32>
    %143 = arith.addf %119, %141 : vector<2x8x256xf32>
    %144 = vector.extract_strided_slice %0 {offsets = [0, 6, 0], sizes = [2, 1, 256], strides = [1, 1, 1]} : vector<2x8x256xf32> to vector<2x1x256xf32>
    %145 = vector.extract_strided_slice %1 {offsets = [0, 6, 0], sizes = [2, 1, 256], strides = [1, 1, 1]} : vector<2x8x256xf32> to vector<2x1x256xf32>
    %c6 = arith.constant 6 : index
    %c0_36 = arith.constant 0 : index
    %c0_37 = arith.constant 0 : index
    %146 = vector.load %arg3[%c6, %c0_36, %c0_37] : memref<8x8x256xf32, #tpu.memory_space<vmem>>, vector<1x8x256xf32>
    %147 = vector.shape_cast %146 : vector<1x8x256xf32> to vector<8x256xf32>
    %148 = vector.shape_cast %147 : vector<8x256xf32> to vector<1x8x256xf32>
    %c6_38 = arith.constant 6 : index
    %c0_39 = arith.constant 0 : index
    %c0_40 = arith.constant 0 : index
    %149 = vector.load %arg4[%c6_38, %c0_39, %c0_40] : memref<8x8x256xf32, #tpu.memory_space<vmem>>, vector<1x8x256xf32>
    %150 = vector.shape_cast %149 : vector<1x8x256xf32> to vector<8x256xf32>
    %151 = vector.shape_cast %150 : vector<8x256xf32> to vector<1x8x256xf32>
    %152 = vector.broadcast %144 : vector<2x1x256xf32> to vector<2x8x256xf32>
    %153 = vector.broadcast %148 : vector<1x8x256xf32> to vector<2x8x256xf32>
    %154 = arith.mulf %152, %153 : vector<2x8x256xf32>
    %155 = vector.broadcast %145 : vector<2x1x256xf32> to vector<2x8x256xf32>
    %156 = vector.broadcast %151 : vector<1x8x256xf32> to vector<2x8x256xf32>
    %157 = arith.mulf %155, %156 : vector<2x8x256xf32>
    %158 = arith.subf %154, %157 : vector<2x8x256xf32>
    %159 = vector.broadcast %144 : vector<2x1x256xf32> to vector<2x8x256xf32>
    %160 = vector.broadcast %151 : vector<1x8x256xf32> to vector<2x8x256xf32>
    %161 = arith.mulf %159, %160 : vector<2x8x256xf32>
    %162 = vector.broadcast %145 : vector<2x1x256xf32> to vector<2x8x256xf32>
    %163 = vector.broadcast %148 : vector<1x8x256xf32> to vector<2x8x256xf32>
    %164 = arith.mulf %162, %163 : vector<2x8x256xf32>
    %165 = arith.addf %161, %164 : vector<2x8x256xf32>
    %166 = arith.addf %142, %158 : vector<2x8x256xf32>
    %167 = arith.addf %143, %165 : vector<2x8x256xf32>
    %168 = vector.extract_strided_slice %0 {offsets = [0, 7, 0], sizes = [2, 1, 256], strides = [1, 1, 1]} : vector<2x8x256xf32> to vector<2x1x256xf32>
    %169 = vector.extract_strided_slice %1 {offsets = [0, 7, 0], sizes = [2, 1, 256], strides = [1, 1, 1]} : vector<2x8x256xf32> to vector<2x1x256xf32>
    %c7 = arith.constant 7 : index
    %c0_41 = arith.constant 0 : index
    %c0_42 = arith.constant 0 : index
    %170 = vector.load %arg3[%c7, %c0_41, %c0_42] : memref<8x8x256xf32, #tpu.memory_space<vmem>>, vector<1x8x256xf32>
    %171 = vector.shape_cast %170 : vector<1x8x256xf32> to vector<8x256xf32>
    %172 = vector.shape_cast %171 : vector<8x256xf32> to vector<1x8x256xf32>
    %c7_43 = arith.constant 7 : index
    %c0_44 = arith.constant 0 : index
    %c0_45 = arith.constant 0 : index
    %173 = vector.load %arg4[%c7_43, %c0_44, %c0_45] : memref<8x8x256xf32, #tpu.memory_space<vmem>>, vector<1x8x256xf32>
    %174 = vector.shape_cast %173 : vector<1x8x256xf32> to vector<8x256xf32>
    %175 = vector.shape_cast %174 : vector<8x256xf32> to vector<1x8x256xf32>
    %176 = vector.broadcast %168 : vector<2x1x256xf32> to vector<2x8x256xf32>
    %177 = vector.broadcast %172 : vector<1x8x256xf32> to vector<2x8x256xf32>
    %178 = arith.mulf %176, %177 : vector<2x8x256xf32>
    %179 = vector.broadcast %169 : vector<2x1x256xf32> to vector<2x8x256xf32>
    %180 = vector.broadcast %175 : vector<1x8x256xf32> to vector<2x8x256xf32>
    %181 = arith.mulf %179, %180 : vector<2x8x256xf32>
    %182 = arith.subf %178, %181 : vector<2x8x256xf32>
    %183 = vector.broadcast %168 : vector<2x1x256xf32> to vector<2x8x256xf32>
    %184 = vector.broadcast %175 : vector<1x8x256xf32> to vector<2x8x256xf32>
    %185 = arith.mulf %183, %184 : vector<2x8x256xf32>
    %186 = vector.broadcast %169 : vector<2x1x256xf32> to vector<2x8x256xf32>
    %187 = vector.broadcast %172 : vector<1x8x256xf32> to vector<2x8x256xf32>
    %188 = arith.mulf %186, %187 : vector<2x8x256xf32>
    %189 = arith.addf %185, %188 : vector<2x8x256xf32>
    %190 = arith.addf %166, %182 : vector<2x8x256xf32>
    %191 = arith.addf %167, %189 : vector<2x8x256xf32>
    %c0_46 = arith.constant 0 : index
    %c0_47 = arith.constant 0 : index
    %c0_48 = arith.constant 0 : index
    %192 = vector.load %arg5[%c0_46, %c0_47, %c0_48] : memref<2x8x256xf32, #tpu.memory_space<vmem>>, vector<2x8x256xf32>
    tpu.vector_store %arg5[%c0_46, %c0_47, %c0_48], %190 {strides = array<i32>} : memref<2x8x256xf32, #tpu.memory_space<vmem>>, vector<2x8x256xf32>,
    %c0_49 = arith.constant 0 : index
    %c0_50 = arith.constant 0 : index
    %c0_51 = arith.constant 0 : index
    %193 = vector.load %arg6[%c0_49, %c0_50, %c0_51] : memref<2x8x256xf32, #tpu.memory_space<vmem>>, vector<2x8x256xf32>
    tpu.vector_store %arg6[%c0_49, %c0_50, %c0_51], %191 {strides = array<i32>} : memref<2x8x256xf32, #tpu.memory_space<vmem>>, vector<2x8x256xf32>,
    return
  }
  func.func @transform_0(%arg0: i32) -> (i32, i32, i32) {
    %c0_i32 = arith.constant 0 : i32
    %c0_i32_0 = arith.constant 0 : i32
    %c0_i32_1 = arith.constant 0 : i32
    return %c0_i32, %c0_i32_0, %arg0 : i32, i32, i32
  }
  func.func @transform_1(%arg0: i32) -> (i32, i32, i32) {
    %c0_i32 = arith.constant 0 : i32
    %c0_i32_0 = arith.constant 0 : i32
    %c0_i32_1 = arith.constant 0 : i32
    return %c0_i32, %c0_i32_0, %arg0 : i32, i32, i32
  }
  func.func @transform_2(%arg0: i32) -> (i32, i32, i32) {
    %c0_i32 = arith.constant 0 : i32
    %c0_i32_0 = arith.constant 0 : i32
    %c0_i32_1 = arith.constant 0 : i32
    return %c0_i32, %c0_i32_0, %arg0 : i32, i32, i32
  }
  func.func @transform_3(%arg0: i32) -> (i32, i32, i32) {
    %c0_i32 = arith.constant 0 : i32
    %c0_i32_0 = arith.constant 0 : i32
    %c0_i32_1 = arith.constant 0 : i32
    return %c0_i32, %c0_i32_0, %arg0 : i32, i32, i32
  }
  func.func @transform_4(%arg0: i32) -> (i32, i32, i32) {
    %c0_i32 = arith.constant 0 : i32
    %c0_i32_0 = arith.constant 0 : i32
    %c0_i32_1 = arith.constant 0 : i32
    return %c0_i32, %c0_i32_0, %arg0 : i32, i32, i32
  }
  func.func @transform_5(%arg0: i32) -> (i32, i32, i32) {
    %c0_i32 = arith.constant 0 : i32
    %c0_i32_0 = arith.constant 0 : i32
    %c0_i32_1 = arith.constant 0 : i32
    return %c0_i32, %c0_i32_0, %arg0 : i32, i32, i32
  }
}

module attributes {stable_mosaic.version = 11 : i64} {
  func.func @_resid_bn_relu_fused_kernel(%arg0: memref<2x8x512xf32, #tpu.memory_space<vmem>>, %arg1: memref<2x8x512xf32, #tpu.memory_space<vmem>>, %arg2: memref<8x8xf32, #tpu.memory_space<vmem>>, %arg3: memref<8x1xf32, #tpu.memory_space<vmem>>, %arg4: memref<8x1xf32, #tpu.memory_space<vmem>>, %arg5: memref<8x1xf32, #tpu.memory_space<vmem>>, %arg6: memref<2x8x512xf32, #tpu.memory_space<vmem>>) attributes {dimension_semantics = [], scalar_prefetch = 0 : i64, scratch_operands = 0 : i64, tpu.core_type = #tpu.core_type<tc>} {
    %c0 = arith.constant 0 : index
    %c0_0 = arith.constant 0 : index
    %0 = vector.load %arg2[%c0, %c0_0] : memref<8x8xf32, #tpu.memory_space<vmem>>, vector<8x8xf32>
    %c0_1 = arith.constant 0 : index
    %c0_2 = arith.constant 0 : index
    %1 = vector.load %arg3[%c0_1, %c0_2] : memref<8x1xf32, #tpu.memory_space<vmem>>, vector<8x1xf32>
    %c0_3 = arith.constant 0 : index
    %c0_4 = arith.constant 0 : index
    %c0_5 = arith.constant 0 : index
    %2 = vector.load %arg0[%c0_3, %c0_4, %c0_5] : memref<2x8x512xf32, #tpu.memory_space<vmem>>, vector<1x8x512xf32>
    %3 = vector.shape_cast %2 : vector<1x8x512xf32> to vector<8x512xf32>
    %c0_6 = arith.constant 0 : index
    %c0_7 = arith.constant 0 : index
    %c0_8 = arith.constant 0 : index
    %4 = vector.load %arg1[%c0_6, %c0_7, %c0_8] : memref<2x8x512xf32, #tpu.memory_space<vmem>>, vector<1x8x512xf32>
    %5 = vector.shape_cast %4 : vector<1x8x512xf32> to vector<8x512xf32>
    %6 = vector.extract_strided_slice %0 {offsets = [0, 0], sizes = [8, 1], strides = [1, 1]} : vector<8x8xf32> to vector<8x1xf32>
    %7 = vector.extract_strided_slice %5 {offsets = [0, 0], sizes = [1, 512], strides = [1, 1]} : vector<8x512xf32> to vector<1x512xf32>
    %8 = vector.broadcast %6 : vector<8x1xf32> to vector<8x512xf32>
    %9 = vector.broadcast %7 : vector<1x512xf32> to vector<8x512xf32>
    %10 = arith.mulf %8, %9 : vector<8x512xf32>
    %11 = vector.extract_strided_slice %0 {offsets = [0, 1], sizes = [8, 1], strides = [1, 1]} : vector<8x8xf32> to vector<8x1xf32>
    %12 = vector.extract_strided_slice %5 {offsets = [1, 0], sizes = [1, 512], strides = [1, 1]} : vector<8x512xf32> to vector<1x512xf32>
    %13 = vector.broadcast %11 : vector<8x1xf32> to vector<8x512xf32>
    %14 = vector.broadcast %12 : vector<1x512xf32> to vector<8x512xf32>
    %15 = arith.mulf %13, %14 : vector<8x512xf32>
    %16 = arith.addf %10, %15 : vector<8x512xf32>
    %17 = vector.extract_strided_slice %0 {offsets = [0, 2], sizes = [8, 1], strides = [1, 1]} : vector<8x8xf32> to vector<8x1xf32>
    %18 = vector.extract_strided_slice %5 {offsets = [2, 0], sizes = [1, 512], strides = [1, 1]} : vector<8x512xf32> to vector<1x512xf32>
    %19 = vector.broadcast %17 : vector<8x1xf32> to vector<8x512xf32>
    %20 = vector.broadcast %18 : vector<1x512xf32> to vector<8x512xf32>
    %21 = arith.mulf %19, %20 : vector<8x512xf32>
    %22 = arith.addf %16, %21 : vector<8x512xf32>
    %23 = vector.extract_strided_slice %0 {offsets = [0, 3], sizes = [8, 1], strides = [1, 1]} : vector<8x8xf32> to vector<8x1xf32>
    %24 = vector.extract_strided_slice %5 {offsets = [3, 0], sizes = [1, 512], strides = [1, 1]} : vector<8x512xf32> to vector<1x512xf32>
    %25 = vector.broadcast %23 : vector<8x1xf32> to vector<8x512xf32>
    %26 = vector.broadcast %24 : vector<1x512xf32> to vector<8x512xf32>
    %27 = arith.mulf %25, %26 : vector<8x512xf32>
    %28 = arith.addf %22, %27 : vector<8x512xf32>
    %29 = vector.extract_strided_slice %0 {offsets = [0, 4], sizes = [8, 1], strides = [1, 1]} : vector<8x8xf32> to vector<8x1xf32>
    %30 = vector.extract_strided_slice %5 {offsets = [4, 0], sizes = [1, 512], strides = [1, 1]} : vector<8x512xf32> to vector<1x512xf32>
    %31 = vector.broadcast %29 : vector<8x1xf32> to vector<8x512xf32>
    %32 = vector.broadcast %30 : vector<1x512xf32> to vector<8x512xf32>
    %33 = arith.mulf %31, %32 : vector<8x512xf32>
    %34 = arith.addf %28, %33 : vector<8x512xf32>
    %35 = vector.extract_strided_slice %0 {offsets = [0, 5], sizes = [8, 1], strides = [1, 1]} : vector<8x8xf32> to vector<8x1xf32>
    %36 = vector.extract_strided_slice %5 {offsets = [5, 0], sizes = [1, 512], strides = [1, 1]} : vector<8x512xf32> to vector<1x512xf32>
    %37 = vector.broadcast %35 : vector<8x1xf32> to vector<8x512xf32>
    %38 = vector.broadcast %36 : vector<1x512xf32> to vector<8x512xf32>
    %39 = arith.mulf %37, %38 : vector<8x512xf32>
    %40 = arith.addf %34, %39 : vector<8x512xf32>
    %41 = vector.extract_strided_slice %0 {offsets = [0, 6], sizes = [8, 1], strides = [1, 1]} : vector<8x8xf32> to vector<8x1xf32>
    %42 = vector.extract_strided_slice %5 {offsets = [6, 0], sizes = [1, 512], strides = [1, 1]} : vector<8x512xf32> to vector<1x512xf32>
    %43 = vector.broadcast %41 : vector<8x1xf32> to vector<8x512xf32>
    %44 = vector.broadcast %42 : vector<1x512xf32> to vector<8x512xf32>
    %45 = arith.mulf %43, %44 : vector<8x512xf32>
    %46 = arith.addf %40, %45 : vector<8x512xf32>
    %47 = vector.extract_strided_slice %0 {offsets = [0, 7], sizes = [8, 1], strides = [1, 1]} : vector<8x8xf32> to vector<8x1xf32>
    %48 = vector.extract_strided_slice %5 {offsets = [7, 0], sizes = [1, 512], strides = [1, 1]} : vector<8x512xf32> to vector<1x512xf32>
    %49 = vector.broadcast %47 : vector<8x1xf32> to vector<8x512xf32>
    %50 = vector.broadcast %48 : vector<1x512xf32> to vector<8x512xf32>
    %51 = arith.mulf %49, %50 : vector<8x512xf32>
    %52 = arith.addf %46, %51 : vector<8x512xf32>
    %53 = arith.addf %3, %52 : vector<8x512xf32>
    %54 = vector.broadcast %1 : vector<8x1xf32> to vector<8x512xf32>
    %55 = arith.addf %53, %54 : vector<8x512xf32>
    %c1 = arith.constant 1 : index
    %c0_9 = arith.constant 0 : index
    %c0_10 = arith.constant 0 : index
    %56 = vector.load %arg0[%c1, %c0_9, %c0_10] : memref<2x8x512xf32, #tpu.memory_space<vmem>>, vector<1x8x512xf32>
    %57 = vector.shape_cast %56 : vector<1x8x512xf32> to vector<8x512xf32>
    %c1_11 = arith.constant 1 : index
    %c0_12 = arith.constant 0 : index
    %c0_13 = arith.constant 0 : index
    %58 = vector.load %arg1[%c1_11, %c0_12, %c0_13] : memref<2x8x512xf32, #tpu.memory_space<vmem>>, vector<1x8x512xf32>
    %59 = vector.shape_cast %58 : vector<1x8x512xf32> to vector<8x512xf32>
    %60 = vector.extract_strided_slice %0 {offsets = [0, 0], sizes = [8, 1], strides = [1, 1]} : vector<8x8xf32> to vector<8x1xf32>
    %61 = vector.extract_strided_slice %59 {offsets = [0, 0], sizes = [1, 512], strides = [1, 1]} : vector<8x512xf32> to vector<1x512xf32>
    %62 = vector.broadcast %60 : vector<8x1xf32> to vector<8x512xf32>
    %63 = vector.broadcast %61 : vector<1x512xf32> to vector<8x512xf32>
    %64 = arith.mulf %62, %63 : vector<8x512xf32>
    %65 = vector.extract_strided_slice %0 {offsets = [0, 1], sizes = [8, 1], strides = [1, 1]} : vector<8x8xf32> to vector<8x1xf32>
    %66 = vector.extract_strided_slice %59 {offsets = [1, 0], sizes = [1, 512], strides = [1, 1]} : vector<8x512xf32> to vector<1x512xf32>
    %67 = vector.broadcast %65 : vector<8x1xf32> to vector<8x512xf32>
    %68 = vector.broadcast %66 : vector<1x512xf32> to vector<8x512xf32>
    %69 = arith.mulf %67, %68 : vector<8x512xf32>
    %70 = arith.addf %64, %69 : vector<8x512xf32>
    %71 = vector.extract_strided_slice %0 {offsets = [0, 2], sizes = [8, 1], strides = [1, 1]} : vector<8x8xf32> to vector<8x1xf32>
    %72 = vector.extract_strided_slice %59 {offsets = [2, 0], sizes = [1, 512], strides = [1, 1]} : vector<8x512xf32> to vector<1x512xf32>
    %73 = vector.broadcast %71 : vector<8x1xf32> to vector<8x512xf32>
    %74 = vector.broadcast %72 : vector<1x512xf32> to vector<8x512xf32>
    %75 = arith.mulf %73, %74 : vector<8x512xf32>
    %76 = arith.addf %70, %75 : vector<8x512xf32>
    %77 = vector.extract_strided_slice %0 {offsets = [0, 3], sizes = [8, 1], strides = [1, 1]} : vector<8x8xf32> to vector<8x1xf32>
    %78 = vector.extract_strided_slice %59 {offsets = [3, 0], sizes = [1, 512], strides = [1, 1]} : vector<8x512xf32> to vector<1x512xf32>
    %79 = vector.broadcast %77 : vector<8x1xf32> to vector<8x512xf32>
    %80 = vector.broadcast %78 : vector<1x512xf32> to vector<8x512xf32>
    %81 = arith.mulf %79, %80 : vector<8x512xf32>
    %82 = arith.addf %76, %81 : vector<8x512xf32>
    %83 = vector.extract_strided_slice %0 {offsets = [0, 4], sizes = [8, 1], strides = [1, 1]} : vector<8x8xf32> to vector<8x1xf32>
    %84 = vector.extract_strided_slice %59 {offsets = [4, 0], sizes = [1, 512], strides = [1, 1]} : vector<8x512xf32> to vector<1x512xf32>
    %85 = vector.broadcast %83 : vector<8x1xf32> to vector<8x512xf32>
    %86 = vector.broadcast %84 : vector<1x512xf32> to vector<8x512xf32>
    %87 = arith.mulf %85, %86 : vector<8x512xf32>
    %88 = arith.addf %82, %87 : vector<8x512xf32>
    %89 = vector.extract_strided_slice %0 {offsets = [0, 5], sizes = [8, 1], strides = [1, 1]} : vector<8x8xf32> to vector<8x1xf32>
    %90 = vector.extract_strided_slice %59 {offsets = [5, 0], sizes = [1, 512], strides = [1, 1]} : vector<8x512xf32> to vector<1x512xf32>
    %91 = vector.broadcast %89 : vector<8x1xf32> to vector<8x512xf32>
    %92 = vector.broadcast %90 : vector<1x512xf32> to vector<8x512xf32>
    %93 = arith.mulf %91, %92 : vector<8x512xf32>
    %94 = arith.addf %88, %93 : vector<8x512xf32>
    %95 = vector.extract_strided_slice %0 {offsets = [0, 6], sizes = [8, 1], strides = [1, 1]} : vector<8x8xf32> to vector<8x1xf32>
    %96 = vector.extract_strided_slice %59 {offsets = [6, 0], sizes = [1, 512], strides = [1, 1]} : vector<8x512xf32> to vector<1x512xf32>
    %97 = vector.broadcast %95 : vector<8x1xf32> to vector<8x512xf32>
    %98 = vector.broadcast %96 : vector<1x512xf32> to vector<8x512xf32>
    %99 = arith.mulf %97, %98 : vector<8x512xf32>
    %100 = arith.addf %94, %99 : vector<8x512xf32>
    %101 = vector.extract_strided_slice %0 {offsets = [0, 7], sizes = [8, 1], strides = [1, 1]} : vector<8x8xf32> to vector<8x1xf32>
    %102 = vector.extract_strided_slice %59 {offsets = [7, 0], sizes = [1, 512], strides = [1, 1]} : vector<8x512xf32> to vector<1x512xf32>
    %103 = vector.broadcast %101 : vector<8x1xf32> to vector<8x512xf32>
    %104 = vector.broadcast %102 : vector<1x512xf32> to vector<8x512xf32>
    %105 = arith.mulf %103, %104 : vector<8x512xf32>
    %106 = arith.addf %100, %105 : vector<8x512xf32>
    %107 = arith.addf %57, %106 : vector<8x512xf32>
    %108 = vector.broadcast %1 : vector<8x1xf32> to vector<8x512xf32>
    %109 = arith.addf %107, %108 : vector<8x512xf32>
    %cst = arith.constant dense<0.000000e+00> : vector<8xf32>
    %110 = vector.multi_reduction <add>, %55, %cst [1] : vector<8x512xf32> to vector<8xf32>
    %111 = vector.shape_cast %110 : vector<8xf32> to vector<8x1xf32>
    %cst_14 = arith.constant dense<0.000000e+00> : vector<8xf32>
    %112 = vector.multi_reduction <add>, %109, %cst_14 [1] : vector<8x512xf32> to vector<8xf32>
    %113 = vector.shape_cast %112 : vector<8xf32> to vector<8x1xf32>
    %114 = arith.addf %111, %113 : vector<8x1xf32>
    %cst_15 = arith.constant 9.765625E-4 : f32
    %115 = vector.broadcast %cst_15 : f32 to vector<8x1xf32>
    %116 = arith.mulf %114, %115 : vector<8x1xf32>
    %117 = vector.broadcast %116 : vector<8x1xf32> to vector<8x512xf32>
    %118 = arith.subf %55, %117 : vector<8x512xf32>
    %119 = arith.mulf %118, %118 : vector<8x512xf32>
    %cst_16 = arith.constant dense<0.000000e+00> : vector<8xf32>
    %120 = vector.multi_reduction <add>, %119, %cst_16 [1] : vector<8x512xf32> to vector<8xf32>
    %121 = vector.shape_cast %120 : vector<8xf32> to vector<8x1xf32>
    %122 = vector.broadcast %116 : vector<8x1xf32> to vector<8x512xf32>
    %123 = arith.subf %109, %122 : vector<8x512xf32>
    %124 = arith.mulf %123, %123 : vector<8x512xf32>
    %cst_17 = arith.constant dense<0.000000e+00> : vector<8xf32>
    %125 = vector.multi_reduction <add>, %124, %cst_17 [1] : vector<8x512xf32> to vector<8xf32>
    %126 = vector.shape_cast %125 : vector<8xf32> to vector<8x1xf32>
    %127 = arith.addf %121, %126 : vector<8x1xf32>
    %cst_18 = arith.constant 9.765625E-4 : f32
    %128 = vector.broadcast %cst_18 : f32 to vector<8x1xf32>
    %129 = arith.mulf %127, %128 : vector<8x1xf32>
    %c0_19 = arith.constant 0 : index
    %c0_20 = arith.constant 0 : index
    %130 = vector.load %arg4[%c0_19, %c0_20] : memref<8x1xf32, #tpu.memory_space<vmem>>, vector<8x1xf32>
    %cst_21 = arith.constant 9.99999974E-6 : f32
    %131 = vector.broadcast %cst_21 : f32 to vector<8x1xf32>
    %132 = arith.addf %129, %131 : vector<8x1xf32>
    %133 = math.rsqrt %132 : vector<8x1xf32>
    %134 = arith.mulf %130, %133 : vector<8x1xf32>
    %c0_22 = arith.constant 0 : index
    %c0_23 = arith.constant 0 : index
    %135 = vector.load %arg5[%c0_22, %c0_23] : memref<8x1xf32, #tpu.memory_space<vmem>>, vector<8x1xf32>
    %136 = arith.mulf %116, %134 : vector<8x1xf32>
    %137 = arith.subf %135, %136 : vector<8x1xf32>
    %138 = vector.broadcast %134 : vector<8x1xf32> to vector<8x512xf32>
    %139 = arith.mulf %55, %138 : vector<8x512xf32>
    %140 = vector.broadcast %137 : vector<8x1xf32> to vector<8x512xf32>
    %141 = arith.addf %139, %140 : vector<8x512xf32>
    %cst_24 = arith.constant 0.000000e+00 : f32
    %142 = vector.broadcast %cst_24 : f32 to vector<8x512xf32>
    %143 = arith.maximumf %141, %142 : vector<8x512xf32>
    %c0_25 = arith.constant 0 : index
    %c0_26 = arith.constant 0 : index
    %c0_27 = arith.constant 0 : index
    %144 = vector.load %arg6[%c0_25, %c0_26, %c0_27] : memref<2x8x512xf32, #tpu.memory_space<vmem>>, vector<1x8x512xf32>
    %145 = vector.shape_cast %144 : vector<1x8x512xf32> to vector<8x512xf32>
    %146 = vector.shape_cast %143 : vector<8x512xf32> to vector<1x8x512xf32>
    tpu.vector_store %arg6[%c0_25, %c0_26, %c0_27], %146 {strides = array<i32>} : memref<2x8x512xf32, #tpu.memory_space<vmem>>, vector<1x8x512xf32>,
    %147 = vector.broadcast %134 : vector<8x1xf32> to vector<8x512xf32>
    %148 = arith.mulf %109, %147 : vector<8x512xf32>
    %149 = vector.broadcast %137 : vector<8x1xf32> to vector<8x512xf32>
    %150 = arith.addf %148, %149 : vector<8x512xf32>
    %cst_28 = arith.constant 0.000000e+00 : f32
    %151 = vector.broadcast %cst_28 : f32 to vector<8x512xf32>
    %152 = arith.maximumf %150, %151 : vector<8x512xf32>
    %c1_29 = arith.constant 1 : index
    %c0_30 = arith.constant 0 : index
    %c0_31 = arith.constant 0 : index
    %153 = vector.load %arg6[%c1_29, %c0_30, %c0_31] : memref<2x8x512xf32, #tpu.memory_space<vmem>>, vector<1x8x512xf32>
    %154 = vector.shape_cast %153 : vector<1x8x512xf32> to vector<8x512xf32>
    %155 = vector.shape_cast %152 : vector<8x512xf32> to vector<1x8x512xf32>
    tpu.vector_store %arg6[%c1_29, %c0_30, %c0_31], %155 {strides = array<i32>} : memref<2x8x512xf32, #tpu.memory_space<vmem>>, vector<1x8x512xf32>,
    return
  }
}

module attributes {stable_mosaic.version = 11 : i64} {
  func.func @_resid_bn_relu_fused_kernel(%arg0: memref<2x8x512xf32, #tpu.memory_space<vmem>>, %arg1: memref<2x8x512xf32, #tpu.memory_space<vmem>>, %arg2: memref<8x8xf32, #tpu.memory_space<vmem>>, %arg3: memref<8x1xf32, #tpu.memory_space<vmem>>, %arg4: memref<8x1xf32, #tpu.memory_space<vmem>>, %arg5: memref<8x1xf32, #tpu.memory_space<vmem>>, %arg6: memref<2x8x512xf32, #tpu.memory_space<vmem>>) attributes {dimension_semantics = [], scalar_prefetch = 0 : i64, scratch_operands = 0 : i64, tpu.core_type = #tpu.core_type<tc>} {
    %c0 = arith.constant 0 : index
    %c0_0 = arith.constant 0 : index
    %0 = vector.load %arg2[%c0, %c0_0] : memref<8x8xf32, #tpu.memory_space<vmem>>, vector<8x8xf32>
    %c0_1 = arith.constant 0 : index
    %c0_2 = arith.constant 0 : index
    %1 = vector.load %arg3[%c0_1, %c0_2] : memref<8x1xf32, #tpu.memory_space<vmem>>, vector<8x1xf32>
    %c0_3 = arith.constant 0 : index
    %c0_4 = arith.constant 0 : index
    %c0_5 = arith.constant 0 : index
    %2 = vector.load %arg0[%c0_3, %c0_4, %c0_5] : memref<2x8x512xf32, #tpu.memory_space<vmem>>, vector<1x8x512xf32>
    %3 = vector.shape_cast %2 : vector<1x8x512xf32> to vector<8x512xf32>
    %c0_6 = arith.constant 0 : index
    %c0_7 = arith.constant 0 : index
    %c0_8 = arith.constant 0 : index
    %4 = vector.load %arg1[%c0_6, %c0_7, %c0_8] : memref<2x8x512xf32, #tpu.memory_space<vmem>>, vector<1x8x512xf32>
    %5 = vector.shape_cast %4 : vector<1x8x512xf32> to vector<8x512xf32>
    %6 = vector.extract_strided_slice %0 {offsets = [0, 0], sizes = [8, 1], strides = [1, 1]} : vector<8x8xf32> to vector<8x1xf32>
    %7 = vector.extract_strided_slice %5 {offsets = [0, 0], sizes = [1, 512], strides = [1, 1]} : vector<8x512xf32> to vector<1x512xf32>
    %8 = vector.broadcast %6 : vector<8x1xf32> to vector<8x512xf32>
    %9 = vector.broadcast %7 : vector<1x512xf32> to vector<8x512xf32>
    %10 = arith.mulf %8, %9 : vector<8x512xf32>
    %11 = vector.extract_strided_slice %0 {offsets = [0, 1], sizes = [8, 1], strides = [1, 1]} : vector<8x8xf32> to vector<8x1xf32>
    %12 = vector.extract_strided_slice %5 {offsets = [1, 0], sizes = [1, 512], strides = [1, 1]} : vector<8x512xf32> to vector<1x512xf32>
    %13 = vector.broadcast %11 : vector<8x1xf32> to vector<8x512xf32>
    %14 = vector.broadcast %12 : vector<1x512xf32> to vector<8x512xf32>
    %15 = arith.mulf %13, %14 : vector<8x512xf32>
    %16 = arith.addf %10, %15 : vector<8x512xf32>
    %17 = vector.extract_strided_slice %0 {offsets = [0, 2], sizes = [8, 1], strides = [1, 1]} : vector<8x8xf32> to vector<8x1xf32>
    %18 = vector.extract_strided_slice %5 {offsets = [2, 0], sizes = [1, 512], strides = [1, 1]} : vector<8x512xf32> to vector<1x512xf32>
    %19 = vector.broadcast %17 : vector<8x1xf32> to vector<8x512xf32>
    %20 = vector.broadcast %18 : vector<1x512xf32> to vector<8x512xf32>
    %21 = arith.mulf %19, %20 : vector<8x512xf32>
    %22 = arith.addf %16, %21 : vector<8x512xf32>
    %23 = vector.extract_strided_slice %0 {offsets = [0, 3], sizes = [8, 1], strides = [1, 1]} : vector<8x8xf32> to vector<8x1xf32>
    %24 = vector.extract_strided_slice %5 {offsets = [3, 0], sizes = [1, 512], strides = [1, 1]} : vector<8x512xf32> to vector<1x512xf32>
    %25 = vector.broadcast %23 : vector<8x1xf32> to vector<8x512xf32>
    %26 = vector.broadcast %24 : vector<1x512xf32> to vector<8x512xf32>
    %27 = arith.mulf %25, %26 : vector<8x512xf32>
    %28 = arith.addf %22, %27 : vector<8x512xf32>
    %29 = vector.extract_strided_slice %0 {offsets = [0, 4], sizes = [8, 1], strides = [1, 1]} : vector<8x8xf32> to vector<8x1xf32>
    %30 = vector.extract_strided_slice %5 {offsets = [4, 0], sizes = [1, 512], strides = [1, 1]} : vector<8x512xf32> to vector<1x512xf32>
    %31 = vector.broadcast %29 : vector<8x1xf32> to vector<8x512xf32>
    %32 = vector.broadcast %30 : vector<1x512xf32> to vector<8x512xf32>
    %33 = arith.mulf %31, %32 : vector<8x512xf32>
    %34 = arith.addf %28, %33 : vector<8x512xf32>
    %35 = vector.extract_strided_slice %0 {offsets = [0, 5], sizes = [8, 1], strides = [1, 1]} : vector<8x8xf32> to vector<8x1xf32>
    %36 = vector.extract_strided_slice %5 {offsets = [5, 0], sizes = [1, 512], strides = [1, 1]} : vector<8x512xf32> to vector<1x512xf32>
    %37 = vector.broadcast %35 : vector<8x1xf32> to vector<8x512xf32>
    %38 = vector.broadcast %36 : vector<1x512xf32> to vector<8x512xf32>
    %39 = arith.mulf %37, %38 : vector<8x512xf32>
    %40 = arith.addf %34, %39 : vector<8x512xf32>
    %41 = vector.extract_strided_slice %0 {offsets = [0, 6], sizes = [8, 1], strides = [1, 1]} : vector<8x8xf32> to vector<8x1xf32>
    %42 = vector.extract_strided_slice %5 {offsets = [6, 0], sizes = [1, 512], strides = [1, 1]} : vector<8x512xf32> to vector<1x512xf32>
    %43 = vector.broadcast %41 : vector<8x1xf32> to vector<8x512xf32>
    %44 = vector.broadcast %42 : vector<1x512xf32> to vector<8x512xf32>
    %45 = arith.mulf %43, %44 : vector<8x512xf32>
    %46 = arith.addf %40, %45 : vector<8x512xf32>
    %47 = vector.extract_strided_slice %0 {offsets = [0, 7], sizes = [8, 1], strides = [1, 1]} : vector<8x8xf32> to vector<8x1xf32>
    %48 = vector.extract_strided_slice %5 {offsets = [7, 0], sizes = [1, 512], strides = [1, 1]} : vector<8x512xf32> to vector<1x512xf32>
    %49 = vector.broadcast %47 : vector<8x1xf32> to vector<8x512xf32>
    %50 = vector.broadcast %48 : vector<1x512xf32> to vector<8x512xf32>
    %51 = arith.mulf %49, %50 : vector<8x512xf32>
    %52 = arith.addf %46, %51 : vector<8x512xf32>
    %53 = arith.addf %3, %52 : vector<8x512xf32>
    %54 = vector.broadcast %1 : vector<8x1xf32> to vector<8x512xf32>
    %55 = arith.addf %53, %54 : vector<8x512xf32>
    %c1 = arith.constant 1 : index
    %c0_9 = arith.constant 0 : index
    %c0_10 = arith.constant 0 : index
    %56 = vector.load %arg0[%c1, %c0_9, %c0_10] : memref<2x8x512xf32, #tpu.memory_space<vmem>>, vector<1x8x512xf32>
    %57 = vector.shape_cast %56 : vector<1x8x512xf32> to vector<8x512xf32>
    %c1_11 = arith.constant 1 : index
    %c0_12 = arith.constant 0 : index
    %c0_13 = arith.constant 0 : index
    %58 = vector.load %arg1[%c1_11, %c0_12, %c0_13] : memref<2x8x512xf32, #tpu.memory_space<vmem>>, vector<1x8x512xf32>
    %59 = vector.shape_cast %58 : vector<1x8x512xf32> to vector<8x512xf32>
    %60 = vector.extract_strided_slice %0 {offsets = [0, 0], sizes = [8, 1], strides = [1, 1]} : vector<8x8xf32> to vector<8x1xf32>
    %61 = vector.extract_strided_slice %59 {offsets = [0, 0], sizes = [1, 512], strides = [1, 1]} : vector<8x512xf32> to vector<1x512xf32>
    %62 = vector.broadcast %60 : vector<8x1xf32> to vector<8x512xf32>
    %63 = vector.broadcast %61 : vector<1x512xf32> to vector<8x512xf32>
    %64 = arith.mulf %62, %63 : vector<8x512xf32>
    %65 = vector.extract_strided_slice %0 {offsets = [0, 1], sizes = [8, 1], strides = [1, 1]} : vector<8x8xf32> to vector<8x1xf32>
    %66 = vector.extract_strided_slice %59 {offsets = [1, 0], sizes = [1, 512], strides = [1, 1]} : vector<8x512xf32> to vector<1x512xf32>
    %67 = vector.broadcast %65 : vector<8x1xf32> to vector<8x512xf32>
    %68 = vector.broadcast %66 : vector<1x512xf32> to vector<8x512xf32>
    %69 = arith.mulf %67, %68 : vector<8x512xf32>
    %70 = arith.addf %64, %69 : vector<8x512xf32>
    %71 = vector.extract_strided_slice %0 {offsets = [0, 2], sizes = [8, 1], strides = [1, 1]} : vector<8x8xf32> to vector<8x1xf32>
    %72 = vector.extract_strided_slice %59 {offsets = [2, 0], sizes = [1, 512], strides = [1, 1]} : vector<8x512xf32> to vector<1x512xf32>
    %73 = vector.broadcast %71 : vector<8x1xf32> to vector<8x512xf32>
    %74 = vector.broadcast %72 : vector<1x512xf32> to vector<8x512xf32>
    %75 = arith.mulf %73, %74 : vector<8x512xf32>
    %76 = arith.addf %70, %75 : vector<8x512xf32>
    %77 = vector.extract_strided_slice %0 {offsets = [0, 3], sizes = [8, 1], strides = [1, 1]} : vector<8x8xf32> to vector<8x1xf32>
    %78 = vector.extract_strided_slice %59 {offsets = [3, 0], sizes = [1, 512], strides = [1, 1]} : vector<8x512xf32> to vector<1x512xf32>
    %79 = vector.broadcast %77 : vector<8x1xf32> to vector<8x512xf32>
    %80 = vector.broadcast %78 : vector<1x512xf32> to vector<8x512xf32>
    %81 = arith.mulf %79, %80 : vector<8x512xf32>
    %82 = arith.addf %76, %81 : vector<8x512xf32>
    %83 = vector.extract_strided_slice %0 {offsets = [0, 4], sizes = [8, 1], strides = [1, 1]} : vector<8x8xf32> to vector<8x1xf32>
    %84 = vector.extract_strided_slice %59 {offsets = [4, 0], sizes = [1, 512], strides = [1, 1]} : vector<8x512xf32> to vector<1x512xf32>
    %85 = vector.broadcast %83 : vector<8x1xf32> to vector<8x512xf32>
    %86 = vector.broadcast %84 : vector<1x512xf32> to vector<8x512xf32>
    %87 = arith.mulf %85, %86 : vector<8x512xf32>
    %88 = arith.addf %82, %87 : vector<8x512xf32>
    %89 = vector.extract_strided_slice %0 {offsets = [0, 5], sizes = [8, 1], strides = [1, 1]} : vector<8x8xf32> to vector<8x1xf32>
    %90 = vector.extract_strided_slice %59 {offsets = [5, 0], sizes = [1, 512], strides = [1, 1]} : vector<8x512xf32> to vector<1x512xf32>
    %91 = vector.broadcast %89 : vector<8x1xf32> to vector<8x512xf32>
    %92 = vector.broadcast %90 : vector<1x512xf32> to vector<8x512xf32>
    %93 = arith.mulf %91, %92 : vector<8x512xf32>
    %94 = arith.addf %88, %93 : vector<8x512xf32>
    %95 = vector.extract_strided_slice %0 {offsets = [0, 6], sizes = [8, 1], strides = [1, 1]} : vector<8x8xf32> to vector<8x1xf32>
    %96 = vector.extract_strided_slice %59 {offsets = [6, 0], sizes = [1, 512], strides = [1, 1]} : vector<8x512xf32> to vector<1x512xf32>
    %97 = vector.broadcast %95 : vector<8x1xf32> to vector<8x512xf32>
    %98 = vector.broadcast %96 : vector<1x512xf32> to vector<8x512xf32>
    %99 = arith.mulf %97, %98 : vector<8x512xf32>
    %100 = arith.addf %94, %99 : vector<8x512xf32>
    %101 = vector.extract_strided_slice %0 {offsets = [0, 7], sizes = [8, 1], strides = [1, 1]} : vector<8x8xf32> to vector<8x1xf32>
    %102 = vector.extract_strided_slice %59 {offsets = [7, 0], sizes = [1, 512], strides = [1, 1]} : vector<8x512xf32> to vector<1x512xf32>
    %103 = vector.broadcast %101 : vector<8x1xf32> to vector<8x512xf32>
    %104 = vector.broadcast %102 : vector<1x512xf32> to vector<8x512xf32>
    %105 = arith.mulf %103, %104 : vector<8x512xf32>
    %106 = arith.addf %100, %105 : vector<8x512xf32>
    %107 = arith.addf %57, %106 : vector<8x512xf32>
    %108 = vector.broadcast %1 : vector<8x1xf32> to vector<8x512xf32>
    %109 = arith.addf %107, %108 : vector<8x512xf32>
    %cst = arith.constant dense<0.000000e+00> : vector<8xf32>
    %110 = vector.multi_reduction <add>, %55, %cst [1] : vector<8x512xf32> to vector<8xf32>
    %111 = vector.shape_cast %110 : vector<8xf32> to vector<8x1xf32>
    %cst_14 = arith.constant dense<0.000000e+00> : vector<8xf32>
    %112 = vector.multi_reduction <add>, %109, %cst_14 [1] : vector<8x512xf32> to vector<8xf32>
    %113 = vector.shape_cast %112 : vector<8xf32> to vector<8x1xf32>
    %114 = arith.addf %111, %113 : vector<8x1xf32>
    %cst_15 = arith.constant 9.765625E-4 : f32
    %115 = vector.broadcast %cst_15 : f32 to vector<8x1xf32>
    %116 = arith.mulf %114, %115 : vector<8x1xf32>
    %117 = vector.broadcast %116 : vector<8x1xf32> to vector<8x512xf32>
    %118 = arith.subf %55, %117 : vector<8x512xf32>
    %119 = arith.mulf %118, %118 : vector<8x512xf32>
    %cst_16 = arith.constant dense<0.000000e+00> : vector<8xf32>
    %120 = vector.multi_reduction <add>, %119, %cst_16 [1] : vector<8x512xf32> to vector<8xf32>
    %121 = vector.shape_cast %120 : vector<8xf32> to vector<8x1xf32>
    %122 = vector.broadcast %116 : vector<8x1xf32> to vector<8x512xf32>
    %123 = arith.subf %109, %122 : vector<8x512xf32>
    %124 = arith.mulf %123, %123 : vector<8x512xf32>
    %cst_17 = arith.constant dense<0.000000e+00> : vector<8xf32>
    %125 = vector.multi_reduction <add>, %124, %cst_17 [1] : vector<8x512xf32> to vector<8xf32>
    %126 = vector.shape_cast %125 : vector<8xf32> to vector<8x1xf32>
    %127 = arith.addf %121, %126 : vector<8x1xf32>
    %cst_18 = arith.constant 9.765625E-4 : f32
    %128 = vector.broadcast %cst_18 : f32 to vector<8x1xf32>
    %129 = arith.mulf %127, %128 : vector<8x1xf32>
    %c0_19 = arith.constant 0 : index
    %c0_20 = arith.constant 0 : index
    %130 = vector.load %arg4[%c0_19, %c0_20] : memref<8x1xf32, #tpu.memory_space<vmem>>, vector<8x1xf32>
    %cst_21 = arith.constant 9.99999974E-6 : f32
    %131 = vector.broadcast %cst_21 : f32 to vector<8x1xf32>
    %132 = arith.addf %129, %131 : vector<8x1xf32>
    %133 = math.rsqrt %132 : vector<8x1xf32>
    %134 = arith.mulf %130, %133 : vector<8x1xf32>
    %c0_22 = arith.constant 0 : index
    %c0_23 = arith.constant 0 : index
    %135 = vector.load %arg5[%c0_22, %c0_23] : memref<8x1xf32, #tpu.memory_space<vmem>>, vector<8x1xf32>
    %136 = arith.mulf %116, %134 : vector<8x1xf32>
    %137 = arith.subf %135, %136 : vector<8x1xf32>
    %138 = vector.broadcast %134 : vector<8x1xf32> to vector<8x512xf32>
    %139 = arith.mulf %55, %138 : vector<8x512xf32>
    %140 = vector.broadcast %137 : vector<8x1xf32> to vector<8x512xf32>
    %141 = arith.addf %139, %140 : vector<8x512xf32>
    %c0_24 = arith.constant 0 : index
    %c0_25 = arith.constant 0 : index
    %c0_26 = arith.constant 0 : index
    %142 = vector.load %arg6[%c0_24, %c0_25, %c0_26] : memref<2x8x512xf32, #tpu.memory_space<vmem>>, vector<1x8x512xf32>
    %143 = vector.shape_cast %142 : vector<1x8x512xf32> to vector<8x512xf32>
    %144 = vector.shape_cast %141 : vector<8x512xf32> to vector<1x8x512xf32>
    tpu.vector_store %arg6[%c0_24, %c0_25, %c0_26], %144 {strides = array<i32>} : memref<2x8x512xf32, #tpu.memory_space<vmem>>, vector<1x8x512xf32>,
    %145 = vector.broadcast %134 : vector<8x1xf32> to vector<8x512xf32>
    %146 = arith.mulf %109, %145 : vector<8x512xf32>
    %147 = vector.broadcast %137 : vector<8x1xf32> to vector<8x512xf32>
    %148 = arith.addf %146, %147 : vector<8x512xf32>
    %c1_27 = arith.constant 1 : index
    %c0_28 = arith.constant 0 : index
    %c0_29 = arith.constant 0 : index
    %149 = vector.load %arg6[%c1_27, %c0_28, %c0_29] : memref<2x8x512xf32, #tpu.memory_space<vmem>>, vector<1x8x512xf32>
    %150 = vector.shape_cast %149 : vector<1x8x512xf32> to vector<8x512xf32>
    %151 = vector.shape_cast %148 : vector<8x512xf32> to vector<1x8x512xf32>
    tpu.vector_store %arg6[%c1_27, %c0_28, %c0_29], %151 {strides = array<i32>} : memref<2x8x512xf32, #tpu.memory_space<vmem>>, vector<1x8x512xf32>,
    return
  }
}

module attributes {stable_mosaic.version = 11 : i64} {
  func.func @_fc_head_kernel(%arg0: i32, %arg1: i32, %arg2: memref<1x8x512xf32, #tpu.memory_space<vmem>>, %arg3: memref<128x8xf32, #tpu.memory_space<vmem>>, %arg4: memref<128x1xf32, #tpu.memory_space<vmem>>, %arg5: memref<128x1xf32, #tpu.memory_space<vmem>>, %arg6: memref<1x1xf32, #tpu.memory_space<vmem>>, %arg7: memref<1x1x512xf32, #tpu.memory_space<vmem>>) attributes {dimension_semantics = [#tpu.dimension_semantics<parallel>, #tpu.dimension_semantics<parallel>], iteration_bounds = array<i64: 2, 1>, scalar_prefetch = 0 : i64, scratch_operands = 0 : i64, tpu.core_type = #tpu.core_type<tc>, window_params = [{transform_indices = @transform_0, window_bounds = array<i64: 1, 8, 512>}, {pipeline_mode = #tpu.pipeline_mode<synchronous>, transform_indices = @transform_1, window_bounds = array<i64: 128, 8>}, {pipeline_mode = #tpu.pipeline_mode<synchronous>, transform_indices = @transform_2, window_bounds = array<i64: 128, 1>}, {pipeline_mode = #tpu.pipeline_mode<synchronous>, transform_indices = @transform_3, window_bounds = array<i64: 128, 1>}, {pipeline_mode = #tpu.pipeline_mode<synchronous>, transform_indices = @transform_4, window_bounds = array<i64: 1, 1>}, {transform_indices = @transform_5, window_bounds = array<i64: 1, 1, 512>}]} {
    %c0 = arith.constant 0 : index
    %c0_0 = arith.constant 0 : index
    %c0_1 = arith.constant 0 : index
    %0 = vector.load %arg2[%c0, %c0_0, %c0_1] : memref<1x8x512xf32, #tpu.memory_space<vmem>>, vector<1x8x512xf32>
    %1 = vector.shape_cast %0 : vector<1x8x512xf32> to vector<8x512xf32>
    %c0_2 = arith.constant 0 : index
    %c0_3 = arith.constant 0 : index
    %2 = vector.load %arg3[%c0_2, %c0_3] : memref<128x8xf32, #tpu.memory_space<vmem>>, vector<128x8xf32>
    %cst = arith.constant dense<0.000000e+00> : vector<128x512xf32>
    %3 = tpu.matmul %2, %1, %cst {dimension_numbers = #tpu.dot_dimension_numbers<[1], [0], [0], [1], [0, 0, 1, 1], [], []>} : vector<128x8xf32>, vector<8x512xf32>, vector<128x512xf32> -> vector<128x512xf32>
    %c0_4 = arith.constant 0 : index
    %c0_5 = arith.constant 0 : index
    %4 = vector.load %arg4[%c0_4, %c0_5] : memref<128x1xf32, #tpu.memory_space<vmem>>, vector<128x1xf32>
    %5 = vector.broadcast %4 : vector<128x1xf32> to vector<128x512xf32>
    %6 = arith.addf %3, %5 : vector<128x512xf32>
    %cst_6 = arith.constant 0.000000e+00 : f32
    %7 = vector.broadcast %cst_6 : f32 to vector<128x512xf32>
    %8 = arith.maximumf %6, %7 : vector<128x512xf32>
    %c0_7 = arith.constant 0 : index
    %c0_8 = arith.constant 0 : index
    %9 = vector.load %arg5[%c0_7, %c0_8] : memref<128x1xf32, #tpu.memory_space<vmem>>, vector<128x1xf32>
    %10 = vector.broadcast %9 : vector<128x1xf32> to vector<128x512xf32>
    %11 = arith.mulf %10, %8 : vector<128x512xf32>
    %cst_9 = arith.constant dense<0.000000e+00> : vector<512xf32>
    %12 = vector.multi_reduction <add>, %11, %cst_9 [0] : vector<128x512xf32> to vector<512xf32>
    %13 = vector.shape_cast %12 : vector<512xf32> to vector<1x512xf32>
    %c0_10 = arith.constant 0 : index
    %c0_11 = arith.constant 0 : index
    %14 = vector.load %arg6[%c0_10, %c0_11] : memref<1x1xf32, #tpu.memory_space<vmem>>, vector<1x1xf32>
    %15 = vector.broadcast %14 : vector<1x1xf32> to vector<1x512xf32>
    %16 = arith.addf %13, %15 : vector<1x512xf32>
    %c0_12 = arith.constant 0 : index
    %c0_13 = arith.constant 0 : index
    %c0_14 = arith.constant 0 : index
    %17 = vector.load %arg7[%c0_12, %c0_13, %c0_14] : memref<1x1x512xf32, #tpu.memory_space<vmem>>, vector<1x1x512xf32>
    %18 = vector.shape_cast %17 : vector<1x1x512xf32> to vector<1x512xf32>
    %19 = vector.shape_cast %16 : vector<1x512xf32> to vector<1x1x512xf32>
    tpu.vector_store %arg7[%c0_12, %c0_13, %c0_14], %19 {strides = array<i32>} : memref<1x1x512xf32, #tpu.memory_space<vmem>>, vector<1x1x512xf32>,
    return
  }
  func.func @transform_0(%arg0: i32, %arg1: i32) -> (i32, i32, i32) {
    %c0_i32 = arith.constant 0 : i32
    %c0_i32_0 = arith.constant 0 : i32
    return %arg0, %c0_i32, %arg1 : i32, i32, i32
  }
  func.func @transform_1(%arg0: i32, %arg1: i32) -> (i32, i32) {
    %c0_i32 = arith.constant 0 : i32
    %c0_i32_0 = arith.constant 0 : i32
    %c0_i32_1 = arith.constant 0 : i32
    return %c0_i32, %c0_i32_0 : i32, i32
  }
  func.func @transform_2(%arg0: i32, %arg1: i32) -> (i32, i32) {
    %c0_i32 = arith.constant 0 : i32
    %c0_i32_0 = arith.constant 0 : i32
    %c0_i32_1 = arith.constant 0 : i32
    return %c0_i32, %c0_i32_0 : i32, i32
  }
  func.func @transform_3(%arg0: i32, %arg1: i32) -> (i32, i32) {
    %c0_i32 = arith.constant 0 : i32
    %c0_i32_0 = arith.constant 0 : i32
    %c0_i32_1 = arith.constant 0 : i32
    return %c0_i32, %c0_i32_0 : i32, i32
  }
  func.func @transform_4(%arg0: i32, %arg1: i32) -> (i32, i32) {
    %c0_i32 = arith.constant 0 : i32
    %c0_i32_0 = arith.constant 0 : i32
    %c0_i32_1 = arith.constant 0 : i32
    return %c0_i32, %c0_i32_0 : i32, i32
  }
  func.func @transform_5(%arg0: i32, %arg1: i32) -> (i32, i32, i32) {
    %c0_i32 = arith.constant 0 : i32
    %c0_i32_0 = arith.constant 0 : i32
    return %arg0, %c0_i32, %arg1 : i32, i32, i32
  }
}

</mosaic_0001>

<llo_original>
// kernel: simple_block_forward.10
$region0: #{simple_block_forward.10}
  #allocation0 [shape = 'u32[]', space=smem, size = 0x4, offset = 0x4, fixed_abs, tag = 'smem constant byte address 0x4 - core index']
  #allocation1 [shape = 'u32[144,128]{1,0:T(1,128)}', space=vmem, size = 0x12000, scoped, tag = 'internal scratch']
  %s0 = inlined_call_operand.vmem [shape: f32[2,4,512], index: 0, kind: input, shape index: {}]
  %s1 = inlined_call_operand.vmem [shape: f32[8,4], index: 1, kind: input, shape index: {}]
  %s2 = inlined_call_operand.vmem [shape: f32[8,1], index: 2, kind: input, shape index: {}]
  %s3 = inlined_call_operand.vmem [shape: f32[2,8,512], index: 3, kind: output, shape index: {}]
  %s4 = sld [smem:[#allocation0]]
  $region45: #{simple_block_forward.10} parent=0
    _
  %s6 = ssub.s32 1, %s4
  %s7 = scalar_select 0, %s6, %s4
  loop: start=0, step=1, limit=4
  $region2: #{simple_block_forward.10} parent=0 // loop_pre_header
    _
  $region3: #{simple_block_forward.10} parent=0 // loop_header
    %s9 = sphi 0, %s13
    %p10 = scmp.ge.s32.totalorder %s9, 4
    %s16 = sphi 0, %s28
    %s17 = sphi 0, %s24
    %s18 = sphi 0, %s16
    %s19 = sphi 0, %s17
    %s20 = sphi 0, %s18
    %s21 = sphi 0, %s19
    %s33 = sphi 0, %s35
    %s36 = sphi 0, %s33
    %s37 = sphi 0, %s36
    %s53 = sphi 0, %s37
    %s57 = sphi 0, %s57
    %s59 = sphi 0, %s57
    %s60 = sphi 0, %s59
    %s74 = sphi 0, %s60
    %s78 = sphi 0, %s78
    %s80 = sphi 0, %s78
    %s81 = sphi 0, %s80
    %s95 = sphi 0, %s81
    %s103 = sphi 0, %s105
    %s106 = sphi 0, %s103
    %s107 = sphi 0, %s106
    %s123 = sphi 0, %s107
  $region4: #{simple_block_forward.10} parent=0 // loop_header_branch
    %12 = sbr.rel (%p10) target = $region8
  $region5: #{simple_block_forward.10} parent=0 // loop_body
    %s14 = ssub.s32 %s9, 1
    %s15 = ssub.s32 %s9, 2
    %s22 = sadd.s32 1, %s17
    %p23 = scmp.ge.s32.totalorder %s22, 1
    %s24 = scalar_select %p23, 0, %s22
    %s25 = sadd.s32 1, %s16
    %s26 = scalar_select %p23, %s25, %s16
    %p27 = scmp.ge.s32.totalorder %s26, 2
    %s28 = scalar_select %p27, 0, %s26
    %s29 = ssub.s32 %s16, %s28
    %s30 = ssub.s32 %s17, %s24
    %s31 = sor.u32 %s29, %s30
    %p32 = scmp.eq.s32.totalorder %s31, 0
    %s34 = sadd.s32 %s33, 1
    %s35 = scalar_select %p32, %s33, %s34
    %p38 = pneg %p32
    %p39 = scmp.eq.s32.totalorder %s9, 1
    %p40 = por %p38, %p39
    %p41 = scmp.ne.s32.totalorder %s33, %s36
    %p42 = scmp.eq.s32.totalorder %s9, 0
    %p43 = por %p41, %p42
    %p44 = scmp.ne.s32.totalorder %s33, %s36
    %p45 = scmp.eq.s32.totalorder %s14, 1
    %p46 = por %p44, %p45
    %p47 = scmp.ne.s32.totalorder %s36, %s37
    %p48 = scmp.eq.s32.totalorder %s14, 0
    %p49 = por %p47, %p48
    %p50 = scmp.ne.s32.totalorder %s36, %s37
    %p51 = scmp.eq.s32.totalorder %s15, 1
    %p52 = por %p50, %p51
    %p54 = scmp.ne.s32.totalorder %s37, %s53
    %p55 = scmp.eq.s32.totalorder %s15, 0
    %p56 = por %p54, %p55
    %s58 = sadd.s32 %s57, 1
    %p61 = scmp.eq.s32.totalorder %s9, 1
    %p62 = scmp.ne.s32.totalorder %s57, %s59
    %p63 = scmp.eq.s32.totalorder %s9, 0
    %p64 = por %p62, %p63
    %p65 = scmp.ne.s32.totalorder %s57, %s59
    %p66 = scmp.eq.s32.totalorder %s14, 1
    %p67 = por %p65, %p66
    %p68 = scmp.ne.s32.totalorder %s59, %s60
    %p69 = scmp.eq.s32.totalorder %s14, 0
    %p70 = por %p68, %p69
    %p71 = scmp.ne.s32.totalorder %s59, %s60
    %p72 = scmp.eq.s32.totalorder %s15, 1
    %p73 = por %p71, %p72
    %p75 = scmp.ne.s32.totalorder %s60, %s74
    %p76 = scmp.eq.s32.totalorder %s15, 0
    %p77 = por %p75, %p76
    %s79 = sadd.s32 %s78, 1
    %p82 = scmp.eq.s32.totalorder %s9, 1
    %p83 = scmp.ne.s32.totalorder %s78, %s80
    %p84 = scmp.eq.s32.totalorder %s9, 0
    %p85 = por %p83, %p84
    %p86 = scmp.ne.s32.totalorder %s78, %s80
    %p87 = scmp.eq.s32.totalorder %s14, 1
    %p88 = por %p86, %p87
    %p89 = scmp.ne.s32.totalorder %s80, %s81
    %p90 = scmp.eq.s32.totalorder %s14, 0
    %p91 = por %p89, %p90
    %p92 = scmp.ne.s32.totalorder %s80, %s81
    %p93 = scmp.eq.s32.totalorder %s15, 1
    %p94 = por %p92, %p93
    %p96 = scmp.ne.s32.totalorder %s81, %s95
    %p97 = scmp.eq.s32.totalorder %s15, 0
    %p98 = por %p96, %p97
    %s99 = ssub.s32 %s16, %s28
    %s100 = ssub.s32 %s17, %s24
    %s101 = sor.u32 %s99, %s100
    %p102 = scmp.eq.s32.totalorder %s101, 0
    %s104 = sadd.s32 %s103, 1
    %s105 = scalar_select %p102, %s103, %s104
    %p108 = pneg %p102
    %p109 = scmp.eq.s32.totalorder %s9, 1
    %p110 = por %p108, %p109
    %p111 = scmp.ne.s32.totalorder %s103, %s106
    %p112 = scmp.eq.s32.totalorder %s9, 0
    %p113 = por %p111, %p112
    %p114 = scmp.ne.s32.totalorder %s103, %s106
    %p115 = scmp.eq.s32.totalorder %s14, 1
    %p116 = por %p114, %p115
    %p117 = scmp.ne.s32.totalorder %s106, %s107
    %p118 = scmp.eq.s32.totalorder %s14, 0
    %p119 = por %p117, %p118
    %p120 = scmp.ne.s32.totalorder %s106, %s107
    %p121 = scmp.eq.s32.totalorder %s15, 1
    %p122 = por %p120, %p121
    %p124 = scmp.ne.s32.totalorder %s107, %s123
    %p125 = scmp.eq.s32.totalorder %s15, 0
    %p126 = por %p124, %p125
    %p127 = scmp.le.s32.totalorder 1, %s9
    %p128 = scmp.lt.s32.totalorder %s9, 3
    %p129 = pnand %p127, %p128
    %p130 = pneg %p129
    // Predicated region
    $region9: #{simple_block_forward.10} parent=5 // pred_check
      _
    $region10: #{simple_block_forward.10} parent=5 // pred_check_branch
      %132 = sbr.rel (%p129) target = $region12
    $region11: #{simple_block_forward.10} parent=5 // pred_region
      %s133 = ssub.s32 %s9, 1
      // Predicated region
      $region13: #{simple_block_forward.10} parent=11 // pred_check
        %p134 = pneg %p70
      $region14: #{simple_block_forward.10} parent=11 // pred_check_branch
        %136 = sbr.rel (%p134) target = $region16
      $region15: #{simple_block_forward.10} parent=11 // pred_region
        _
      $region16: #{simple_block_forward.10} parent=11 // pred_fallthru
        _
      // Predicated region
      $region17: #{simple_block_forward.10} parent=11 // pred_check
        %p137 = pneg %p91
      $region18: #{simple_block_forward.10} parent=11 // pred_check_branch
        %139 = sbr.rel (%p137) target = $region20
      $region19: #{simple_block_forward.10} parent=11 // pred_region
        _
      $region20: #{simple_block_forward.10} parent=11 // pred_fallthru
        _
    $region12: #{simple_block_forward.10} parent=5 // pred_fallthru
      _
    %p140 = scmp.lt.s32.totalorder %s9, 2
    // Predicated region
    $region21: #{simple_block_forward.10} parent=5 // pred_check
      %p141 = pneg %p140
    $region22: #{simple_block_forward.10} parent=5 // pred_check_branch
      %143 = sbr.rel (%p141) target = $region24
    $region23: #{simple_block_forward.10} parent=5 // pred_region
      // Predicated region
      $region25: #{simple_block_forward.10} parent=23 // pred_check
        %p144 = pneg %p43
      $region26: #{simple_block_forward.10} parent=23 // pred_check_branch
        %146 = sbr.rel (%p144) target = $region28
      $region27: #{simple_block_forward.10} parent=23 // pred_region
        %s147 = smul.u32 4, %s17
        %p148 = scmp.lt.s32.totalorder %s16, 1
        %s149 = scalar_select %p148, %s16, 1
        %p150 = scmp.lt.s32.totalorder %s147, 3
        %s151 = scalar_select %p150, %s147, 3
        %s152 = smul.addr %s149, 4
        %s153 = sadd.s32 %s151, %s152
        %s154 = smul.addr %s153, 4
        %s155 = scalar_lea.vmem %s0, %s154
        %s156 = smul.u32 4, %s17
      $region28: #{simple_block_forward.10} parent=23 // pred_fallthru
        _
    $region24: #{simple_block_forward.10} parent=5 // pred_fallthru
      _
    %p157 = scmp.le.s32.totalorder 1, %s9
    %p158 = scmp.lt.s32.totalorder %s9, 3
    %p159 = pnand %p157, %p158
    %p160 = pneg %p159
    // Predicated region
    $region29: #{simple_block_forward.10} parent=5 // pred_check
      _
    $region30: #{simple_block_forward.10} parent=5 // pred_check_branch
      %162 = sbr.rel (%p159) target = $region32
    $region31: #{simple_block_forward.10} parent=5 // pred_region
      %s163 = ssub.s32 %s9, 1
      %s164 = smul.u32 4, %s19
      %p165 = scmp.lt.s32.totalorder %s18, 1
      %s166 = scalar_select %p165, %s18, 1
      %p167 = scmp.lt.s32.totalorder %s164, 3
      %s168 = scalar_select %p167, %s164, 3
      %s169 = smul.addr %s166, 4
      %s170 = sadd.s32 %s168, %s169
      %s171 = smul.addr %s170, 4
      %s172 = scalar_lea.vmem %s0, %s171
      %p173 = pneg %p49
      %p174 = pneg %p46
      %p175 = pneg %p70
      %p176 = pneg %p67
      %p177 = pneg %p91
      %p178 = pneg %p88
      %p179 = pneg %p119
      %p180 = pneg %p116
      %s181 = smul.u32 4, %s19
      %p182 = scmp.lt.s32.totalorder %s18, 1
      %s183 = scalar_select %p182, %s18, 1
      %p184 = scmp.lt.s32.totalorder %s181, 3
      %s185 = scalar_select %p184, %s181, 3
      %s186 = smul.addr %s183, 4
      %s187 = sadd.s32 %s185, %s186
      %s188 = smul.addr %s187, 8
      %s189 = scalar_lea.vmem %s3, %s188
      %s190 = smul.u32 4, %s19
      %p191 = scmp.lt.s32.totalorder %s18, 1
      %s192 = scalar_select %p191, %s18, 1
      %p193 = scmp.lt.s32.totalorder %s190, 3
      %s194 = scalar_select %p193, %s190, 3
      %s195 = smul.addr %s192, 4
      %s196 = sadd.s32 %s194, %s195
      %s197 = smul.addr %s196, 4
      %s198 = scalar_lea.vmem %s0, %s197
      %s199 = smul.u32 4, %s19
      %s200 = smul.u32 4, %s19
      %p201 = scmp.lt.s32.totalorder %s18, 1
      %s202 = scalar_select %p201, %s18, 1
      %p203 = scmp.lt.s32.totalorder %s200, 3
      %s204 = scalar_select %p203, %s200, 3
      %s205 = smul.addr %s202, 4
      %s206 = sadd.s32 %s204, %s205
      %s207 = smul.addr %s206, 8
      %s208 = scalar_lea.vmem %s3, %s207
      %s209 = smul.u32 4, %s19
      %v210 = vld [vmem:[%s198] sm:$0xff]
      %v211 = vld [vmem:[%s198 + $0x8] sm:$0xff]
      %v212 = vld [vmem:[%s1] sm:$0xff]
      %214 = vset.pattern.permute.xlu0 0
      %215 = vperm.xlu0 %214, %v212
      %v216 = vpop.permute.xlu0 %215
      %v220 = vlaneseq
      %v221 = vshrl.u32 %v220, 7
      %v222 = vsub.s32 0, %v221
      %v223 = vrot.slane %v210, %v222
      %v224 = vlaneseq
      %v225 = vshrl.u32 %v224, 7
      %v226 = vsub.s32 4, %v225
      %v227 = vrot.slane %v210, %v226
      %v228 = vlaneseq
      %v229 = vshrl.u32 %v228, 7
      %v230 = vsub.s32 0, %v229
      %v231 = vrot.slane %v211, %v230
      %v232 = vlaneseq
      %v233 = vshrl.u32 %v232, 7
      %v234 = vsub.s32 4, %v233
      %v235 = vrot.slane %v211, %v234
      %v240 = vlaneseq
      %v241 = vshrl.u32 %v240, 7
      %v242 = vsub.s32 0, %v241
      %v243 = vrot.slane %v223, %v242
      %v244 = vlaneseq
      %v245 = vshrl.u32 %v244, 7
      %v246 = vsub.s32 0, %v245
      %v247 = vrot.slane %v227, %v246
      %v248 = vlaneseq
      %v249 = vshrl.u32 %v248, 7
      %v250 = vsub.s32 0, %v249
      %v251 = vrot.slane %v231, %v250
      %v252 = vlaneseq
      %v253 = vshrl.u32 %v252, 7
      %v254 = vsub.s32 0, %v253
      %v255 = vrot.slane %v235, %v254
      %v256 = vmul.f32 %v216, %v243
      %v257 = vmul.f32 %v216, %v247
      %v258 = vmul.f32 %v216, %v251
      %v259 = vmul.f32 %v216, %v255
      %260 = vset.pattern.permute.xlu0 1
      %261 = vperm.xlu0 %260, %v212
      %v262 = vpop.permute.xlu0 %261
      %v264 = vlaneseq
      %v265 = vshrl.u32 %v264, 7
      %v266 = vsub.s32 1, %v265
      %v267 = vrot.slane %v210, %v266
      %v268 = vlaneseq
      %v269 = vshrl.u32 %v268, 7
      %v270 = vsub.s32 5, %v269
      %v271 = vrot.slane %v210, %v270
      %v272 = vlaneseq
      %v273 = vshrl.u32 %v272, 7
      %v274 = vsub.s32 1, %v273
      %v275 = vrot.slane %v211, %v274
      %v276 = vlaneseq
      %v277 = vshrl.u32 %v276, 7
      %v278 = vsub.s32 5, %v277
      %v279 = vrot.slane %v211, %v278
      %v284 = vlaneseq
      %v285 = vshrl.u32 %v284, 7
      %v286 = vsub.s32 1, %v285
      %v287 = vrot.slane %v267, %v286
      %v288 = vlaneseq
      %v289 = vshrl.u32 %v288, 7
      %v290 = vsub.s32 1, %v289
      %v291 = vrot.slane %v271, %v290
      %v292 = vlaneseq
      %v293 = vshrl.u32 %v292, 7
      %v294 = vsub.s32 1, %v293
      %v295 = vrot.slane %v275, %v294
      %v296 = vlaneseq
      %v297 = vshrl.u32 %v296, 7
      %v298 = vsub.s32 1, %v297
      %v299 = vrot.slane %v279, %v298
      %v300 = vmul.f32 %v262, %v287
      %v301 = vmul.f32 %v262, %v291
      %v302 = vmul.f32 %v262, %v295
      %v303 = vmul.f32 %v262, %v299
      %v304 = vadd.f32 %v256, %v300
      %v305 = vadd.f32 %v257, %v301
      %v306 = vadd.f32 %v258, %v302
      %v307 = vadd.f32 %v259, %v303
      %308 = vset.pattern.permute.xlu0 2
      %309 = vperm.xlu0 %308, %v212
      %v310 = vpop.permute.xlu0 %309
      %v312 = vlaneseq
      %v313 = vshrl.u32 %v312, 7
      %v314 = vsub.s32 2, %v313
      %v315 = vrot.slane %v210, %v314
      %v316 = vlaneseq
      %v317 = vshrl.u32 %v316, 7
      %v318 = vsub.s32 6, %v317
      %v319 = vrot.slane %v210, %v318
      %v320 = vlaneseq
      %v321 = vshrl.u32 %v320, 7
      %v322 = vsub.s32 2, %v321
      %v323 = vrot.slane %v211, %v322
      %v324 = vlaneseq
      %v325 = vshrl.u32 %v324, 7
      %v326 = vsub.s32 6, %v325
      %v327 = vrot.slane %v211, %v326
      %v332 = vlaneseq
      %v333 = vshrl.u32 %v332, 7
      %v334 = vsub.s32 2, %v333
      %v335 = vrot.slane %v315, %v334
      %v336 = vlaneseq
      %v337 = vshrl.u32 %v336, 7
      %v338 = vsub.s32 2, %v337
      %v339 = vrot.slane %v319, %v338
      %v340 = vlaneseq
      %v341 = vshrl.u32 %v340, 7
      %v342 = vsub.s32 2, %v341
      %v343 = vrot.slane %v323, %v342
      %v344 = vlaneseq
      %v345 = vshrl.u32 %v344, 7
      %v346 = vsub.s32 2, %v345
      %v347 = vrot.slane %v327, %v346
      %v348 = vmul.f32 %v310, %v335
      %v349 = vmul.f32 %v310, %v339
      %v350 = vmul.f32 %v310, %v343
      %v351 = vmul.f32 %v310, %v347
      %v352 = vadd.f32 %v304, %v348
      %v353 = vadd.f32 %v305, %v349
      %v354 = vadd.f32 %v306, %v350
      %v355 = vadd.f32 %v307, %v351
      %356 = vset.pattern.permute.xlu0 3
      %357 = vperm.xlu0 %356, %v212
      %v358 = vpop.permute.xlu0 %357
      %v360 = vlaneseq
      %v361 = vshrl.u32 %v360, 7
      %v362 = vsub.s32 3, %v361
      %v363 = vrot.slane %v210, %v362
      %v364 = vlaneseq
      %v365 = vshrl.u32 %v364, 7
      %v366 = vsub.s32 7, %v365
      %v367 = vrot.slane %v210, %v366
      %v368 = vlaneseq
      %v369 = vshrl.u32 %v368, 7
      %v370 = vsub.s32 3, %v369
      %v371 = vrot.slane %v211, %v370
      %v372 = vlaneseq
      %v373 = vshrl.u32 %v372, 7
      %v374 = vsub.s32 7, %v373
      %v375 = vrot.slane %v211, %v374
      %v380 = vlaneseq
      %v381 = vshrl.u32 %v380, 7
      %v382 = vsub.s32 3, %v381
      %v383 = vrot.slane %v363, %v382
      %v384 = vlaneseq
      %v385 = vshrl.u32 %v384, 7
      %v386 = vsub.s32 3, %v385
      %v387 = vrot.slane %v367, %v386
      %v388 = vlaneseq
      %v389 = vshrl.u32 %v388, 7
      %v390 = vsub.s32 3, %v389
      %v391 = vrot.slane %v371, %v390
      %v392 = vlaneseq
      %v393 = vshrl.u32 %v392, 7
      %v394 = vsub.s32 3, %v393
      %v395 = vrot.slane %v375, %v394
      %v396 = vmul.f32 %v358, %v383
      %v397 = vmul.f32 %v358, %v387
      %v398 = vmul.f32 %v358, %v391
      %v399 = vmul.f32 %v358, %v395
      %v400 = vadd.f32 %v352, %v396
      %v401 = vadd.f32 %v353, %v397
      %v402 = vadd.f32 %v354, %v398
      %v403 = vadd.f32 %v355, %v399
      %v404 = vld [vmem:[%s2] sm:$0xff]
      %406 = vset.pattern.permute.xlu0 0
      %407 = vperm.xlu0 %406, %v404
      %v408 = vpop.permute.xlu0 %407
      %v410 = vadd.f32 %v400, %v408
      %v411 = vadd.f32 %v401, %v408
      %v412 = vadd.f32 %v402, %v408
      %v413 = vadd.f32 %v403, %v408
      %414 = vst [vmem:[%s208] sm:$0xff] %v410
      %415 = vst [vmem:[%s208 + $0x8] sm:$0xff] %v411
      %416 = vst [vmem:[%s208 + $0x10] sm:$0xff] %v412
      %417 = vst [vmem:[%s208 + $0x18] sm:$0xff] %v413
      %s418 = smul.u32 4, %s19
      %p419 = scmp.lt.s32.totalorder %s18, 1
      %s420 = scalar_select %p419, %s18, 1
      %p421 = scmp.lt.s32.totalorder %s418, 3
      %s422 = scalar_select %p421, %s418, 3
      %s423 = smul.addr %s420, 4
      %s424 = sadd.s32 %s422, %s423
      %s425 = smul.addr %s424, 8
      %s426 = scalar_lea.vmem %s3, %s425
      // Predicated region
      $region33: #{simple_block_forward.10} parent=31 // pred_check
        %p427 = pneg %p116
      $region34: #{simple_block_forward.10} parent=31 // pred_check_branch
        %429 = sbr.rel (%p427) target = $region36
      $region35: #{simple_block_forward.10} parent=31 // pred_region
        %s430 = smul.u32 4, %s19
      $region36: #{simple_block_forward.10} parent=31 // pred_fallthru
        _
    $region32: #{simple_block_forward.10} parent=5 // pred_fallthru
      _
    %p431 = scmp.le.s32.totalorder 2, %s9
    // Predicated region
    $region37: #{simple_block_forward.10} parent=5 // pred_check
      %p432 = pneg %p431
    $region38: #{simple_block_forward.10} parent=5 // pred_check_branch
      %434 = sbr.rel (%p432) target = $region40
    $region39: #{simple_block_forward.10} parent=5 // pred_region
      %s435 = ssub.s32 %s9, 2
      // Predicated region
      $region41: #{simple_block_forward.10} parent=39 // pred_check
        %p436 = pneg %p122
      $region42: #{simple_block_forward.10} parent=39 // pred_check_branch
        %438 = sbr.rel (%p436) target = $region44
      $region43: #{simple_block_forward.10} parent=39 // pred_region
        %s439 = smul.u32 4, %s21
        %p440 = scmp.lt.s32.totalorder %s20, 1
        %s441 = scalar_select %p440, %s20, 1
        %p442 = scmp.lt.s32.totalorder %s439, 3
        %s443 = scalar_select %p442, %s439, 3
        %s444 = smul.addr %s441, 4
        %s445 = sadd.s32 %s443, %s444
        %s446 = smul.addr %s445, 8
        %s447 = scalar_lea.vmem %s3, %s446
      $region44: #{simple_block_forward.10} parent=39 // pred_fallthru
        _
    $region40: #{simple_block_forward.10} parent=5 // pred_fallthru
      _
  $region6: #{simple_block_forward.10} parent=0 // loop_footer
    %s13 = sadd.s32 1, %s9
  $region7: #{simple_block_forward.10} parent=0 // loop_footer_branch
    %8 = sbr.rel target = $region3
  $region8: #{simple_block_forward.10} parent=0 // loop_exit
    _

// kernel: simple_block_forward.11
$region0: #{simple_block_forward.11}
  #allocation0 [shape = 'u32[]', space=smem, size = 0x4, offset = 0x4, fixed_abs, tag = 'smem constant byte address 0x4 - core index']
  #allocation1 [shape = 'u32[144,128]{1,0:T(1,128)}', space=vmem, size = 0x12000, scoped, tag = 'internal scratch']
  %s0 = inlined_call_operand.vmem [shape: f32[2,8,256], index: 0, kind: input, shape index: {}]
  %s1 = inlined_call_operand.vmem [shape: f32[2,8,256], index: 1, kind: input, shape index: {}]
  %s2 = inlined_call_operand.vmem [shape: f32[8,8,256], index: 2, kind: input, shape index: {}]
  %s3 = inlined_call_operand.vmem [shape: f32[8,8,256], index: 3, kind: input, shape index: {}]
  %s4 = inlined_call_operand.vmem [shape: f32[2,8,256], index: 4, kind: output, shape index: {0}]
  %s5 = inlined_call_operand.vmem [shape: f32[2,8,256], index: 5, kind: output, shape index: {1}]
  %6 = xla_tuple %s4, %s5
  %s7 = sld [smem:[#allocation0]]
  $region34: #{simple_block_forward.11} parent=0
    _
  %s9 = ssub.s32 1, %s7
  %s10 = scalar_select 0, %s9, %s7
  // Predicated region
  $region2: #{simple_block_forward.11} parent=0 // pred_check
    _
  $region3: #{simple_block_forward.11} parent=0 // pred_check_branch
    %12 = sbr.rel (0) target = $region5
  $region4: #{simple_block_forward.11} parent=0 // pred_region
    _
  $region5: #{simple_block_forward.11} parent=0 // pred_fallthru
    _
  // Predicated region
  $region6: #{simple_block_forward.11} parent=0 // pred_check
    _
  $region7: #{simple_block_forward.11} parent=0 // pred_check_branch
    %14 = sbr.rel (0) target = $region9
  $region8: #{simple_block_forward.11} parent=0 // pred_region
    _
  $region9: #{simple_block_forward.11} parent=0 // pred_fallthru
    _
  // Predicated region
  $region10: #{simple_block_forward.11} parent=0 // pred_check
    _
  $region11: #{simple_block_forward.11} parent=0 // pred_check_branch
    %16 = sbr.rel (0) target = $region13
  $region12: #{simple_block_forward.11} parent=0 // pred_region
    _
  $region13: #{simple_block_forward.11} parent=0 // pred_fallthru
    _
  // Predicated region
  $region14: #{simple_block_forward.11} parent=0 // pred_check
    _
  $region15: #{simple_block_forward.11} parent=0 // pred_check_branch
    %18 = sbr.rel (0) target = $region17
  $region16: #{simple_block_forward.11} parent=0 // pred_region
    _
  $region17: #{simple_block_forward.11} parent=0 // pred_fallthru
    _
  %v19 = vld [vmem:[%s0] sm:$0xff]
  %v20 = vld [vmem:[%s0 + $0x8] sm:$0xff]
  %v21 = vld [vmem:[%s0 + $0x10] sm:$0xff]
  %v22 = vld [vmem:[%s0 + $0x18] sm:$0xff]
  %v23 = vld [vmem:[%s1] sm:$0xff]
  %v24 = vld [vmem:[%s1 + $0x8] sm:$0xff]
  %v25 = vld [vmem:[%s1 + $0x10] sm:$0xff]
  %v26 = vld [vmem:[%s1 + $0x18] sm:$0xff]
  %v27 = vld [vmem:[%s2] sm:$0xff]
  %v28 = vld [vmem:[%s2 + $0x8] sm:$0xff]
  %v29 = vld [vmem:[%s3] sm:$0xff]
  %v30 = vld [vmem:[%s3 + $0x8] sm:$0xff]
  %v31 = vlaneseq
  %v32 = vshrl.u32 %v31, 7
  %v33 = vsub.s32 0, %v32
  %v34 = vrot.slane %v19, %v33
  %v35 = vlaneseq
  %v36 = vshrl.u32 %v35, 7
  %v37 = vsub.s32 0, %v36
  %v38 = vrot.slane %v20, %v37
  %v39 = vlaneseq
  %v40 = vshrl.u32 %v39, 7
  %v41 = vsub.s32 0, %v40
  %v42 = vrot.slane %v21, %v41
  %v43 = vlaneseq
  %v44 = vshrl.u32 %v43, 7
  %v45 = vsub.s32 0, %v44
  %v46 = vrot.slane %v22, %v45
  %v47 = vmul.f32 %v34, %v27
  %v48 = vmul.f32 %v38, %v28
  %v49 = vmul.f32 %v42, %v27
  %v50 = vmul.f32 %v46, %v28
  %v51 = vlaneseq
  %v52 = vshrl.u32 %v51, 7
  %v53 = vsub.s32 0, %v52
  %v54 = vrot.slane %v23, %v53
  %v55 = vlaneseq
  %v56 = vshrl.u32 %v55, 7
  %v57 = vsub.s32 0, %v56
  %v58 = vrot.slane %v24, %v57
  %v59 = vlaneseq
  %v60 = vshrl.u32 %v59, 7
  %v61 = vsub.s32 0, %v60
  %v62 = vrot.slane %v25, %v61
  %v63 = vlaneseq
  %v64 = vshrl.u32 %v63, 7
  %v65 = vsub.s32 0, %v64
  %v66 = vrot.slane %v26, %v65
  %v67 = vmul.f32 %v54, %v29
  %v68 = vmul.f32 %v58, %v30
  %v69 = vmul.f32 %v62, %v29
  %v70 = vmul.f32 %v66, %v30
  %v71 = vsub.f32 %v47, %v67
  %v72 = vsub.f32 %v48, %v68
  %v73 = vsub.f32 %v49, %v69
  %v74 = vsub.f32 %v50, %v70
  %v75 = vmul.f32 %v34, %v29
  %v76 = vmul.f32 %v38, %v30
  %v77 = vmul.f32 %v42, %v29
  %v78 = vmul.f32 %v46, %v30
  %v79 = vmul.f32 %v54, %v27
  %v80 = vmul.f32 %v58, %v28
  %v81 = vmul.f32 %v62, %v27
  %v82 = vmul.f32 %v66, %v28
  %v83 = vadd.f32 %v75, %v79
  %v84 = vadd.f32 %v76, %v80
  %v85 = vadd.f32 %v77, %v81
  %v86 = vadd.f32 %v78, %v82
  %s87 = scalar_lea.vmem %s2, 16
  %v88 = vld [vmem:[%s87] sm:$0xff]
  %v89 = vld [vmem:[%s87 + $0x8] sm:$0xff]
  %s90 = scalar_lea.vmem %s3, 16
  %v91 = vld [vmem:[%s90] sm:$0xff]
  %v92 = vld [vmem:[%s90 + $0x8] sm:$0xff]
  %v93 = vlaneseq
  %v94 = vshrl.u32 %v93, 7
  %v95 = vsub.s32 1, %v94
  %v96 = vrot.slane %v19, %v95
  %v97 = vlaneseq
  %v98 = vshrl.u32 %v97, 7
  %v99 = vsub.s32 1, %v98
  %v100 = vrot.slane %v20, %v99
  %v101 = vlaneseq
  %v102 = vshrl.u32 %v101, 7
  %v103 = vsub.s32 1, %v102
  %v104 = vrot.slane %v21, %v103
  %v105 = vlaneseq
  %v106 = vshrl.u32 %v105, 7
  %v107 = vsub.s32 1, %v106
  %v108 = vrot.slane %v22, %v107
  %v109 = vmul.f32 %v96, %v88
  %v110 = vmul.f32 %v100, %v89
  %v111 = vmul.f32 %v104, %v88
  %v112 = vmul.f32 %v108, %v89
  %v113 = vlaneseq
  %v114 = vshrl.u32 %v113, 7
  %v115 = vsub.s32 1, %v114
  %v116 = vrot.slane %v23, %v115
  %v117 = vlaneseq
  %v118 = vshrl.u32 %v117, 7
  %v119 = vsub.s32 1, %v118
  %v120 = vrot.slane %v24, %v119
  %v121 = vlaneseq
  %v122 = vshrl.u32 %v121, 7
  %v123 = vsub.s32 1, %v122
  %v124 = vrot.slane %v25, %v123
  %v125 = vlaneseq
  %v126 = vshrl.u32 %v125, 7
  %v127 = vsub.s32 1, %v126
  %v128 = vrot.slane %v26, %v127
  %v129 = vmul.f32 %v116, %v91
  %v130 = vmul.f32 %v120, %v92
  %v131 = vmul.f32 %v124, %v91
  %v132 = vmul.f32 %v128, %v92
  %v133 = vsub.f32 %v109, %v129
  %v134 = vsub.f32 %v110, %v130
  %v135 = vsub.f32 %v111, %v131
  %v136 = vsub.f32 %v112, %v132
  %v137 = vmul.f32 %v96, %v91
  %v138 = vmul.f32 %v100, %v92
  %v139 = vmul.f32 %v104, %v91
  %v140 = vmul.f32 %v108, %v92
  %v141 = vmul.f32 %v116, %v88
  %v142 = vmul.f32 %v120, %v89
  %v143 = vmul.f32 %v124, %v88
  %v144 = vmul.f32 %v128, %v89
  %v145 = vadd.f32 %v137, %v141
  %v146 = vadd.f32 %v138, %v142
  %v147 = vadd.f32 %v139, %v143
  %v148 = vadd.f32 %v140, %v144
  %v149 = vadd.f32 %v71, %v133
  %v150 = vadd.f32 %v72, %v134
  %v151 = vadd.f32 %v73, %v135
  %v152 = vadd.f32 %v74, %v136
  %v153 = vadd.f32 %v83, %v145
  %v154 = vadd.f32 %v84, %v146
  %v155 = vadd.f32 %v85, %v147
  %v156 = vadd.f32 %v86, %v148
  %s157 = scalar_lea.vmem %s2, 32
  %v158 = vld [vmem:[%s157] sm:$0xff]
  %v159 = vld [vmem:[%s157 + $0x8] sm:$0xff]
  %s160 = scalar_lea.vmem %s3, 32
  %v161 = vld [vmem:[%s160] sm:$0xff]
  %v162 = vld [vmem:[%s160 + $0x8] sm:$0xff]
  %v163 = vlaneseq
  %v164 = vshrl.u32 %v163, 7
  %v165 = vsub.s32 2, %v164
  %v166 = vrot.slane %v19, %v165
  %v167 = vlaneseq
  %v168 = vshrl.u32 %v167, 7
  %v169 = vsub.s32 2, %v168
  %v170 = vrot.slane %v20, %v169
  %v171 = vlaneseq
  %v172 = vshrl.u32 %v171, 7
  %v173 = vsub.s32 2, %v172
  %v174 = vrot.slane %v21, %v173
  %v175 = vlaneseq
  %v176 = vshrl.u32 %v175, 7
  %v177 = vsub.s32 2, %v176
  %v178 = vrot.slane %v22, %v177
  %v179 = vmul.f32 %v166, %v158
  %v180 = vmul.f32 %v170, %v159
  %v181 = vmul.f32 %v174, %v158
  %v182 = vmul.f32 %v178, %v159
  %v183 = vlaneseq
  %v184 = vshrl.u32 %v183, 7
  %v185 = vsub.s32 2, %v184
  %v186 = vrot.slane %v23, %v185
  %v187 = vlaneseq
  %v188 = vshrl.u32 %v187, 7
  %v189 = vsub.s32 2, %v188
  %v190 = vrot.slane %v24, %v189
  %v191 = vlaneseq
  %v192 = vshrl.u32 %v191, 7
  %v193 = vsub.s32 2, %v192
  %v194 = vrot.slane %v25, %v193
  %v195 = vlaneseq
  %v196 = vshrl.u32 %v195, 7
  %v197 = vsub.s32 2, %v196
  %v198 = vrot.slane %v26, %v197
  %v199 = vmul.f32 %v186, %v161
  %v200 = vmul.f32 %v190, %v162
  %v201 = vmul.f32 %v194, %v161
  %v202 = vmul.f32 %v198, %v162
  %v203 = vsub.f32 %v179, %v199
  %v204 = vsub.f32 %v180, %v200
  %v205 = vsub.f32 %v181, %v201
  %v206 = vsub.f32 %v182, %v202
  %v207 = vmul.f32 %v166, %v161
  %v208 = vmul.f32 %v170, %v162
  %v209 = vmul.f32 %v174, %v161
  %v210 = vmul.f32 %v178, %v162
  %v211 = vmul.f32 %v186, %v158
  %v212 = vmul.f32 %v190, %v159
  %v213 = vmul.f32 %v194, %v158
  %v214 = vmul.f32 %v198, %v159
  %v215 = vadd.f32 %v207, %v211
  %v216 = vadd.f32 %v208, %v212
  %v217 = vadd.f32 %v209, %v213
  %v218 = vadd.f32 %v210, %v214
  %v219 = vadd.f32 %v149, %v203
  %v220 = vadd.f32 %v150, %v204
  %v221 = vadd.f32 %v151, %v205
  %v222 = vadd.f32 %v152, %v206
  %v223 = vadd.f32 %v153, %v215
  %v224 = vadd.f32 %v154, %v216
  %v225 = vadd.f32 %v155, %v217
  %v226 = vadd.f32 %v156, %v218
  %s227 = scalar_lea.vmem %s2, 48
  %v228 = vld [vmem:[%s227] sm:$0xff]
  %v229 = vld [vmem:[%s227 + $0x8] sm:$0xff]
  %s230 = scalar_lea.vmem %s3, 48
  %v231 = vld [vmem:[%s230] sm:$0xff]
  %v232 = vld [vmem:[%s230 + $0x8] sm:$0xff]
  %v233 = vlaneseq
  %v234 = vshrl.u32 %v233, 7
  %v235 = vsub.s32 3, %v234
  %v236 = vrot.slane %v19, %v235
  %v237 = vlaneseq
  %v238 = vshrl.u32 %v237, 7
  %v239 = vsub.s32 3, %v238
  %v240 = vrot.slane %v20, %v239
  %v241 = vlaneseq
  %v242 = vshrl.u32 %v241, 7
  %v243 = vsub.s32 3, %v242
  %v244 = vrot.slane %v21, %v243
  %v245 = vlaneseq
  %v246 = vshrl.u32 %v245, 7
  %v247 = vsub.s32 3, %v246
  %v248 = vrot.slane %v22, %v247
  %v249 = vmul.f32 %v236, %v228
  %v250 = vmul.f32 %v240, %v229
  %v251 = vmul.f32 %v244, %v228
  %v252 = vmul.f32 %v248, %v229
  %v253 = vlaneseq
  %v254 = vshrl.u32 %v253, 7
  %v255 = vsub.s32 3, %v254
  %v256 = vrot.slane %v23, %v255
  %v257 = vlaneseq
  %v258 = vshrl.u32 %v257, 7
  %v259 = vsub.s32 3, %v258
  %v260 = vrot.slane %v24, %v259
  %v261 = vlaneseq
  %v262 = vshrl.u32 %v261, 7
  %v263 = vsub.s32 3, %v262
  %v264 = vrot.slane %v25, %v263
  %v265 = vlaneseq
  %v266 = vshrl.u32 %v265, 7
  %v267 = vsub.s32 3, %v266
  %v268 = vrot.slane %v26, %v267
  %v269 = vmul.f32 %v256, %v231
  %v270 = vmul.f32 %v260, %v232
  %v271 = vmul.f32 %v264, %v231
  %v272 = vmul.f32 %v268, %v232
  %v273 = vsub.f32 %v249, %v269
  %v274 = vsub.f32 %v250, %v270
  %v275 = vsub.f32 %v251, %v271
  %v276 = vsub.f32 %v252, %v272
  %v277 = vmul.f32 %v236, %v231
  %v278 = vmul.f32 %v240, %v232
  %v279 = vmul.f32 %v244, %v231
  %v280 = vmul.f32 %v248, %v232
  %v281 = vmul.f32 %v256, %v228
  %v282 = vmul.f32 %v260, %v229
  %v283 = vmul.f32 %v264, %v228
  %v284 = vmul.f32 %v268, %v229
  %v285 = vadd.f32 %v277, %v281
  %v286 = vadd.f32 %v278, %v282
  %v287 = vadd.f32 %v279, %v283
  %v288 = vadd.f32 %v280, %v284
  %v289 = vadd.f32 %v219, %v273
  %v290 = vadd.f32 %v220, %v274
  %v291 = vadd.f32 %v221, %v275
  %v292 = vadd.f32 %v222, %v276
  %v293 = vadd.f32 %v223, %v285
  %v294 = vadd.f32 %v224, %v286
  %v295 = vadd.f32 %v225, %v287
  %v296 = vadd.f32 %v226, %v288
  %s297 = scalar_lea.vmem %s2, 64
  %v298 = vld [vmem:[%s297] sm:$0xff]
  %v299 = vld [vmem:[%s297 + $0x8] sm:$0xff]
  %s300 = scalar_lea.vmem %s3, 64
  %v301 = vld [vmem:[%s300] sm:$0xff]
  %v302 = vld [vmem:[%s300 + $0x8] sm:$0xff]
  %v303 = vlaneseq
  %v304 = vshrl.u32 %v303, 7
  %v305 = vsub.s32 4, %v304
  %v306 = vrot.slane %v19, %v305
  %v307 = vlaneseq
  %v308 = vshrl.u32 %v307, 7
  %v309 = vsub.s32 4, %v308
  %v310 = vrot.slane %v20, %v309
  %v311 = vlaneseq
  %v312 = vshrl.u32 %v311, 7
  %v313 = vsub.s32 4, %v312
  %v314 = vrot.slane %v21, %v313
  %v315 = vlaneseq
  %v316 = vshrl.u32 %v315, 7
  %v317 = vsub.s32 4, %v316
  %v318 = vrot.slane %v22, %v317
  %v319 = vmul.f32 %v306, %v298
  %v320 = vmul.f32 %v310, %v299
  %v321 = vmul.f32 %v314, %v298
  %v322 = vmul.f32 %v318, %v299
  %v323 = vlaneseq
  %v324 = vshrl.u32 %v323, 7
  %v325 = vsub.s32 4, %v324
  %v326 = vrot.slane %v23, %v325
  %v327 = vlaneseq
  %v328 = vshrl.u32 %v327, 7
  %v329 = vsub.s32 4, %v328
  %v330 = vrot.slane %v24, %v329
  %v331 = vlaneseq
  %v332 = vshrl.u32 %v331, 7
  %v333 = vsub.s32 4, %v332
  %v334 = vrot.slane %v25, %v333
  %v335 = vlaneseq
  %v336 = vshrl.u32 %v335, 7
  %v337 = vsub.s32 4, %v336
  %v338 = vrot.slane %v26, %v337
  %v339 = vmul.f32 %v326, %v301
  %v340 = vmul.f32 %v330, %v302
  %v341 = vmul.f32 %v334, %v301
  %v342 = vmul.f32 %v338, %v302
  %v343 = vsub.f32 %v319, %v339
  %v344 = vsub.f32 %v320, %v340
  %v345 = vsub.f32 %v321, %v341
  %v346 = vsub.f32 %v322, %v342
  %v347 = vmul.f32 %v306, %v301
  %v348 = vmul.f32 %v310, %v302
  %v349 = vmul.f32 %v314, %v301
  %v350 = vmul.f32 %v318, %v302
  %v351 = vmul.f32 %v326, %v298
  %v352 = vmul.f32 %v330, %v299
  %v353 = vmul.f32 %v334, %v298
  %v354 = vmul.f32 %v338, %v299
  %v355 = vadd.f32 %v347, %v351
  %v356 = vadd.f32 %v348, %v352
  %v357 = vadd.f32 %v349, %v353
  %v358 = vadd.f32 %v350, %v354
  %v359 = vadd.f32 %v289, %v343
  %v360 = vadd.f32 %v290, %v344
  %v361 = vadd.f32 %v291, %v345
  %v362 = vadd.f32 %v292, %v346
  %v363 = vadd.f32 %v293, %v355
  %v364 = vadd.f32 %v294, %v356
  %v365 = vadd.f32 %v295, %v357
  %v366 = vadd.f32 %v296, %v358
  %s367 = scalar_lea.vmem %s2, 80
  %v368 = vld [vmem:[%s367] sm:$0xff]
  %v369 = vld [vmem:[%s367 + $0x8] sm:$0xff]
  %s370 = scalar_lea.vmem %s3, 80
  %v371 = vld [vmem:[%s370] sm:$0xff]
  %v372 = vld [vmem:[%s370 + $0x8] sm:$0xff]
  %v373 = vlaneseq
  %v374 = vshrl.u32 %v373, 7
  %v375 = vsub.s32 5, %v374
  %v376 = vrot.slane %v19, %v375
  %v377 = vlaneseq
  %v378 = vshrl.u32 %v377, 7
  %v379 = vsub.s32 5, %v378
  %v380 = vrot.slane %v20, %v379
  %v381 = vlaneseq
  %v382 = vshrl.u32 %v381, 7
  %v383 = vsub.s32 5, %v382
  %v384 = vrot.slane %v21, %v383
  %v385 = vlaneseq
  %v386 = vshrl.u32 %v385, 7
  %v387 = vsub.s32 5, %v386
  %v388 = vrot.slane %v22, %v387
  %v389 = vmul.f32 %v376, %v368
  %v390 = vmul.f32 %v380, %v369
  %v391 = vmul.f32 %v384, %v368
  %v392 = vmul.f32 %v388, %v369
  %v393 = vlaneseq
  %v394 = vshrl.u32 %v393, 7
  %v395 = vsub.s32 5, %v394
  %v396 = vrot.slane %v23, %v395
  %v397 = vlaneseq
  %v398 = vshrl.u32 %v397, 7
  %v399 = vsub.s32 5, %v398
  %v400 = vrot.slane %v24, %v399
  %v401 = vlaneseq
  %v402 = vshrl.u32 %v401, 7
  %v403 = vsub.s32 5, %v402
  %v404 = vrot.slane %v25, %v403
  %v405 = vlaneseq
  %v406 = vshrl.u32 %v405, 7
  %v407 = vsub.s32 5, %v406
  %v408 = vrot.slane %v26, %v407
  %v409 = vmul.f32 %v396, %v371
  %v410 = vmul.f32 %v400, %v372
  %v411 = vmul.f32 %v404, %v371
  %v412 = vmul.f32 %v408, %v372
  %v413 = vsub.f32 %v389, %v409
  %v414 = vsub.f32 %v390, %v410
  %v415 = vsub.f32 %v391, %v411
  %v416 = vsub.f32 %v392, %v412
  %v417 = vmul.f32 %v376, %v371
  %v418 = vmul.f32 %v380, %v372
  %v419 = vmul.f32 %v384, %v371
  %v420 = vmul.f32 %v388, %v372
  %v421 = vmul.f32 %v396, %v368
  %v422 = vmul.f32 %v400, %v369
  %v423 = vmul.f32 %v404, %v368
  %v424 = vmul.f32 %v408, %v369
  %v425 = vadd.f32 %v417, %v421
  %v426 = vadd.f32 %v418, %v422
  %v427 = vadd.f32 %v419, %v423
  %v428 = vadd.f32 %v420, %v424
  %v429 = vadd.f32 %v359, %v413
  %v430 = vadd.f32 %v360, %v414
  %v431 = vadd.f32 %v361, %v415
  %v432 = vadd.f32 %v362, %v416
  %v433 = vadd.f32 %v363, %v425
  %v434 = vadd.f32 %v364, %v426
  %v435 = vadd.f32 %v365, %v427
  %v436 = vadd.f32 %v366, %v428
  %s437 = scalar_lea.vmem %s2, 96
  %v438 = vld [vmem:[%s437] sm:$0xff]
  %v439 = vld [vmem:[%s437 + $0x8] sm:$0xff]
  %s440 = scalar_lea.vmem %s3, 96
  %v441 = vld [vmem:[%s440] sm:$0xff]
  %v442 = vld [vmem:[%s440 + $0x8] sm:$0xff]
  %v443 = vlaneseq
  %v444 = vshrl.u32 %v443, 7
  %v445 = vsub.s32 6, %v444
  %v446 = vrot.slane %v19, %v445
  %v447 = vlaneseq
  %v448 = vshrl.u32 %v447, 7
  %v449 = vsub.s32 6, %v448
  %v450 = vrot.slane %v20, %v449
  %v451 = vlaneseq
  %v452 = vshrl.u32 %v451, 7
  %v453 = vsub.s32 6, %v452
  %v454 = vrot.slane %v21, %v453
  %v455 = vlaneseq
  %v456 = vshrl.u32 %v455, 7
  %v457 = vsub.s32 6, %v456
  %v458 = vrot.slane %v22, %v457
  %v459 = vmul.f32 %v446, %v438
  %v460 = vmul.f32 %v450, %v439
  %v461 = vmul.f32 %v454, %v438
  %v462 = vmul.f32 %v458, %v439
  %v463 = vlaneseq
  %v464 = vshrl.u32 %v463, 7
  %v465 = vsub.s32 6, %v464
  %v466 = vrot.slane %v23, %v465
  %v467 = vlaneseq
  %v468 = vshrl.u32 %v467, 7
  %v469 = vsub.s32 6, %v468
  %v470 = vrot.slane %v24, %v469
  %v471 = vlaneseq
  %v472 = vshrl.u32 %v471, 7
  %v473 = vsub.s32 6, %v472
  %v474 = vrot.slane %v25, %v473
  %v475 = vlaneseq
  %v476 = vshrl.u32 %v475, 7
  %v477 = vsub.s32 6, %v476
  %v478 = vrot.slane %v26, %v477
  %v479 = vmul.f32 %v466, %v441
  %v480 = vmul.f32 %v470, %v442
  %v481 = vmul.f32 %v474, %v441
  %v482 = vmul.f32 %v478, %v442
  %v483 = vsub.f32 %v459, %v479
  %v484 = vsub.f32 %v460, %v480
  %v485 = vsub.f32 %v461, %v481
  %v486 = vsub.f32 %v462, %v482
  %v487 = vmul.f32 %v446, %v441
  %v488 = vmul.f32 %v450, %v442
  %v489 = vmul.f32 %v454, %v441
  %v490 = vmul.f32 %v458, %v442
  %v491 = vmul.f32 %v466, %v438
  %v492 = vmul.f32 %v470, %v439
  %v493 = vmul.f32 %v474, %v438
  %v494 = vmul.f32 %v478, %v439
  %v495 = vadd.f32 %v487, %v491
  %v496 = vadd.f32 %v488, %v492
  %v497 = vadd.f32 %v489, %v493
  %v498 = vadd.f32 %v490, %v494
  %v499 = vadd.f32 %v429, %v483
  %v500 = vadd.f32 %v430, %v484
  %v501 = vadd.f32 %v431, %v485
  %v502 = vadd.f32 %v432, %v486
  %v503 = vadd.f32 %v433, %v495
  %v504 = vadd.f32 %v434, %v496
  %v505 = vadd.f32 %v435, %v497
  %v506 = vadd.f32 %v436, %v498
  %s507 = scalar_lea.vmem %s2, 112
  %v508 = vld [vmem:[%s507] sm:$0xff]
  %v509 = vld [vmem:[%s507 + $0x8] sm:$0xff]
  %s510 = scalar_lea.vmem %s3, 112
  %v511 = vld [vmem:[%s510] sm:$0xff]
  %v512 = vld [vmem:[%s510 + $0x8] sm:$0xff]
  %v513 = vlaneseq
  %v514 = vshrl.u32 %v513, 7
  %v515 = vsub.s32 7, %v514
  %v516 = vrot.slane %v19, %v515
  %v517 = vlaneseq
  %v518 = vshrl.u32 %v517, 7
  %v519 = vsub.s32 7, %v518
  %v520 = vrot.slane %v20, %v519
  %v521 = vlaneseq
  %v522 = vshrl.u32 %v521, 7
  %v523 = vsub.s32 7, %v522
  %v524 = vrot.slane %v21, %v523
  %v525 = vlaneseq
  %v526 = vshrl.u32 %v525, 7
  %v527 = vsub.s32 7, %v526
  %v528 = vrot.slane %v22, %v527
  %v529 = vmul.f32 %v516, %v508
  %v530 = vmul.f32 %v520, %v509
  %v531 = vmul.f32 %v524, %v508
  %v532 = vmul.f32 %v528, %v509
  %v533 = vlaneseq
  %v534 = vshrl.u32 %v533, 7
  %v535 = vsub.s32 7, %v534
  %v536 = vrot.slane %v23, %v535
  %v537 = vlaneseq
  %v538 = vshrl.u32 %v537, 7
  %v539 = vsub.s32 7, %v538
  %v540 = vrot.slane %v24, %v539
  %v541 = vlaneseq
  %v542 = vshrl.u32 %v541, 7
  %v543 = vsub.s32 7, %v542
  %v544 = vrot.slane %v25, %v543
  %v545 = vlaneseq
  %v546 = vshrl.u32 %v545, 7
  %v547 = vsub.s32 7, %v546
  %v548 = vrot.slane %v26, %v547
  %v549 = vmul.f32 %v536, %v511
  %v550 = vmul.f32 %v540, %v512
  %v551 = vmul.f32 %v544, %v511
  %v552 = vmul.f32 %v548, %v512
  %v553 = vsub.f32 %v529, %v549
  %v554 = vsub.f32 %v530, %v550
  %v555 = vsub.f32 %v531, %v551
  %v556 = vsub.f32 %v532, %v552
  %v557 = vmul.f32 %v516, %v511
  %v558 = vmul.f32 %v520, %v512
  %v559 = vmul.f32 %v524, %v511
  %v560 = vmul.f32 %v528, %v512
  %v561 = vmul.f32 %v536, %v508
  %v562 = vmul.f32 %v540, %v509
  %v563 = vmul.f32 %v544, %v508
  %v564 = vmul.f32 %v548, %v509
  %v565 = vadd.f32 %v557, %v561
  %v566 = vadd.f32 %v558, %v562
  %v567 = vadd.f32 %v559, %v563
  %v568 = vadd.f32 %v560, %v564
  %v569 = vadd.f32 %v499, %v553
  %v570 = vadd.f32 %v500, %v554
  %v571 = vadd.f32 %v501, %v555
  %v572 = vadd.f32 %v502, %v556
  %v573 = vadd.f32 %v503, %v565
  %v574 = vadd.f32 %v504, %v566
  %v575 = vadd.f32 %v505, %v567
  %v576 = vadd.f32 %v506, %v568
  %577 = vst [vmem:[%s4] sm:$0xff] %v569
  %578 = vst [vmem:[%s4 + $0x8] sm:$0xff] %v570
  %579 = vst [vmem:[%s4 + $0x10] sm:$0xff] %v571
  %580 = vst [vmem:[%s4 + $0x18] sm:$0xff] %v572
  %581 = vst [vmem:[%s5] sm:$0xff] %v573
  %582 = vst [vmem:[%s5 + $0x8] sm:$0xff] %v574
  %583 = vst [vmem:[%s5 + $0x10] sm:$0xff] %v575
  %584 = vst [vmem:[%s5 + $0x18] sm:$0xff] %v576
  // Predicated region
  $region18: #{simple_block_forward.11} parent=0 // pred_check
    _
  $region19: #{simple_block_forward.11} parent=0 // pred_check_branch
    %586 = sbr.rel (0) target = $region21
  $region20: #{simple_block_forward.11} parent=0 // pred_region
    _
  $region21: #{simple_block_forward.11} parent=0 // pred_fallthru
    _
  // Predicated region
  $region22: #{simple_block_forward.11} parent=0 // pred_check
    _
  $region23: #{simple_block_forward.11} parent=0 // pred_check_branch
    %588 = sbr.rel (0) target = $region25
  $region24: #{simple_block_forward.11} parent=0 // pred_region
    _
  $region25: #{simple_block_forward.11} parent=0 // pred_fallthru
    _
  // Predicated region
  $region26: #{simple_block_forward.11} parent=0 // pred_check
    _
  $region27: #{simple_block_forward.11} parent=0 // pred_check_branch
    %590 = sbr.rel (0) target = $region29
  $region28: #{simple_block_forward.11} parent=0 // pred_region
    _
  $region29: #{simple_block_forward.11} parent=0 // pred_fallthru
    _
  // Predicated region
  $region30: #{simple_block_forward.11} parent=0 // pred_check
    _
  $region31: #{simple_block_forward.11} parent=0 // pred_check_branch
    %592 = sbr.rel (0) target = $region33
  $region32: #{simple_block_forward.11} parent=0 // pred_region
    _
  $region33: #{simple_block_forward.11} parent=0 // pred_fallthru
    _

// kernel: reverse.8
$region0: #{reverse.8}
  #allocation0 [shape = 's32[1]{0}', space=sflag, size = 0x4, scoped, tag = 'scoped memory for reverse.8']
  %s0 = inlined_call_operand.vmem [shape: f32[2,8,8,8,3], index: 0, kind: input, shape index: {}]
  %s1 = inlined_call_operand.vmem [shape: f32[2,8,8,8,3], index: 1, kind: output, shape index: {}]
  %s2 = scalar_lea.vmem %s0, 16
  %v3 = vld [vmem:[%s2] sm:$0xff]
  %4 = vst [vmem:[%s1] sm:$0xff] %v3
  %s5 = scalar_lea.vmem %s0, 208
  %v6 = vld [vmem:[%s5] sm:$0xff]
  %s7 = scalar_lea.vmem %s1, 192
  %8 = vst [vmem:[%s7] sm:$0xff] %v6
  %s9 = scalar_lea.vmem %s0, 40
  %v10 = vld [vmem:[%s9] sm:$0xff]
  %s11 = scalar_lea.vmem %s1, 24
  %12 = vst [vmem:[%s11] sm:$0xff] %v10
  %s13 = scalar_lea.vmem %s0, 232
  %v14 = vld [vmem:[%s13] sm:$0xff]
  %s15 = scalar_lea.vmem %s1, 216
  %16 = vst [vmem:[%s15] sm:$0xff] %v14
  %s17 = scalar_lea.vmem %s0, 64
  %v18 = vld [vmem:[%s17] sm:$0xff]
  %s19 = scalar_lea.vmem %s1, 48
  %20 = vst [vmem:[%s19] sm:$0xff] %v18
  %s21 = scalar_lea.vmem %s0, 256
  %v22 = vld [vmem:[%s21] sm:$0xff]
  %s23 = scalar_lea.vmem %s1, 240
  %24 = vst [vmem:[%s23] sm:$0xff] %v22
  %s25 = scalar_lea.vmem %s0, 88
  %v26 = vld [vmem:[%s25] sm:$0xff]
  %s27 = scalar_lea.vmem %s1, 72
  %28 = vst [vmem:[%s27] sm:$0xff] %v26
  %s29 = scalar_lea.vmem %s0, 280
  %v30 = vld [vmem:[%s29] sm:$0xff]
  %s31 = scalar_lea.vmem %s1, 264
  %32 = vst [vmem:[%s31] sm:$0xff] %v30
  %s33 = scalar_lea.vmem %s0, 112
  %v34 = vld [vmem:[%s33] sm:$0xff]
  %s35 = scalar_lea.vmem %s1, 96
  %36 = vst [vmem:[%s35] sm:$0xff] %v34
  %s37 = scalar_lea.vmem %s0, 304
  %v38 = vld [vmem:[%s37] sm:$0xff]
  %s39 = scalar_lea.vmem %s1, 288
  %40 = vst [vmem:[%s39] sm:$0xff] %v38
  %s41 = scalar_lea.vmem %s0, 136
  %v42 = vld [vmem:[%s41] sm:$0xff]
  %s43 = scalar_lea.vmem %s1, 120
  %44 = vst [vmem:[%s43] sm:$0xff] %v42
  %s45 = scalar_lea.vmem %s0, 328
  %v46 = vld [vmem:[%s45] sm:$0xff]
  %s47 = scalar_lea.vmem %s1, 312
  %48 = vst [vmem:[%s47] sm:$0xff] %v46
  %s49 = scalar_lea.vmem %s0, 160
  %v50 = vld [vmem:[%s49] sm:$0xff]
  %s51 = scalar_lea.vmem %s1, 144
  %52 = vst [vmem:[%s51] sm:$0xff] %v50
  %s53 = scalar_lea.vmem %s0, 352
  %v54 = vld [vmem:[%s53] sm:$0xff]
  %s55 = scalar_lea.vmem %s1, 336
  %56 = vst [vmem:[%s55] sm:$0xff] %v54
  %s57 = scalar_lea.vmem %s0, 184
  %v58 = vld [vmem:[%s57] sm:$0xff]
  %s59 = scalar_lea.vmem %s1, 168
  %60 = vst [vmem:[%s59] sm:$0xff] %v58
  %s61 = scalar_lea.vmem %s0, 376
  %v62 = vld [vmem:[%s61] sm:$0xff]
  %s63 = scalar_lea.vmem %s1, 360
  %64 = vst [vmem:[%s63] sm:$0xff] %v62
  %s65 = scalar_lea.vmem %s0, 8
  %v66 = vld [vmem:[%s65] sm:$0xff]
  %s67 = scalar_lea.vmem %s1, 8
  %68 = vst [vmem:[%s67] sm:$0xff] %v66
  %s69 = scalar_lea.vmem %s0, 200
  %v70 = vld [vmem:[%s69] sm:$0xff]
  %s71 = scalar_lea.vmem %s1, 200
  %72 = vst [vmem:[%s71] sm:$0xff] %v70
  %s73 = scalar_lea.vmem %s0, 32
  %v74 = vld [vmem:[%s73] sm:$0xff]
  %s75 = scalar_lea.vmem %s1, 32
  %76 = vst [vmem:[%s75] sm:$0xff] %v74
  %s77 = scalar_lea.vmem %s0, 224
  %v78 = vld [vmem:[%s77] sm:$0xff]
  %s79 = scalar_lea.vmem %s1, 224
  %80 = vst [vmem:[%s79] sm:$0xff] %v78
  %s81 = scalar_lea.vmem %s0, 56
  %v82 = vld [vmem:[%s81] sm:$0xff]
  %s83 = scalar_lea.vmem %s1, 56
  %84 = vst [vmem:[%s83] sm:$0xff] %v82
  %s85 = scalar_lea.vmem %s0, 248
  %v86 = vld [vmem:[%s85] sm:$0xff]
  %s87 = scalar_lea.vmem %s1, 248
  %88 = vst [vmem:[%s87] sm:$0xff] %v86
  %s89 = scalar_lea.vmem %s0, 80
  %v90 = vld [vmem:[%s89] sm:$0xff]
  %s91 = scalar_lea.vmem %s1, 80
  %92 = vst [vmem:[%s91] sm:$0xff] %v90
  %s93 = scalar_lea.vmem %s0, 272
  %v94 = vld [vmem:[%s93] sm:$0xff]
  %s95 = scalar_lea.vmem %s1, 272
  %96 = vst [vmem:[%s95] sm:$0xff] %v94
  %s97 = scalar_lea.vmem %s0, 104
  %v98 = vld [vmem:[%s97] sm:$0xff]
  %s99 = scalar_lea.vmem %s1, 104
  %100 = vst [vmem:[%s99] sm:$0xff] %v98
  %s101 = scalar_lea.vmem %s0, 296
  %v102 = vld [vmem:[%s101] sm:$0xff]
  %s103 = scalar_lea.vmem %s1, 296
  %104 = vst [vmem:[%s103] sm:$0xff] %v102
  %s105 = scalar_lea.vmem %s0, 128
  %v106 = vld [vmem:[%s105] sm:$0xff]
  %s107 = scalar_lea.vmem %s1, 128
  %108 = vst [vmem:[%s107] sm:$0xff] %v106
  %s109 = scalar_lea.vmem %s0, 320
  %v110 = vld [vmem:[%s109] sm:$0xff]
  %s111 = scalar_lea.vmem %s1, 320
  %112 = vst [vmem:[%s111] sm:$0xff] %v110
  %s113 = scalar_lea.vmem %s0, 152
  %v114 = vld [vmem:[%s113] sm:$0xff]
  %s115 = scalar_lea.vmem %s1, 152
  %116 = vst [vmem:[%s115] sm:$0xff] %v114
  %s117 = scalar_lea.vmem %s0, 344
  %v118 = vld [vmem:[%s117] sm:$0xff]
  %s119 = scalar_lea.vmem %s1, 344
  %120 = vst [vmem:[%s119] sm:$0xff] %v118
  %s121 = scalar_lea.vmem %s0, 176
  %v122 = vld [vmem:[%s121] sm:$0xff]
  %s123 = scalar_lea.vmem %s1, 176
  %124 = vst [vmem:[%s123] sm:$0xff] %v122
  %s125 = scalar_lea.vmem %s0, 368
  %v126 = vld [vmem:[%s125] sm:$0xff]
  %s127 = scalar_lea.vmem %s1, 368
  %128 = vst [vmem:[%s127] sm:$0xff] %v126
  %v129 = vld [vmem:[%s0] sm:$0xff]
  %s130 = scalar_lea.vmem %s1, 16
  %131 = vst [vmem:[%s130] sm:$0xff] %v129
  %s132 = scalar_lea.vmem %s0, 192
  %v133 = vld [vmem:[%s132] sm:$0xff]
  %s134 = scalar_lea.vmem %s1, 208
  %135 = vst [vmem:[%s134] sm:$0xff] %v133
  %s136 = scalar_lea.vmem %s0, 24
  %v137 = vld [vmem:[%s136] sm:$0xff]
  %s138 = scalar_lea.vmem %s1, 40
  %139 = vst [vmem:[%s138] sm:$0xff] %v137
  %s140 = scalar_lea.vmem %s0, 216
  %v141 = vld [vmem:[%s140] sm:$0xff]
  %s142 = scalar_lea.vmem %s1, 232
  %143 = vst [vmem:[%s142] sm:$0xff] %v141
  %s144 = scalar_lea.vmem %s0, 48
  %v145 = vld [vmem:[%s144] sm:$0xff]
  %s146 = scalar_lea.vmem %s1, 64
  %147 = vst [vmem:[%s146] sm:$0xff] %v145
  %s148 = scalar_lea.vmem %s0, 240
  %v149 = vld [vmem:[%s148] sm:$0xff]
  %s150 = scalar_lea.vmem %s1, 256
  %151 = vst [vmem:[%s150] sm:$0xff] %v149
  %s152 = scalar_lea.vmem %s0, 72
  %v153 = vld [vmem:[%s152] sm:$0xff]
  %s154 = scalar_lea.vmem %s1, 88
  %155 = vst [vmem:[%s154] sm:$0xff] %v153
  %s156 = scalar_lea.vmem %s0, 264
  %v157 = vld [vmem:[%s156] sm:$0xff]
  %s158 = scalar_lea.vmem %s1, 280
  %159 = vst [vmem:[%s158] sm:$0xff] %v157
  %s160 = scalar_lea.vmem %s0, 96
  %v161 = vld [vmem:[%s160] sm:$0xff]
  %s162 = scalar_lea.vmem %s1, 112
  %163 = vst [vmem:[%s162] sm:$0xff] %v161
  %s164 = scalar_lea.vmem %s0, 288
  %v165 = vld [vmem:[%s164] sm:$0xff]
  %s166 = scalar_lea.vmem %s1, 304
  %167 = vst [vmem:[%s166] sm:$0xff] %v165
  %s168 = scalar_lea.vmem %s0, 120
  %v169 = vld [vmem:[%s168] sm:$0xff]
  %s170 = scalar_lea.vmem %s1, 136
  %171 = vst [vmem:[%s170] sm:$0xff] %v169
  %s172 = scalar_lea.vmem %s0, 312
  %v173 = vld [vmem:[%s172] sm:$0xff]
  %s174 = scalar_lea.vmem %s1, 328
  %175 = vst [vmem:[%s174] sm:$0xff] %v173
  %s176 = scalar_lea.vmem %s0, 144
  %v177 = vld [vmem:[%s176] sm:$0xff]
  %s178 = scalar_lea.vmem %s1, 160
  %179 = vst [vmem:[%s178] sm:$0xff] %v177
  %s180 = scalar_lea.vmem %s0, 336
  %v181 = vld [vmem:[%s180] sm:$0xff]
  %s182 = scalar_lea.vmem %s1, 352
  %183 = vst [vmem:[%s182] sm:$0xff] %v181
  %s184 = scalar_lea.vmem %s0, 168
  %v185 = vld [vmem:[%s184] sm:$0xff]
  %s186 = scalar_lea.vmem %s1, 184
  %187 = vst [vmem:[%s186] sm:$0xff] %v185
  %s188 = scalar_lea.vmem %s0, 360
  %v189 = vld [vmem:[%s188] sm:$0xff]
  %s190 = scalar_lea.vmem %s1, 376
  %191 = vst [vmem:[%s190] sm:$0xff] %v189

// kernel: simple_block_forward.12
$region0: #{simple_block_forward.12}
  #allocation0 [shape = 'u32[]', space=smem, size = 0x4, offset = 0x4, fixed_abs, tag = 'smem constant byte address 0x4 - core index']
  #allocation1 [shape = 'u32[144,128]{1,0:T(1,128)}', space=vmem, size = 0x12000, scoped, tag = 'internal scratch']
  %s0 = inlined_call_operand.vmem [shape: f32[2,8,512], index: 0, kind: input, shape index: {}]
  %s1 = inlined_call_operand.vmem [shape: f32[2,8,512], index: 1, kind: input, shape index: {}]
  %s2 = inlined_call_operand.vmem [shape: f32[8,8], index: 2, kind: input, shape index: {}]
  %s3 = inlined_call_operand.vmem [shape: f32[8,1], index: 3, kind: input, shape index: {}]
  %s4 = inlined_call_operand.vmem [shape: f32[8,1], index: 4, kind: input, shape index: {}]
  %s5 = inlined_call_operand.vmem [shape: f32[8,1], index: 5, kind: input, shape index: {}]
  %s6 = inlined_call_operand.vmem [shape: f32[2,8,512], index: 6, kind: output, shape index: {}]
  %s7 = sld [smem:[#allocation0]]
  $region34: #{simple_block_forward.12} parent=0
    _
  %s9 = ssub.s32 1, %s7
  %s10 = scalar_select 0, %s9, %s7
  // Predicated region
  $region2: #{simple_block_forward.12} parent=0 // pred_check
    _
  $region3: #{simple_block_forward.12} parent=0 // pred_check_branch
    %12 = sbr.rel (0) target = $region5
  $region4: #{simple_block_forward.12} parent=0 // pred_region
    _
  $region5: #{simple_block_forward.12} parent=0 // pred_fallthru
    _
  // Predicated region
  $region6: #{simple_block_forward.12} parent=0 // pred_check
    _
  $region7: #{simple_block_forward.12} parent=0 // pred_check_branch
    %14 = sbr.rel (0) target = $region9
  $region8: #{simple_block_forward.12} parent=0 // pred_region
    _
  $region9: #{simple_block_forward.12} parent=0 // pred_fallthru
    _
  // Predicated region
  $region10: #{simple_block_forward.12} parent=0 // pred_check
    _
  $region11: #{simple_block_forward.12} parent=0 // pred_check_branch
    %16 = sbr.rel (0) target = $region13
  $region12: #{simple_block_forward.12} parent=0 // pred_region
    _
  $region13: #{simple_block_forward.12} parent=0 // pred_fallthru
    _
  // Predicated region
  $region14: #{simple_block_forward.12} parent=0 // pred_check
    _
  $region15: #{simple_block_forward.12} parent=0 // pred_check_branch
    %18 = sbr.rel (0) target = $region17
  $region16: #{simple_block_forward.12} parent=0 // pred_region
    _
  $region17: #{simple_block_forward.12} parent=0 // pred_fallthru
    _
  // Predicated region
  $region18: #{simple_block_forward.12} parent=0 // pred_check
    _
  $region19: #{simple_block_forward.12} parent=0 // pred_check_branch
    %20 = sbr.rel (0) target = $region21
  $region20: #{simple_block_forward.12} parent=0 // pred_region
    _
  $region21: #{simple_block_forward.12} parent=0 // pred_fallthru
    _
  // Predicated region
  $region22: #{simple_block_forward.12} parent=0 // pred_check
    _
  $region23: #{simple_block_forward.12} parent=0 // pred_check_branch
    %22 = sbr.rel (0) target = $region25
  $region24: #{simple_block_forward.12} parent=0 // pred_region
    _
  $region25: #{simple_block_forward.12} parent=0 // pred_fallthru
    _
  %v23 = vld [vmem:[%s2] sm:$0xff]
  %v24 = vld [vmem:[%s3] sm:$0xff]
  %v25 = vld [vmem:[%s0] sm:$0xff]
  %v26 = vld [vmem:[%s0 + $0x8] sm:$0xff]
  %v27 = vld [vmem:[%s0 + $0x10] sm:$0xff]
  %v28 = vld [vmem:[%s0 + $0x18] sm:$0xff]
  %v29 = vld [vmem:[%s1] sm:$0xff]
  %v30 = vld [vmem:[%s1 + $0x8] sm:$0xff]
  %v31 = vld [vmem:[%s1 + $0x10] sm:$0xff]
  %v32 = vld [vmem:[%s1 + $0x18] sm:$0xff]
  %34 = vset.pattern.permute.xlu0 0
  %35 = vperm.xlu0 %34, %v23
  %v36 = vpop.permute.xlu0 %35
  %v38 = vlaneseq
  %v39 = vshrl.u32 %v38, 7
  %v40 = vsub.s32 0, %v39
  %v41 = vrot.slane %v29, %v40
  %v42 = vlaneseq
  %v43 = vshrl.u32 %v42, 7
  %v44 = vsub.s32 0, %v43
  %v45 = vrot.slane %v30, %v44
  %v46 = vlaneseq
  %v47 = vshrl.u32 %v46, 7
  %v48 = vsub.s32 0, %v47
  %v49 = vrot.slane %v31, %v48
  %v50 = vlaneseq
  %v51 = vshrl.u32 %v50, 7
  %v52 = vsub.s32 0, %v51
  %v53 = vrot.slane %v32, %v52
  %v54 = vmul.f32 %v36, %v41
  %v55 = vmul.f32 %v36, %v45
  %v56 = vmul.f32 %v36, %v49
  %v57 = vmul.f32 %v36, %v53
  %58 = vset.pattern.permute.xlu0 1
  %59 = vperm.xlu0 %58, %v23
  %v60 = vpop.permute.xlu0 %59
  %v62 = vlaneseq
  %v63 = vshrl.u32 %v62, 7
  %v64 = vsub.s32 1, %v63
  %v65 = vrot.slane %v29, %v64
  %v66 = vlaneseq
  %v67 = vshrl.u32 %v66, 7
  %v68 = vsub.s32 1, %v67
  %v69 = vrot.slane %v30, %v68
  %v70 = vlaneseq
  %v71 = vshrl.u32 %v70, 7
  %v72 = vsub.s32 1, %v71
  %v73 = vrot.slane %v31, %v72
  %v74 = vlaneseq
  %v75 = vshrl.u32 %v74, 7
  %v76 = vsub.s32 1, %v75
  %v77 = vrot.slane %v32, %v76
  %v78 = vmul.f32 %v60, %v65
  %v79 = vmul.f32 %v60, %v69
  %v80 = vmul.f32 %v60, %v73
  %v81 = vmul.f32 %v60, %v77
  %v82 = vadd.f32 %v54, %v78
  %v83 = vadd.f32 %v55, %v79
  %v84 = vadd.f32 %v56, %v80
  %v85 = vadd.f32 %v57, %v81
  %86 = vset.pattern.permute.xlu0 2
  %87 = vperm.xlu0 %86, %v23
  %v88 = vpop.permute.xlu0 %87
  %v90 = vlaneseq
  %v91 = vshrl.u32 %v90, 7
  %v92 = vsub.s32 2, %v91
  %v93 = vrot.slane %v29, %v92
  %v94 = vlaneseq
  %v95 = vshrl.u32 %v94, 7
  %v96 = vsub.s32 2, %v95
  %v97 = vrot.slane %v30, %v96
  %v98 = vlaneseq
  %v99 = vshrl.u32 %v98, 7
  %v100 = vsub.s32 2, %v99
  %v101 = vrot.slane %v31, %v100
  %v102 = vlaneseq
  %v103 = vshrl.u32 %v102, 7
  %v104 = vsub.s32 2, %v103
  %v105 = vrot.slane %v32, %v104
  %v106 = vmul.f32 %v88, %v93
  %v107 = vmul.f32 %v88, %v97
  %v108 = vmul.f32 %v88, %v101
  %v109 = vmul.f32 %v88, %v105
  %v110 = vadd.f32 %v82, %v106
  %v111 = vadd.f32 %v83, %v107
  %v112 = vadd.f32 %v84, %v108
  %v113 = vadd.f32 %v85, %v109
  %114 = vset.pattern.permute.xlu0 3
  %115 = vperm.xlu0 %114, %v23
  %v116 = vpop.permute.xlu0 %115
  %v118 = vlaneseq
  %v119 = vshrl.u32 %v118, 7
  %v120 = vsub.s32 3, %v119
  %v121 = vrot.slane %v29, %v120
  %v122 = vlaneseq
  %v123 = vshrl.u32 %v122, 7
  %v124 = vsub.s32 3, %v123
  %v125 = vrot.slane %v30, %v124
  %v126 = vlaneseq
  %v127 = vshrl.u32 %v126, 7
  %v128 = vsub.s32 3, %v127
  %v129 = vrot.slane %v31, %v128
  %v130 = vlaneseq
  %v131 = vshrl.u32 %v130, 7
  %v132 = vsub.s32 3, %v131
  %v133 = vrot.slane %v32, %v132
  %v134 = vmul.f32 %v116, %v121
  %v135 = vmul.f32 %v116, %v125
  %v136 = vmul.f32 %v116, %v129
  %v137 = vmul.f32 %v116, %v133
  %v138 = vadd.f32 %v110, %v134
  %v139 = vadd.f32 %v111, %v135
  %v140 = vadd.f32 %v112, %v136
  %v141 = vadd.f32 %v113, %v137
  %142 = vset.pattern.permute.xlu0 4
  %143 = vperm.xlu0 %142, %v23
  %v144 = vpop.permute.xlu0 %143
  %v146 = vlaneseq
  %v147 = vshrl.u32 %v146, 7
  %v148 = vsub.s32 4, %v147
  %v149 = vrot.slane %v29, %v148
  %v150 = vlaneseq
  %v151 = vshrl.u32 %v150, 7
  %v152 = vsub.s32 4, %v151
  %v153 = vrot.slane %v30, %v152
  %v154 = vlaneseq
  %v155 = vshrl.u32 %v154, 7
  %v156 = vsub.s32 4, %v155
  %v157 = vrot.slane %v31, %v156
  %v158 = vlaneseq
  %v159 = vshrl.u32 %v158, 7
  %v160 = vsub.s32 4, %v159
  %v161 = vrot.slane %v32, %v160
  %v162 = vmul.f32 %v144, %v149
  %v163 = vmul.f32 %v144, %v153
  %v164 = vmul.f32 %v144, %v157
  %v165 = vmul.f32 %v144, %v161
  %v166 = vadd.f32 %v138, %v162
  %v167 = vadd.f32 %v139, %v163
  %v168 = vadd.f32 %v140, %v164
  %v169 = vadd.f32 %v141, %v165
  %170 = vset.pattern.permute.xlu0 5
  %171 = vperm.xlu0 %170, %v23
  %v172 = vpop.permute.xlu0 %171
  %v174 = vlaneseq
  %v175 = vshrl.u32 %v174, 7
  %v176 = vsub.s32 5, %v175
  %v177 = vrot.slane %v29, %v176
  %v178 = vlaneseq
  %v179 = vshrl.u32 %v178, 7
  %v180 = vsub.s32 5, %v179
  %v181 = vrot.slane %v30, %v180
  %v182 = vlaneseq
  %v183 = vshrl.u32 %v182, 7
  %v184 = vsub.s32 5, %v183
  %v185 = vrot.slane %v31, %v184
  %v186 = vlaneseq
  %v187 = vshrl.u32 %v186, 7
  %v188 = vsub.s32 5, %v187
  %v189 = vrot.slane %v32, %v188
  %v190 = vmul.f32 %v172, %v177
  %v191 = vmul.f32 %v172, %v181
  %v192 = vmul.f32 %v172, %v185
  %v193 = vmul.f32 %v172, %v189
  %v194 = vadd.f32 %v166, %v190
  %v195 = vadd.f32 %v167, %v191
  %v196 = vadd.f32 %v168, %v192
  %v197 = vadd.f32 %v169, %v193
  %198 = vset.pattern.permute.xlu0 6
  %199 = vperm.xlu0 %198, %v23
  %v200 = vpop.permute.xlu0 %199
  %v202 = vlaneseq
  %v203 = vshrl.u32 %v202, 7
  %v204 = vsub.s32 6, %v203
  %v205 = vrot.slane %v29, %v204
  %v206 = vlaneseq
  %v207 = vshrl.u32 %v206, 7
  %v208 = vsub.s32 6, %v207
  %v209 = vrot.slane %v30, %v208
  %v210 = vlaneseq
  %v211 = vshrl.u32 %v210, 7
  %v212 = vsub.s32 6, %v211
  %v213 = vrot.slane %v31, %v212
  %v214 = vlaneseq
  %v215 = vshrl.u32 %v214, 7
  %v216 = vsub.s32 6, %v215
  %v217 = vrot.slane %v32, %v216
  %v218 = vmul.f32 %v200, %v205
  %v219 = vmul.f32 %v200, %v209
  %v220 = vmul.f32 %v200, %v213
  %v221 = vmul.f32 %v200, %v217
  %v222 = vadd.f32 %v194, %v218
  %v223 = vadd.f32 %v195, %v219
  %v224 = vadd.f32 %v196, %v220
  %v225 = vadd.f32 %v197, %v221
  %226 = vset.pattern.permute.xlu0 7
  %227 = vperm.xlu0 %226, %v23
  %v228 = vpop.permute.xlu0 %227
  %v230 = vlaneseq
  %v231 = vshrl.u32 %v230, 7
  %v232 = vsub.s32 7, %v231
  %v233 = vrot.slane %v29, %v232
  %v234 = vlaneseq
  %v235 = vshrl.u32 %v234, 7
  %v236 = vsub.s32 7, %v235
  %v237 = vrot.slane %v30, %v236
  %v238 = vlaneseq
  %v239 = vshrl.u32 %v238, 7
  %v240 = vsub.s32 7, %v239
  %v241 = vrot.slane %v31, %v240
  %v242 = vlaneseq
  %v243 = vshrl.u32 %v242, 7
  %v244 = vsub.s32 7, %v243
  %v245 = vrot.slane %v32, %v244
  %v246 = vmul.f32 %v228, %v233
  %v247 = vmul.f32 %v228, %v237
  %v248 = vmul.f32 %v228, %v241
  %v249 = vmul.f32 %v228, %v245
  %v250 = vadd.f32 %v222, %v246
  %v251 = vadd.f32 %v223, %v247
  %v252 = vadd.f32 %v224, %v248
  %v253 = vadd.f32 %v225, %v249
  %v254 = vadd.f32 %v25, %v250
  %v255 = vadd.f32 %v26, %v251
  %v256 = vadd.f32 %v27, %v252
  %v257 = vadd.f32 %v28, %v253
  %259 = vset.pattern.permute.xlu0 0
  %260 = vperm.xlu0 %259, %v24
  %v261 = vpop.permute.xlu0 %260
  %v263 = vadd.f32 %v254, %v261
  %v264 = vadd.f32 %v255, %v261
  %v265 = vadd.f32 %v256, %v261
  %v266 = vadd.f32 %v257, %v261
  %s267 = scalar_lea.vmem %s0, 32
  %v268 = vld [vmem:[%s267] sm:$0xff]
  %v269 = vld [vmem:[%s267 + $0x8] sm:$0xff]
  %v270 = vld [vmem:[%s267 + $0x10] sm:$0xff]
  %v271 = vld [vmem:[%s267 + $0x18] sm:$0xff]
  %s272 = scalar_lea.vmem %s1, 32
  %v273 = vld [vmem:[%s272] sm:$0xff]
  %v274 = vld [vmem:[%s272 + $0x8] sm:$0xff]
  %v275 = vld [vmem:[%s272 + $0x10] sm:$0xff]
  %v276 = vld [vmem:[%s272 + $0x18] sm:$0xff]
  %v277 = vlaneseq
  %v278 = vshrl.u32 %v277, 7
  %v279 = vsub.s32 0, %v278
  %v280 = vrot.slane %v273, %v279
  %v281 = vlaneseq
  %v282 = vshrl.u32 %v281, 7
  %v283 = vsub.s32 0, %v282
  %v284 = vrot.slane %v274, %v283
  %v285 = vlaneseq
  %v286 = vshrl.u32 %v285, 7
  %v287 = vsub.s32 0, %v286
  %v288 = vrot.slane %v275, %v287
  %v289 = vlaneseq
  %v290 = vshrl.u32 %v289, 7
  %v291 = vsub.s32 0, %v290
  %v292 = vrot.slane %v276, %v291
  %v293 = vmul.f32 %v36, %v280
  %v294 = vmul.f32 %v36, %v284
  %v295 = vmul.f32 %v36, %v288
  %v296 = vmul.f32 %v36, %v292
  %v297 = vlaneseq
  %v298 = vshrl.u32 %v297, 7
  %v299 = vsub.s32 1, %v298
  %v300 = vrot.slane %v273, %v299
  %v301 = vlaneseq
  %v302 = vshrl.u32 %v301, 7
  %v303 = vsub.s32 1, %v302
  %v304 = vrot.slane %v274, %v303
  %v305 = vlaneseq
  %v306 = vshrl.u32 %v305, 7
  %v307 = vsub.s32 1, %v306
  %v308 = vrot.slane %v275, %v307
  %v309 = vlaneseq
  %v310 = vshrl.u32 %v309, 7
  %v311 = vsub.s32 1, %v310
  %v312 = vrot.slane %v276, %v311
  %v313 = vmul.f32 %v60, %v300
  %v314 = vmul.f32 %v60, %v304
  %v315 = vmul.f32 %v60, %v308
  %v316 = vmul.f32 %v60, %v312
  %v317 = vadd.f32 %v293, %v313
  %v318 = vadd.f32 %v294, %v314
  %v319 = vadd.f32 %v295, %v315
  %v320 = vadd.f32 %v296, %v316
  %v321 = vlaneseq
  %v322 = vshrl.u32 %v321, 7
  %v323 = vsub.s32 2, %v322
  %v324 = vrot.slane %v273, %v323
  %v325 = vlaneseq
  %v326 = vshrl.u32 %v325, 7
  %v327 = vsub.s32 2, %v326
  %v328 = vrot.slane %v274, %v327
  %v329 = vlaneseq
  %v330 = vshrl.u32 %v329, 7
  %v331 = vsub.s32 2, %v330
  %v332 = vrot.slane %v275, %v331
  %v333 = vlaneseq
  %v334 = vshrl.u32 %v333, 7
  %v335 = vsub.s32 2, %v334
  %v336 = vrot.slane %v276, %v335
  %v337 = vmul.f32 %v88, %v324
  %v338 = vmul.f32 %v88, %v328
  %v339 = vmul.f32 %v88, %v332
  %v340 = vmul.f32 %v88, %v336
  %v341 = vadd.f32 %v317, %v337
  %v342 = vadd.f32 %v318, %v338
  %v343 = vadd.f32 %v319, %v339
  %v344 = vadd.f32 %v320, %v340
  %v345 = vlaneseq
  %v346 = vshrl.u32 %v345, 7
  %v347 = vsub.s32 3, %v346
  %v348 = vrot.slane %v273, %v347
  %v349 = vlaneseq
  %v350 = vshrl.u32 %v349, 7
  %v351 = vsub.s32 3, %v350
  %v352 = vrot.slane %v274, %v351
  %v353 = vlaneseq
  %v354 = vshrl.u32 %v353, 7
  %v355 = vsub.s32 3, %v354
  %v356 = vrot.slane %v275, %v355
  %v357 = vlaneseq
  %v358 = vshrl.u32 %v357, 7
  %v359 = vsub.s32 3, %v358
  %v360 = vrot.slane %v276, %v359
  %v361 = vmul.f32 %v116, %v348
  %v362 = vmul.f32 %v116, %v352
  %v363 = vmul.f32 %v116, %v356
  %v364 = vmul.f32 %v116, %v360
  %v365 = vadd.f32 %v341, %v361
  %v366 = vadd.f32 %v342, %v362
  %v367 = vadd.f32 %v343, %v363
  %v368 = vadd.f32 %v344, %v364
  %v369 = vlaneseq
  %v370 = vshrl.u32 %v369, 7
  %v371 = vsub.s32 4, %v370
  %v372 = vrot.slane %v273, %v371
  %v373 = vlaneseq
  %v374 = vshrl.u32 %v373, 7
  %v375 = vsub.s32 4, %v374
  %v376 = vrot.slane %v274, %v375
  %v377 = vlaneseq
  %v378 = vshrl.u32 %v377, 7
  %v379 = vsub.s32 4, %v378
  %v380 = vrot.slane %v275, %v379
  %v381 = vlaneseq
  %v382 = vshrl.u32 %v381, 7
  %v383 = vsub.s32 4, %v382
  %v384 = vrot.slane %v276, %v383
  %v385 = vmul.f32 %v144, %v372
  %v386 = vmul.f32 %v144, %v376
  %v387 = vmul.f32 %v144, %v380
  %v388 = vmul.f32 %v144, %v384
  %v389 = vadd.f32 %v365, %v385
  %v390 = vadd.f32 %v366, %v386
  %v391 = vadd.f32 %v367, %v387
  %v392 = vadd.f32 %v368, %v388
  %v393 = vlaneseq
  %v394 = vshrl.u32 %v393, 7
  %v395 = vsub.s32 5, %v394
  %v396 = vrot.slane %v273, %v395
  %v397 = vlaneseq
  %v398 = vshrl.u32 %v397, 7
  %v399 = vsub.s32 5, %v398
  %v400 = vrot.slane %v274, %v399
  %v401 = vlaneseq
  %v402 = vshrl.u32 %v401, 7
  %v403 = vsub.s32 5, %v402
  %v404 = vrot.slane %v275, %v403
  %v405 = vlaneseq
  %v406 = vshrl.u32 %v405, 7
  %v407 = vsub.s32 5, %v406
  %v408 = vrot.slane %v276, %v407
  %v409 = vmul.f32 %v172, %v396
  %v410 = vmul.f32 %v172, %v400
  %v411 = vmul.f32 %v172, %v404
  %v412 = vmul.f32 %v172, %v408
  %v413 = vadd.f32 %v389, %v409
  %v414 = vadd.f32 %v390, %v410
  %v415 = vadd.f32 %v391, %v411
  %v416 = vadd.f32 %v392, %v412
  %v417 = vlaneseq
  %v418 = vshrl.u32 %v417, 7
  %v419 = vsub.s32 6, %v418
  %v420 = vrot.slane %v273, %v419
  %v421 = vlaneseq
  %v422 = vshrl.u32 %v421, 7
  %v423 = vsub.s32 6, %v422
  %v424 = vrot.slane %v274, %v423
  %v425 = vlaneseq
  %v426 = vshrl.u32 %v425, 7
  %v427 = vsub.s32 6, %v426
  %v428 = vrot.slane %v275, %v427
  %v429 = vlaneseq
  %v430 = vshrl.u32 %v429, 7
  %v431 = vsub.s32 6, %v430
  %v432 = vrot.slane %v276, %v431
  %v433 = vmul.f32 %v200, %v420
  %v434 = vmul.f32 %v200, %v424
  %v435 = vmul.f32 %v200, %v428
  %v436 = vmul.f32 %v200, %v432
  %v437 = vadd.f32 %v413, %v433
  %v438 = vadd.f32 %v414, %v434
  %v439 = vadd.f32 %v415, %v435
  %v440 = vadd.f32 %v416, %v436
  %v441 = vlaneseq
  %v442 = vshrl.u32 %v441, 7
  %v443 = vsub.s32 7, %v442
  %v444 = vrot.slane %v273, %v443
  %v445 = vlaneseq
  %v446 = vshrl.u32 %v445, 7
  %v447 = vsub.s32 7, %v446
  %v448 = vrot.slane %v274, %v447
  %v449 = vlaneseq
  %v450 = vshrl.u32 %v449, 7
  %v451 = vsub.s32 7, %v450
  %v452 = vrot.slane %v275, %v451
  %v453 = vlaneseq
  %v454 = vshrl.u32 %v453, 7
  %v455 = vsub.s32 7, %v454
  %v456 = vrot.slane %v276, %v455
  %v457 = vmul.f32 %v228, %v444
  %v458 = vmul.f32 %v228, %v448
  %v459 = vmul.f32 %v228, %v452
  %v460 = vmul.f32 %v228, %v456
  %v461 = vadd.f32 %v437, %v457
  %v462 = vadd.f32 %v438, %v458
  %v463 = vadd.f32 %v439, %v459
  %v464 = vadd.f32 %v440, %v460
  %v465 = vadd.f32 %v268, %v461
  %v466 = vadd.f32 %v269, %v462
  %v467 = vadd.f32 %v270, %v463
  %v468 = vadd.f32 %v271, %v464
  %v469 = vadd.f32 %v465, %v261
  %v470 = vadd.f32 %v466, %v261
  %v471 = vadd.f32 %v467, %v261
  %v472 = vadd.f32 %v468, %v261
  %v473 = vadd.f32 %v263, %v264
  %v474 = vadd.f32 %v473, %v265
  %v475 = vadd.f32 %v474, %v266
  %476 = vadd.xlane.f32.xlu0 %v475
  %v477 = vpop.xlane.xlu0 %476
  %v478 = vadd.f32 %v469, %v470
  %v479 = vadd.f32 %v478, %v471
  %v480 = vadd.f32 %v479, %v472
  %481 = vadd.xlane.f32.xlu0 %v480
  %v482 = vpop.xlane.xlu0 %481
  %v483 = vadd.f32 %v477, %v482
  %v484 = vmul.f32 %v483, 0.0009765625
  %v485 = vsub.f32 %v263, %v484
  %v486 = vsub.f32 %v264, %v484
  %v487 = vsub.f32 %v265, %v484
  %v488 = vsub.f32 %v266, %v484
  %v489 = vmul.f32 %v485, %v485
  %v490 = vmul.f32 %v486, %v486
  %v491 = vmul.f32 %v487, %v487
  %v492 = vmul.f32 %v488, %v488
  %v493 = vadd.f32 %v489, %v490
  %v494 = vadd.f32 %v493, %v491
  %v495 = vadd.f32 %v494, %v492
  %496 = vadd.xlane.f32.xlu0 %v495
  %v497 = vpop.xlane.xlu0 %496
  %v498 = vsub.f32 %v469, %v484
  %v499 = vsub.f32 %v470, %v484
  %v500 = vsub.f32 %v471, %v484
  %v501 = vsub.f32 %v472, %v484
  %v502 = vmul.f32 %v498, %v498
  %v503 = vmul.f32 %v499, %v499
  %v504 = vmul.f32 %v500, %v500
  %v505 = vmul.f32 %v501, %v501
  %v506 = vadd.f32 %v502, %v503
  %v507 = vadd.f32 %v506, %v504
  %v508 = vadd.f32 %v507, %v505
  %509 = vadd.xlane.f32.xlu0 %v508
  %v510 = vpop.xlane.xlu0 %509
  %v511 = vadd.f32 %v497, %v510
  %v512 = vmul.f32 %v511, 0.0009765625
  %v513 = vld [vmem:[%s4] sm:$0xff]
  %v514 = vadd.f32 %v512, 1e-05
  %v515 = vrsqrt.pop %v514
  %v516 = vmul.f32 %v513, %v515
  %v517 = vld [vmem:[%s5] sm:$0xff]
  %v518 = vmul.f32 %v484, %v516
  %v519 = vsub.f32 %v517, %v518
  %521 = vset.pattern.permute.xlu0 0
  %522 = vperm.xlu0 %521, %v516
  %v523 = vpop.permute.xlu0 %522
  %v525 = vmul.f32 %v263, %v523
  %v526 = vmul.f32 %v264, %v523
  %v527 = vmul.f32 %v265, %v523
  %v528 = vmul.f32 %v266, %v523
  %530 = vset.pattern.permute.xlu0 0
  %531 = vperm.xlu0 %530, %v519
  %v532 = vpop.permute.xlu0 %531
  %v534 = vadd.f32 %v525, %v532
  %v535 = vadd.f32 %v526, %v532
  %v536 = vadd.f32 %v527, %v532
  %v537 = vadd.f32 %v528, %v532
  %v538 = vmax.f32 %v534, 0.0
  %v539 = vmax.f32 %v535, 0.0
  %v540 = vmax.f32 %v536, 0.0
  %v541 = vmax.f32 %v537, 0.0
  %542 = vst [vmem:[%s6] sm:$0xff] %v538
  %543 = vst [vmem:[%s6 + $0x8] sm:$0xff] %v539
  %544 = vst [vmem:[%s6 + $0x10] sm:$0xff] %v540
  %545 = vst [vmem:[%s6 + $0x18] sm:$0xff] %v541
  %v546 = vmul.f32 %v469, %v523
  %v547 = vmul.f32 %v470, %v523
  %v548 = vmul.f32 %v471, %v523
  %v549 = vmul.f32 %v472, %v523
  %v550 = vadd.f32 %v546, %v532
  %v551 = vadd.f32 %v547, %v532
  %v552 = vadd.f32 %v548, %v532
  %v553 = vadd.f32 %v549, %v532
  %v554 = vmax.f32 %v550, 0.0
  %v555 = vmax.f32 %v551, 0.0
  %v556 = vmax.f32 %v552, 0.0
  %v557 = vmax.f32 %v553, 0.0
  %s558 = scalar_lea.vmem %s6, 32
  %559 = vst [vmem:[%s558] sm:$0xff] %v554
  %560 = vst [vmem:[%s558 + $0x8] sm:$0xff] %v555
  %561 = vst [vmem:[%s558 + $0x10] sm:$0xff] %v556
  %562 = vst [vmem:[%s558 + $0x18] sm:$0xff] %v557
  // Predicated region
  $region26: #{simple_block_forward.12} parent=0 // pred_check
    _
  $region27: #{simple_block_forward.12} parent=0 // pred_check_branch
    %564 = sbr.rel (0) target = $region29
  $region28: #{simple_block_forward.12} parent=0 // pred_region
    _
  $region29: #{simple_block_forward.12} parent=0 // pred_fallthru
    _
  // Predicated region
  $region30: #{simple_block_forward.12} parent=0 // pred_check
    _
  $region31: #{simple_block_forward.12} parent=0 // pred_check_branch
    %566 = sbr.rel (0) target = $region33
  $region32: #{simple_block_forward.12} parent=0 // pred_region
    _
  $region33: #{simple_block_forward.12} parent=0 // pred_fallthru
    _

// kernel: simple_block_forward.18
$region0: #{simple_block_forward.18}
  #allocation0 [shape = 'u32[]', space=smem, size = 0x4, offset = 0x4, fixed_abs, tag = 'smem constant byte address 0x4 - core index']
  #allocation1 [shape = 'u32[144,128]{1,0:T(1,128)}', space=vmem, size = 0x12000, scoped, tag = 'internal scratch']
  %s0 = inlined_call_operand.vmem [shape: f32[2,8,512], index: 0, kind: input, shape index: {}]
  %s1 = inlined_call_operand.vmem [shape: f32[2,8,512], index: 1, kind: input, shape index: {}]
  %s2 = inlined_call_operand.vmem [shape: f32[8,8], index: 2, kind: input, shape index: {}]
  %s3 = inlined_call_operand.vmem [shape: f32[8,1], index: 3, kind: input, shape index: {}]
  %s4 = inlined_call_operand.vmem [shape: f32[8,1], index: 4, kind: input, shape index: {}]
  %s5 = inlined_call_operand.vmem [shape: f32[8,1], index: 5, kind: input, shape index: {}]
  %s6 = inlined_call_operand.vmem [shape: f32[2,8,512], index: 6, kind: output, shape index: {}]
  %s7 = sld [smem:[#allocation0]]
  $region34: #{simple_block_forward.18} parent=0
    _
  %s9 = ssub.s32 1, %s7
  %s10 = scalar_select 0, %s9, %s7
  // Predicated region
  $region2: #{simple_block_forward.18} parent=0 // pred_check
    _
  $region3: #{simple_block_forward.18} parent=0 // pred_check_branch
    %12 = sbr.rel (0) target = $region5
  $region4: #{simple_block_forward.18} parent=0 // pred_region
    _
  $region5: #{simple_block_forward.18} parent=0 // pred_fallthru
    _
  // Predicated region
  $region6: #{simple_block_forward.18} parent=0 // pred_check
    _
  $region7: #{simple_block_forward.18} parent=0 // pred_check_branch
    %14 = sbr.rel (0) target = $region9
  $region8: #{simple_block_forward.18} parent=0 // pred_region
    _
  $region9: #{simple_block_forward.18} parent=0 // pred_fallthru
    _
  // Predicated region
  $region10: #{simple_block_forward.18} parent=0 // pred_check
    _
  $region11: #{simple_block_forward.18} parent=0 // pred_check_branch
    %16 = sbr.rel (0) target = $region13
  $region12: #{simple_block_forward.18} parent=0 // pred_region
    _
  $region13: #{simple_block_forward.18} parent=0 // pred_fallthru
    _
  // Predicated region
  $region14: #{simple_block_forward.18} parent=0 // pred_check
    _
  $region15: #{simple_block_forward.18} parent=0 // pred_check_branch
    %18 = sbr.rel (0) target = $region17
  $region16: #{simple_block_forward.18} parent=0 // pred_region
    _
  $region17: #{simple_block_forward.18} parent=0 // pred_fallthru
    _
  // Predicated region
  $region18: #{simple_block_forward.18} parent=0 // pred_check
    _
  $region19: #{simple_block_forward.18} parent=0 // pred_check_branch
    %20 = sbr.rel (0) target = $region21
  $region20: #{simple_block_forward.18} parent=0 // pred_region
    _
  $region21: #{simple_block_forward.18} parent=0 // pred_fallthru
    _
  // Predicated region
  $region22: #{simple_block_forward.18} parent=0 // pred_check
    _
  $region23: #{simple_block_forward.18} parent=0 // pred_check_branch
    %22 = sbr.rel (0) target = $region25
  $region24: #{simple_block_forward.18} parent=0 // pred_region
    _
  $region25: #{simple_block_forward.18} parent=0 // pred_fallthru
    _
  %v23 = vld [vmem:[%s2] sm:$0xff]
  %v24 = vld [vmem:[%s3] sm:$0xff]
  %v25 = vld [vmem:[%s0] sm:$0xff]
  %v26 = vld [vmem:[%s0 + $0x8] sm:$0xff]
  %v27 = vld [vmem:[%s0 + $0x10] sm:$0xff]
  %v28 = vld [vmem:[%s0 + $0x18] sm:$0xff]
  %v29 = vld [vmem:[%s1] sm:$0xff]
  %v30 = vld [vmem:[%s1 + $0x8] sm:$0xff]
  %v31 = vld [vmem:[%s1 + $0x10] sm:$0xff]
  %v32 = vld [vmem:[%s1 + $0x18] sm:$0xff]
  %34 = vset.pattern.permute.xlu0 0
  %35 = vperm.xlu0 %34, %v23
  %v36 = vpop.permute.xlu0 %35
  %v38 = vlaneseq
  %v39 = vshrl.u32 %v38, 7
  %v40 = vsub.s32 0, %v39
  %v41 = vrot.slane %v29, %v40
  %v42 = vlaneseq
  %v43 = vshrl.u32 %v42, 7
  %v44 = vsub.s32 0, %v43
  %v45 = vrot.slane %v30, %v44
  %v46 = vlaneseq
  %v47 = vshrl.u32 %v46, 7
  %v48 = vsub.s32 0, %v47
  %v49 = vrot.slane %v31, %v48
  %v50 = vlaneseq
  %v51 = vshrl.u32 %v50, 7
  %v52 = vsub.s32 0, %v51
  %v53 = vrot.slane %v32, %v52
  %v54 = vmul.f32 %v36, %v41
  %v55 = vmul.f32 %v36, %v45
  %v56 = vmul.f32 %v36, %v49
  %v57 = vmul.f32 %v36, %v53
  %58 = vset.pattern.permute.xlu0 1
  %59 = vperm.xlu0 %58, %v23
  %v60 = vpop.permute.xlu0 %59
  %v62 = vlaneseq
  %v63 = vshrl.u32 %v62, 7
  %v64 = vsub.s32 1, %v63
  %v65 = vrot.slane %v29, %v64
  %v66 = vlaneseq
  %v67 = vshrl.u32 %v66, 7
  %v68 = vsub.s32 1, %v67
  %v69 = vrot.slane %v30, %v68
  %v70 = vlaneseq
  %v71 = vshrl.u32 %v70, 7
  %v72 = vsub.s32 1, %v71
  %v73 = vrot.slane %v31, %v72
  %v74 = vlaneseq
  %v75 = vshrl.u32 %v74, 7
  %v76 = vsub.s32 1, %v75
  %v77 = vrot.slane %v32, %v76
  %v78 = vmul.f32 %v60, %v65
  %v79 = vmul.f32 %v60, %v69
  %v80 = vmul.f32 %v60, %v73
  %v81 = vmul.f32 %v60, %v77
  %v82 = vadd.f32 %v54, %v78
  %v83 = vadd.f32 %v55, %v79
  %v84 = vadd.f32 %v56, %v80
  %v85 = vadd.f32 %v57, %v81
  %86 = vset.pattern.permute.xlu0 2
  %87 = vperm.xlu0 %86, %v23
  %v88 = vpop.permute.xlu0 %87
  %v90 = vlaneseq
  %v91 = vshrl.u32 %v90, 7
  %v92 = vsub.s32 2, %v91
  %v93 = vrot.slane %v29, %v92
  %v94 = vlaneseq
  %v95 = vshrl.u32 %v94, 7
  %v96 = vsub.s32 2, %v95
  %v97 = vrot.slane %v30, %v96
  %v98 = vlaneseq
  %v99 = vshrl.u32 %v98, 7
  %v100 = vsub.s32 2, %v99
  %v101 = vrot.slane %v31, %v100
  %v102 = vlaneseq
  %v103 = vshrl.u32 %v102, 7
  %v104 = vsub.s32 2, %v103
  %v105 = vrot.slane %v32, %v104
  %v106 = vmul.f32 %v88, %v93
  %v107 = vmul.f32 %v88, %v97
  %v108 = vmul.f32 %v88, %v101
  %v109 = vmul.f32 %v88, %v105
  %v110 = vadd.f32 %v82, %v106
  %v111 = vadd.f32 %v83, %v107
  %v112 = vadd.f32 %v84, %v108
  %v113 = vadd.f32 %v85, %v109
  %114 = vset.pattern.permute.xlu0 3
  %115 = vperm.xlu0 %114, %v23
  %v116 = vpop.permute.xlu0 %115
  %v118 = vlaneseq
  %v119 = vshrl.u32 %v118, 7
  %v120 = vsub.s32 3, %v119
  %v121 = vrot.slane %v29, %v120
  %v122 = vlaneseq
  %v123 = vshrl.u32 %v122, 7
  %v124 = vsub.s32 3, %v123
  %v125 = vrot.slane %v30, %v124
  %v126 = vlaneseq
  %v127 = vshrl.u32 %v126, 7
  %v128 = vsub.s32 3, %v127
  %v129 = vrot.slane %v31, %v128
  %v130 = vlaneseq
  %v131 = vshrl.u32 %v130, 7
  %v132 = vsub.s32 3, %v131
  %v133 = vrot.slane %v32, %v132
  %v134 = vmul.f32 %v116, %v121
  %v135 = vmul.f32 %v116, %v125
  %v136 = vmul.f32 %v116, %v129
  %v137 = vmul.f32 %v116, %v133
  %v138 = vadd.f32 %v110, %v134
  %v139 = vadd.f32 %v111, %v135
  %v140 = vadd.f32 %v112, %v136
  %v141 = vadd.f32 %v113, %v137
  %142 = vset.pattern.permute.xlu0 4
  %143 = vperm.xlu0 %142, %v23
  %v144 = vpop.permute.xlu0 %143
  %v146 = vlaneseq
  %v147 = vshrl.u32 %v146, 7
  %v148 = vsub.s32 4, %v147
  %v149 = vrot.slane %v29, %v148
  %v150 = vlaneseq
  %v151 = vshrl.u32 %v150, 7
  %v152 = vsub.s32 4, %v151
  %v153 = vrot.slane %v30, %v152
  %v154 = vlaneseq
  %v155 = vshrl.u32 %v154, 7
  %v156 = vsub.s32 4, %v155
  %v157 = vrot.slane %v31, %v156
  %v158 = vlaneseq
  %v159 = vshrl.u32 %v158, 7
  %v160 = vsub.s32 4, %v159
  %v161 = vrot.slane %v32, %v160
  %v162 = vmul.f32 %v144, %v149
  %v163 = vmul.f32 %v144, %v153
  %v164 = vmul.f32 %v144, %v157
  %v165 = vmul.f32 %v144, %v161
  %v166 = vadd.f32 %v138, %v162
  %v167 = vadd.f32 %v139, %v163
  %v168 = vadd.f32 %v140, %v164
  %v169 = vadd.f32 %v141, %v165
  %170 = vset.pattern.permute.xlu0 5
  %171 = vperm.xlu0 %170, %v23
  %v172 = vpop.permute.xlu0 %171
  %v174 = vlaneseq
  %v175 = vshrl.u32 %v174, 7
  %v176 = vsub.s32 5, %v175
  %v177 = vrot.slane %v29, %v176
  %v178 = vlaneseq
  %v179 = vshrl.u32 %v178, 7
  %v180 = vsub.s32 5, %v179
  %v181 = vrot.slane %v30, %v180
  %v182 = vlaneseq
  %v183 = vshrl.u32 %v182, 7
  %v184 = vsub.s32 5, %v183
  %v185 = vrot.slane %v31, %v184
  %v186 = vlaneseq
  %v187 = vshrl.u32 %v186, 7
  %v188 = vsub.s32 5, %v187
  %v189 = vrot.slane %v32, %v188
  %v190 = vmul.f32 %v172, %v177
  %v191 = vmul.f32 %v172, %v181
  %v192 = vmul.f32 %v172, %v185
  %v193 = vmul.f32 %v172, %v189
  %v194 = vadd.f32 %v166, %v190
  %v195 = vadd.f32 %v167, %v191
  %v196 = vadd.f32 %v168, %v192
  %v197 = vadd.f32 %v169, %v193
  %198 = vset.pattern.permute.xlu0 6
  %199 = vperm.xlu0 %198, %v23
  %v200 = vpop.permute.xlu0 %199
  %v202 = vlaneseq
  %v203 = vshrl.u32 %v202, 7
  %v204 = vsub.s32 6, %v203
  %v205 = vrot.slane %v29, %v204
  %v206 = vlaneseq
  %v207 = vshrl.u32 %v206, 7
  %v208 = vsub.s32 6, %v207
  %v209 = vrot.slane %v30, %v208
  %v210 = vlaneseq
  %v211 = vshrl.u32 %v210, 7
  %v212 = vsub.s32 6, %v211
  %v213 = vrot.slane %v31, %v212
  %v214 = vlaneseq
  %v215 = vshrl.u32 %v214, 7
  %v216 = vsub.s32 6, %v215
  %v217 = vrot.slane %v32, %v216
  %v218 = vmul.f32 %v200, %v205
  %v219 = vmul.f32 %v200, %v209
  %v220 = vmul.f32 %v200, %v213
  %v221 = vmul.f32 %v200, %v217
  %v222 = vadd.f32 %v194, %v218
  %v223 = vadd.f32 %v195, %v219
  %v224 = vadd.f32 %v196, %v220
  %v225 = vadd.f32 %v197, %v221
  %226 = vset.pattern.permute.xlu0 7
  %227 = vperm.xlu0 %226, %v23
  %v228 = vpop.permute.xlu0 %227
  %v230 = vlaneseq
  %v231 = vshrl.u32 %v230, 7
  %v232 = vsub.s32 7, %v231
  %v233 = vrot.slane %v29, %v232
  %v234 = vlaneseq
  %v235 = vshrl.u32 %v234, 7
  %v236 = vsub.s32 7, %v235
  %v237 = vrot.slane %v30, %v236
  %v238 = vlaneseq
  %v239 = vshrl.u32 %v238, 7
  %v240 = vsub.s32 7, %v239
  %v241 = vrot.slane %v31, %v240
  %v242 = vlaneseq
  %v243 = vshrl.u32 %v242, 7
  %v244 = vsub.s32 7, %v243
  %v245 = vrot.slane %v32, %v244
  %v246 = vmul.f32 %v228, %v233
  %v247 = vmul.f32 %v228, %v237
  %v248 = vmul.f32 %v228, %v241
  %v249 = vmul.f32 %v228, %v245
  %v250 = vadd.f32 %v222, %v246
  %v251 = vadd.f32 %v223, %v247
  %v252 = vadd.f32 %v224, %v248
  %v253 = vadd.f32 %v225, %v249
  %v254 = vadd.f32 %v25, %v250
  %v255 = vadd.f32 %v26, %v251
  %v256 = vadd.f32 %v27, %v252
  %v257 = vadd.f32 %v28, %v253
  %259 = vset.pattern.permute.xlu0 0
  %260 = vperm.xlu0 %259, %v24
  %v261 = vpop.permute.xlu0 %260
  %v263 = vadd.f32 %v254, %v261
  %v264 = vadd.f32 %v255, %v261
  %v265 = vadd.f32 %v256, %v261
  %v266 = vadd.f32 %v257, %v261
  %s267 = scalar_lea.vmem %s0, 32
  %v268 = vld [vmem:[%s267] sm:$0xff]
  %v269 = vld [vmem:[%s267 + $0x8] sm:$0xff]
  %v270 = vld [vmem:[%s267 + $0x10] sm:$0xff]
  %v271 = vld [vmem:[%s267 + $0x18] sm:$0xff]
  %s272 = scalar_lea.vmem %s1, 32
  %v273 = vld [vmem:[%s272] sm:$0xff]
  %v274 = vld [vmem:[%s272 + $0x8] sm:$0xff]
  %v275 = vld [vmem:[%s272 + $0x10] sm:$0xff]
  %v276 = vld [vmem:[%s272 + $0x18] sm:$0xff]
  %v277 = vlaneseq
  %v278 = vshrl.u32 %v277, 7
  %v279 = vsub.s32 0, %v278
  %v280 = vrot.slane %v273, %v279
  %v281 = vlaneseq
  %v282 = vshrl.u32 %v281, 7
  %v283 = vsub.s32 0, %v282
  %v284 = vrot.slane %v274, %v283
  %v285 = vlaneseq
  %v286 = vshrl.u32 %v285, 7
  %v287 = vsub.s32 0, %v286
  %v288 = vrot.slane %v275, %v287
  %v289 = vlaneseq
  %v290 = vshrl.u32 %v289, 7
  %v291 = vsub.s32 0, %v290
  %v292 = vrot.slane %v276, %v291
  %v293 = vmul.f32 %v36, %v280
  %v294 = vmul.f32 %v36, %v284
  %v295 = vmul.f32 %v36, %v288
  %v296 = vmul.f32 %v36, %v292
  %v297 = vlaneseq
  %v298 = vshrl.u32 %v297, 7
  %v299 = vsub.s32 1, %v298
  %v300 = vrot.slane %v273, %v299
  %v301 = vlaneseq
  %v302 = vshrl.u32 %v301, 7
  %v303 = vsub.s32 1, %v302
  %v304 = vrot.slane %v274, %v303
  %v305 = vlaneseq
  %v306 = vshrl.u32 %v305, 7
  %v307 = vsub.s32 1, %v306
  %v308 = vrot.slane %v275, %v307
  %v309 = vlaneseq
  %v310 = vshrl.u32 %v309, 7
  %v311 = vsub.s32 1, %v310
  %v312 = vrot.slane %v276, %v311
  %v313 = vmul.f32 %v60, %v300
  %v314 = vmul.f32 %v60, %v304
  %v315 = vmul.f32 %v60, %v308
  %v316 = vmul.f32 %v60, %v312
  %v317 = vadd.f32 %v293, %v313
  %v318 = vadd.f32 %v294, %v314
  %v319 = vadd.f32 %v295, %v315
  %v320 = vadd.f32 %v296, %v316
  %v321 = vlaneseq
  %v322 = vshrl.u32 %v321, 7
  %v323 = vsub.s32 2, %v322
  %v324 = vrot.slane %v273, %v323
  %v325 = vlaneseq
  %v326 = vshrl.u32 %v325, 7
  %v327 = vsub.s32 2, %v326
  %v328 = vrot.slane %v274, %v327
  %v329 = vlaneseq
  %v330 = vshrl.u32 %v329, 7
  %v331 = vsub.s32 2, %v330
  %v332 = vrot.slane %v275, %v331
  %v333 = vlaneseq
  %v334 = vshrl.u32 %v333, 7
  %v335 = vsub.s32 2, %v334
  %v336 = vrot.slane %v276, %v335
  %v337 = vmul.f32 %v88, %v324
  %v338 = vmul.f32 %v88, %v328
  %v339 = vmul.f32 %v88, %v332
  %v340 = vmul.f32 %v88, %v336
  %v341 = vadd.f32 %v317, %v337
  %v342 = vadd.f32 %v318, %v338
  %v343 = vadd.f32 %v319, %v339
  %v344 = vadd.f32 %v320, %v340
  %v345 = vlaneseq
  %v346 = vshrl.u32 %v345, 7
  %v347 = vsub.s32 3, %v346
  %v348 = vrot.slane %v273, %v347
  %v349 = vlaneseq
  %v350 = vshrl.u32 %v349, 7
  %v351 = vsub.s32 3, %v350
  %v352 = vrot.slane %v274, %v351
  %v353 = vlaneseq
  %v354 = vshrl.u32 %v353, 7
  %v355 = vsub.s32 3, %v354
  %v356 = vrot.slane %v275, %v355
  %v357 = vlaneseq
  %v358 = vshrl.u32 %v357, 7
  %v359 = vsub.s32 3, %v358
  %v360 = vrot.slane %v276, %v359
  %v361 = vmul.f32 %v116, %v348
  %v362 = vmul.f32 %v116, %v352
  %v363 = vmul.f32 %v116, %v356
  %v364 = vmul.f32 %v116, %v360
  %v365 = vadd.f32 %v341, %v361
  %v366 = vadd.f32 %v342, %v362
  %v367 = vadd.f32 %v343, %v363
  %v368 = vadd.f32 %v344, %v364
  %v369 = vlaneseq
  %v370 = vshrl.u32 %v369, 7
  %v371 = vsub.s32 4, %v370
  %v372 = vrot.slane %v273, %v371
  %v373 = vlaneseq
  %v374 = vshrl.u32 %v373, 7
  %v375 = vsub.s32 4, %v374
  %v376 = vrot.slane %v274, %v375
  %v377 = vlaneseq
  %v378 = vshrl.u32 %v377, 7
  %v379 = vsub.s32 4, %v378
  %v380 = vrot.slane %v275, %v379
  %v381 = vlaneseq
  %v382 = vshrl.u32 %v381, 7
  %v383 = vsub.s32 4, %v382
  %v384 = vrot.slane %v276, %v383
  %v385 = vmul.f32 %v144, %v372
  %v386 = vmul.f32 %v144, %v376
  %v387 = vmul.f32 %v144, %v380
  %v388 = vmul.f32 %v144, %v384
  %v389 = vadd.f32 %v365, %v385
  %v390 = vadd.f32 %v366, %v386
  %v391 = vadd.f32 %v367, %v387
  %v392 = vadd.f32 %v368, %v388
  %v393 = vlaneseq
  %v394 = vshrl.u32 %v393, 7
  %v395 = vsub.s32 5, %v394
  %v396 = vrot.slane %v273, %v395
  %v397 = vlaneseq
  %v398 = vshrl.u32 %v397, 7
  %v399 = vsub.s32 5, %v398
  %v400 = vrot.slane %v274, %v399
  %v401 = vlaneseq
  %v402 = vshrl.u32 %v401, 7
  %v403 = vsub.s32 5, %v402
  %v404 = vrot.slane %v275, %v403
  %v405 = vlaneseq
  %v406 = vshrl.u32 %v405, 7
  %v407 = vsub.s32 5, %v406
  %v408 = vrot.slane %v276, %v407
  %v409 = vmul.f32 %v172, %v396
  %v410 = vmul.f32 %v172, %v400
  %v411 = vmul.f32 %v172, %v404
  %v412 = vmul.f32 %v172, %v408
  %v413 = vadd.f32 %v389, %v409
  %v414 = vadd.f32 %v390, %v410
  %v415 = vadd.f32 %v391, %v411
  %v416 = vadd.f32 %v392, %v412
  %v417 = vlaneseq
  %v418 = vshrl.u32 %v417, 7
  %v419 = vsub.s32 6, %v418
  %v420 = vrot.slane %v273, %v419
  %v421 = vlaneseq
  %v422 = vshrl.u32 %v421, 7
  %v423 = vsub.s32 6, %v422
  %v424 = vrot.slane %v274, %v423
  %v425 = vlaneseq
  %v426 = vshrl.u32 %v425, 7
  %v427 = vsub.s32 6, %v426
  %v428 = vrot.slane %v275, %v427
  %v429 = vlaneseq
  %v430 = vshrl.u32 %v429, 7
  %v431 = vsub.s32 6, %v430
  %v432 = vrot.slane %v276, %v431
  %v433 = vmul.f32 %v200, %v420
  %v434 = vmul.f32 %v200, %v424
  %v435 = vmul.f32 %v200, %v428
  %v436 = vmul.f32 %v200, %v432
  %v437 = vadd.f32 %v413, %v433
  %v438 = vadd.f32 %v414, %v434
  %v439 = vadd.f32 %v415, %v435
  %v440 = vadd.f32 %v416, %v436
  %v441 = vlaneseq
  %v442 = vshrl.u32 %v441, 7
  %v443 = vsub.s32 7, %v442
  %v444 = vrot.slane %v273, %v443
  %v445 = vlaneseq
  %v446 = vshrl.u32 %v445, 7
  %v447 = vsub.s32 7, %v446
  %v448 = vrot.slane %v274, %v447
  %v449 = vlaneseq
  %v450 = vshrl.u32 %v449, 7
  %v451 = vsub.s32 7, %v450
  %v452 = vrot.slane %v275, %v451
  %v453 = vlaneseq
  %v454 = vshrl.u32 %v453, 7
  %v455 = vsub.s32 7, %v454
  %v456 = vrot.slane %v276, %v455
  %v457 = vmul.f32 %v228, %v444
  %v458 = vmul.f32 %v228, %v448
  %v459 = vmul.f32 %v228, %v452
  %v460 = vmul.f32 %v228, %v456
  %v461 = vadd.f32 %v437, %v457
  %v462 = vadd.f32 %v438, %v458
  %v463 = vadd.f32 %v439, %v459
  %v464 = vadd.f32 %v440, %v460
  %v465 = vadd.f32 %v268, %v461
  %v466 = vadd.f32 %v269, %v462
  %v467 = vadd.f32 %v270, %v463
  %v468 = vadd.f32 %v271, %v464
  %v469 = vadd.f32 %v465, %v261
  %v470 = vadd.f32 %v466, %v261
  %v471 = vadd.f32 %v467, %v261
  %v472 = vadd.f32 %v468, %v261
  %v473 = vadd.f32 %v263, %v264
  %v474 = vadd.f32 %v473, %v265
  %v475 = vadd.f32 %v474, %v266
  %476 = vadd.xlane.f32.xlu0 %v475
  %v477 = vpop.xlane.xlu0 %476
  %v478 = vadd.f32 %v469, %v470
  %v479 = vadd.f32 %v478, %v471
  %v480 = vadd.f32 %v479, %v472
  %481 = vadd.xlane.f32.xlu0 %v480
  %v482 = vpop.xlane.xlu0 %481
  %v483 = vadd.f32 %v477, %v482
  %v484 = vmul.f32 %v483, 0.0009765625
  %v485 = vsub.f32 %v263, %v484
  %v486 = vsub.f32 %v264, %v484
  %v487 = vsub.f32 %v265, %v484
  %v488 = vsub.f32 %v266, %v484
  %v489 = vmul.f32 %v485, %v485
  %v490 = vmul.f32 %v486, %v486
  %v491 = vmul.f32 %v487, %v487
  %v492 = vmul.f32 %v488, %v488
  %v493 = vadd.f32 %v489, %v490
  %v494 = vadd.f32 %v493, %v491
  %v495 = vadd.f32 %v494, %v492
  %496 = vadd.xlane.f32.xlu0 %v495
  %v497 = vpop.xlane.xlu0 %496
  %v498 = vsub.f32 %v469, %v484
  %v499 = vsub.f32 %v470, %v484
  %v500 = vsub.f32 %v471, %v484
  %v501 = vsub.f32 %v472, %v484
  %v502 = vmul.f32 %v498, %v498
  %v503 = vmul.f32 %v499, %v499
  %v504 = vmul.f32 %v500, %v500
  %v505 = vmul.f32 %v501, %v501
  %v506 = vadd.f32 %v502, %v503
  %v507 = vadd.f32 %v506, %v504
  %v508 = vadd.f32 %v507, %v505
  %509 = vadd.xlane.f32.xlu0 %v508
  %v510 = vpop.xlane.xlu0 %509
  %v511 = vadd.f32 %v497, %v510
  %v512 = vmul.f32 %v511, 0.0009765625
  %v513 = vld [vmem:[%s4] sm:$0xff]
  %v514 = vadd.f32 %v512, 1e-05
  %v515 = vrsqrt.pop %v514
  %v516 = vmul.f32 %v513, %v515
  %v517 = vld [vmem:[%s5] sm:$0xff]
  %v518 = vmul.f32 %v484, %v516
  %v519 = vsub.f32 %v517, %v518
  %521 = vset.pattern.permute.xlu0 0
  %522 = vperm.xlu0 %521, %v516
  %v523 = vpop.permute.xlu0 %522
  %v525 = vmul.f32 %v263, %v523
  %v526 = vmul.f32 %v264, %v523
  %v527 = vmul.f32 %v265, %v523
  %v528 = vmul.f32 %v266, %v523
  %530 = vset.pattern.permute.xlu0 0
  %531 = vperm.xlu0 %530, %v519
  %v532 = vpop.permute.xlu0 %531
  %v534 = vadd.f32 %v525, %v532
  %v535 = vadd.f32 %v526, %v532
  %v536 = vadd.f32 %v527, %v532
  %v537 = vadd.f32 %v528, %v532
  %538 = vst [vmem:[%s6] sm:$0xff] %v534
  %539 = vst [vmem:[%s6 + $0x8] sm:$0xff] %v535
  %540 = vst [vmem:[%s6 + $0x10] sm:$0xff] %v536
  %541 = vst [vmem:[%s6 + $0x18] sm:$0xff] %v537
  %v542 = vmul.f32 %v469, %v523
  %v543 = vmul.f32 %v470, %v523
  %v544 = vmul.f32 %v471, %v523
  %v545 = vmul.f32 %v472, %v523
  %v546 = vadd.f32 %v542, %v532
  %v547 = vadd.f32 %v543, %v532
  %v548 = vadd.f32 %v544, %v532
  %v549 = vadd.f32 %v545, %v532
  %s550 = scalar_lea.vmem %s6, 32
  %551 = vst [vmem:[%s550] sm:$0xff] %v546
  %552 = vst [vmem:[%s550 + $0x8] sm:$0xff] %v547
  %553 = vst [vmem:[%s550 + $0x10] sm:$0xff] %v548
  %554 = vst [vmem:[%s550 + $0x18] sm:$0xff] %v549
  // Predicated region
  $region26: #{simple_block_forward.18} parent=0 // pred_check
    _
  $region27: #{simple_block_forward.18} parent=0 // pred_check_branch
    %556 = sbr.rel (0) target = $region29
  $region28: #{simple_block_forward.18} parent=0 // pred_region
    _
  $region29: #{simple_block_forward.18} parent=0 // pred_fallthru
    _
  // Predicated region
  $region30: #{simple_block_forward.18} parent=0 // pred_check
    _
  $region31: #{simple_block_forward.18} parent=0 // pred_check_branch
    %558 = sbr.rel (0) target = $region33
  $region32: #{simple_block_forward.18} parent=0 // pred_region
    _
  $region33: #{simple_block_forward.18} parent=0 // pred_fallthru
    _

// kernel: simple_block_forward.19
$region0: #{simple_block_forward.19}
  #allocation0 [shape = 'u32[]', space=smem, size = 0x4, offset = 0x4, fixed_abs, tag = 'smem constant byte address 0x4 - core index']
  #allocation1 [shape = 'u32[144,128]{1,0:T(1,128)}', space=vmem, size = 0x12000, scoped, tag = 'internal scratch']
  #allocation2 [shape = 'f32[1,1]{1,0:T(1,128)S(1)}', space=vmem, size = 0x200, scoped, tag = 'scoped memory for simple_block_forward.19']
  %s0 = inlined_call_operand.vmem [shape: f32[2,8,512], index: 0, kind: input, shape index: {}]
  %s1 = inlined_call_operand.vmem [shape: f32[128,8], index: 1, kind: input, shape index: {}]
  %s2 = inlined_call_operand.vmem [shape: f32[128,1], index: 2, kind: input, shape index: {}]
  %s3 = inlined_call_operand.vmem [shape: f32[128,1], index: 3, kind: input, shape index: {}]
  %s4 = inlined_call_operand.<no memory space> [shape: f32[1,1], index: 4, kind: input, shape index: {}]
  %s5 = inlined_call_operand.vmem [shape: f32[2,1,512], index: 5, kind: output, shape index: {}]
  %s6 = sld [smem:[#allocation0]]
  $region53: #{simple_block_forward.19} parent=0
    _
  %s8 = ssub.s32 1, %s6
  %s9 = scalar_select 0, %s8, %s6
  %v10 = vstv %s4
  %11 = vst [vmem:[#allocation2] sm:$0x1] %v10
  loop: start=0, step=1, limit=4
  $region2: #{simple_block_forward.19} parent=0 // loop_pre_header
    _
  $region3: #{simple_block_forward.19} parent=0 // loop_header
    %s13 = sphi 0, %s17
    %p14 = scmp.ge.s32.totalorder %s13, 4
    %s20 = sphi 0, %s32
    %s21 = sphi 0, %s28
    %s22 = sphi 0, %s20
    %s23 = sphi 0, %s21
    %s24 = sphi 0, %s22
    %s25 = sphi 0, %s23
    %s37 = sphi 0, %s39
    %s40 = sphi 0, %s37
    %s41 = sphi 0, %s40
    %s57 = sphi 0, %s41
    %s61 = sphi 0, %s61
    %s63 = sphi 0, %s61
    %s64 = sphi 0, %s63
    %s78 = sphi 0, %s64
    %s82 = sphi 0, %s82
    %s84 = sphi 0, %s82
    %s85 = sphi 0, %s84
    %s99 = sphi 0, %s85
    %s103 = sphi 0, %s103
    %s105 = sphi 0, %s103
    %s106 = sphi 0, %s105
    %s120 = sphi 0, %s106
    %s124 = sphi 0, %s124
    %s126 = sphi 0, %s124
    %s127 = sphi 0, %s126
    %s141 = sphi 0, %s127
    %s149 = sphi 0, %s151
    %s152 = sphi 0, %s149
    %s153 = sphi 0, %s152
    %s169 = sphi 0, %s153
  $region4: #{simple_block_forward.19} parent=0 // loop_header_branch
    %16 = sbr.rel (%p14) target = $region8
  $region5: #{simple_block_forward.19} parent=0 // loop_body
    %s18 = ssub.s32 %s13, 1
    %s19 = ssub.s32 %s13, 2
    %s26 = sadd.s32 1, %s21
    %p27 = scmp.ge.s32.totalorder %s26, 1
    %s28 = scalar_select %p27, 0, %s26
    %s29 = sadd.s32 1, %s20
    %s30 = scalar_select %p27, %s29, %s20
    %p31 = scmp.ge.s32.totalorder %s30, 2
    %s32 = scalar_select %p31, 0, %s30
    %s33 = ssub.s32 %s20, %s32
    %s34 = ssub.s32 %s21, %s28
    %s35 = sor.u32 %s33, %s34
    %p36 = scmp.eq.s32.totalorder %s35, 0
    %s38 = sadd.s32 %s37, 1
    %s39 = scalar_select %p36, %s37, %s38
    %p42 = pneg %p36
    %p43 = scmp.eq.s32.totalorder %s13, 1
    %p44 = por %p42, %p43
    %p45 = scmp.ne.s32.totalorder %s37, %s40
    %p46 = scmp.eq.s32.totalorder %s13, 0
    %p47 = por %p45, %p46
    %p48 = scmp.ne.s32.totalorder %s37, %s40
    %p49 = scmp.eq.s32.totalorder %s18, 1
    %p50 = por %p48, %p49
    %p51 = scmp.ne.s32.totalorder %s40, %s41
    %p52 = scmp.eq.s32.totalorder %s18, 0
    %p53 = por %p51, %p52
    %p54 = scmp.ne.s32.totalorder %s40, %s41
    %p55 = scmp.eq.s32.totalorder %s19, 1
    %p56 = por %p54, %p55
    %p58 = scmp.ne.s32.totalorder %s41, %s57
    %p59 = scmp.eq.s32.totalorder %s19, 0
    %p60 = por %p58, %p59
    %s62 = sadd.s32 %s61, 1
    %p65 = scmp.eq.s32.totalorder %s13, 1
    %p66 = scmp.ne.s32.totalorder %s61, %s63
    %p67 = scmp.eq.s32.totalorder %s13, 0
    %p68 = por %p66, %p67
    %p69 = scmp.ne.s32.totalorder %s61, %s63
    %p70 = scmp.eq.s32.totalorder %s18, 1
    %p71 = por %p69, %p70
    %p72 = scmp.ne.s32.totalorder %s63, %s64
    %p73 = scmp.eq.s32.totalorder %s18, 0
    %p74 = por %p72, %p73
    %p75 = scmp.ne.s32.totalorder %s63, %s64
    %p76 = scmp.eq.s32.totalorder %s19, 1
    %p77 = por %p75, %p76
    %p79 = scmp.ne.s32.totalorder %s64, %s78
    %p80 = scmp.eq.s32.totalorder %s19, 0
    %p81 = por %p79, %p80
    %s83 = sadd.s32 %s82, 1
    %p86 = scmp.eq.s32.totalorder %s13, 1
    %p87 = scmp.ne.s32.totalorder %s82, %s84
    %p88 = scmp.eq.s32.totalorder %s13, 0
    %p89 = por %p87, %p88
    %p90 = scmp.ne.s32.totalorder %s82, %s84
    %p91 = scmp.eq.s32.totalorder %s18, 1
    %p92 = por %p90, %p91
    %p93 = scmp.ne.s32.totalorder %s84, %s85
    %p94 = scmp.eq.s32.totalorder %s18, 0
    %p95 = por %p93, %p94
    %p96 = scmp.ne.s32.totalorder %s84, %s85
    %p97 = scmp.eq.s32.totalorder %s19, 1
    %p98 = por %p96, %p97
    %p100 = scmp.ne.s32.totalorder %s85, %s99
    %p101 = scmp.eq.s32.totalorder %s19, 0
    %p102 = por %p100, %p101
    %s104 = sadd.s32 %s103, 1
    %p107 = scmp.eq.s32.totalorder %s13, 1
    %p108 = scmp.ne.s32.totalorder %s103, %s105
    %p109 = scmp.eq.s32.totalorder %s13, 0
    %p110 = por %p108, %p109
    %p111 = scmp.ne.s32.totalorder %s103, %s105
    %p112 = scmp.eq.s32.totalorder %s18, 1
    %p113 = por %p111, %p112
    %p114 = scmp.ne.s32.totalorder %s105, %s106
    %p115 = scmp.eq.s32.totalorder %s18, 0
    %p116 = por %p114, %p115
    %p117 = scmp.ne.s32.totalorder %s105, %s106
    %p118 = scmp.eq.s32.totalorder %s19, 1
    %p119 = por %p117, %p118
    %p121 = scmp.ne.s32.totalorder %s106, %s120
    %p122 = scmp.eq.s32.totalorder %s19, 0
    %p123 = por %p121, %p122
    %s125 = sadd.s32 %s124, 1
    %p128 = scmp.eq.s32.totalorder %s13, 1
    %p129 = scmp.ne.s32.totalorder %s124, %s126
    %p130 = scmp.eq.s32.totalorder %s13, 0
    %p131 = por %p129, %p130
    %p132 = scmp.ne.s32.totalorder %s124, %s126
    %p133 = scmp.eq.s32.totalorder %s18, 1
    %p134 = por %p132, %p133
    %p135 = scmp.ne.s32.totalorder %s126, %s127
    %p136 = scmp.eq.s32.totalorder %s18, 0
    %p137 = por %p135, %p136
    %p138 = scmp.ne.s32.totalorder %s126, %s127
    %p139 = scmp.eq.s32.totalorder %s19, 1
    %p140 = por %p138, %p139
    %p142 = scmp.ne.s32.totalorder %s127, %s141
    %p143 = scmp.eq.s32.totalorder %s19, 0
    %p144 = por %p142, %p143
    %s145 = ssub.s32 %s20, %s32
    %s146 = ssub.s32 %s21, %s28
    %s147 = sor.u32 %s145, %s146
    %p148 = scmp.eq.s32.totalorder %s147, 0
    %s150 = sadd.s32 %s149, 1
    %s151 = scalar_select %p148, %s149, %s150
    %p154 = pneg %p148
    %p155 = scmp.eq.s32.totalorder %s13, 1
    %p156 = por %p154, %p155
    %p157 = scmp.ne.s32.totalorder %s149, %s152
    %p158 = scmp.eq.s32.totalorder %s13, 0
    %p159 = por %p157, %p158
    %p160 = scmp.ne.s32.totalorder %s149, %s152
    %p161 = scmp.eq.s32.totalorder %s18, 1
    %p162 = por %p160, %p161
    %p163 = scmp.ne.s32.totalorder %s152, %s153
    %p164 = scmp.eq.s32.totalorder %s18, 0
    %p165 = por %p163, %p164
    %p166 = scmp.ne.s32.totalorder %s152, %s153
    %p167 = scmp.eq.s32.totalorder %s19, 1
    %p168 = por %p166, %p167
    %p170 = scmp.ne.s32.totalorder %s153, %s169
    %p171 = scmp.eq.s32.totalorder %s19, 0
    %p172 = por %p170, %p171
    %p173 = scmp.le.s32.totalorder 1, %s13
    %p174 = scmp.lt.s32.totalorder %s13, 3
    %p175 = pnand %p173, %p174
    %p176 = pneg %p175
    // Predicated region
    $region9: #{simple_block_forward.19} parent=5 // pred_check
      _
    $region10: #{simple_block_forward.19} parent=5 // pred_check_branch
      %178 = sbr.rel (%p175) target = $region12
    $region11: #{simple_block_forward.19} parent=5 // pred_region
      %s179 = ssub.s32 %s13, 1
      // Predicated region
      $region13: #{simple_block_forward.19} parent=11 // pred_check
        %p180 = pneg %p74
      $region14: #{simple_block_forward.19} parent=11 // pred_check_branch
        %182 = sbr.rel (%p180) target = $region16
      $region15: #{simple_block_forward.19} parent=11 // pred_region
        _
      $region16: #{simple_block_forward.19} parent=11 // pred_fallthru
        _
      // Predicated region
      $region17: #{simple_block_forward.19} parent=11 // pred_check
        %p183 = pneg %p95
      $region18: #{simple_block_forward.19} parent=11 // pred_check_branch
        %185 = sbr.rel (%p183) target = $region20
      $region19: #{simple_block_forward.19} parent=11 // pred_region
        _
      $region20: #{simple_block_forward.19} parent=11 // pred_fallthru
        _
      // Predicated region
      $region21: #{simple_block_forward.19} parent=11 // pred_check
        %p186 = pneg %p116
      $region22: #{simple_block_forward.19} parent=11 // pred_check_branch
        %188 = sbr.rel (%p186) target = $region24
      $region23: #{simple_block_forward.19} parent=11 // pred_region
        _
      $region24: #{simple_block_forward.19} parent=11 // pred_fallthru
        _
      // Predicated region
      $region25: #{simple_block_forward.19} parent=11 // pred_check
        %p189 = pneg %p137
      $region26: #{simple_block_forward.19} parent=11 // pred_check_branch
        %191 = sbr.rel (%p189) target = $region28
      $region27: #{simple_block_forward.19} parent=11 // pred_region
        _
      $region28: #{simple_block_forward.19} parent=11 // pred_fallthru
        _
    $region12: #{simple_block_forward.19} parent=5 // pred_fallthru
      _
    %p192 = scmp.lt.s32.totalorder %s13, 2
    // Predicated region
    $region29: #{simple_block_forward.19} parent=5 // pred_check
      %p193 = pneg %p192
    $region30: #{simple_block_forward.19} parent=5 // pred_check_branch
      %195 = sbr.rel (%p193) target = $region32
    $region31: #{simple_block_forward.19} parent=5 // pred_region
      // Predicated region
      $region33: #{simple_block_forward.19} parent=31 // pred_check
        %p196 = pneg %p47
      $region34: #{simple_block_forward.19} parent=31 // pred_check_branch
        %198 = sbr.rel (%p196) target = $region36
      $region35: #{simple_block_forward.19} parent=31 // pred_region
        %s199 = smul.u32 4, %s21
        %p200 = scmp.lt.s32.totalorder %s20, 1
        %s201 = scalar_select %p200, %s20, 1
        %p202 = scmp.lt.s32.totalorder %s199, 3
        %s203 = scalar_select %p202, %s199, 3
        %s204 = smul.addr %s201, 4
        %s205 = sadd.s32 %s203, %s204
        %s206 = smul.addr %s205, 8
        %s207 = scalar_lea.vmem %s0, %s206
        %s208 = smul.u32 4, %s21
      $region36: #{simple_block_forward.19} parent=31 // pred_fallthru
        _
    $region32: #{simple_block_forward.19} parent=5 // pred_fallthru
      _
    %p209 = scmp.le.s32.totalorder 1, %s13
    %p210 = scmp.lt.s32.totalorder %s13, 3
    %p211 = pnand %p209, %p210
    %p212 = pneg %p211
    // Predicated region
    $region37: #{simple_block_forward.19} parent=5 // pred_check
      _
    $region38: #{simple_block_forward.19} parent=5 // pred_check_branch
      %214 = sbr.rel (%p211) target = $region40
    $region39: #{simple_block_forward.19} parent=5 // pred_region
      %s215 = ssub.s32 %s13, 1
      %s216 = smul.u32 4, %s23
      %p217 = scmp.lt.s32.totalorder %s22, 1
      %s218 = scalar_select %p217, %s22, 1
      %p219 = scmp.lt.s32.totalorder %s216, 3
      %s220 = scalar_select %p219, %s216, 3
      %s221 = smul.addr %s218, 4
      %s222 = sadd.s32 %s220, %s221
      %s223 = smul.addr %s222, 8
      %s224 = scalar_lea.vmem %s0, %s223
      %p225 = pneg %p53
      %p226 = pneg %p50
      %p227 = pneg %p74
      %p228 = pneg %p71
      %p229 = pneg %p95
      %p230 = pneg %p92
      %p231 = pneg %p116
      %p232 = pneg %p113
      %p233 = pneg %p137
      %p234 = pneg %p134
      %p235 = pneg %p165
      %p236 = pneg %p162
      %s237 = smul.u32 4, %s23
      %p238 = scmp.lt.s32.totalorder %s22, 1
      %s239 = scalar_select %p238, %s22, 1
      %p240 = scmp.lt.s32.totalorder %s237, 3
      %s241 = scalar_select %p240, %s237, 3
      %s242 = smul.addr %s239, 4
      %s243 = sadd.s32 %s241, %s242
      %s244 = scalar_lea.vmem %s5, %s243
      %s245 = smul.u32 4, %s23
      %p246 = scmp.lt.s32.totalorder %s22, 1
      %s247 = scalar_select %p246, %s22, 1
      %p248 = scmp.lt.s32.totalorder %s245, 3
      %s249 = scalar_select %p248, %s245, 3
      %s250 = smul.addr %s247, 4
      %s251 = sadd.s32 %s249, %s250
      %s252 = smul.addr %s251, 8
      %s253 = scalar_lea.vmem %s0, %s252
      %s254 = smul.u32 4, %s23
      %s255 = smul.u32 4, %s23
      %p256 = scmp.lt.s32.totalorder %s22, 1
      %s257 = scalar_select %p256, %s22, 1
      %p258 = scmp.lt.s32.totalorder %s255, 3
      %s259 = scalar_select %p258, %s255, 3
      %s260 = smul.addr %s257, 4
      %s261 = sadd.s32 %s259, %s260
      %s262 = scalar_lea.vmem %s5, %s261
      %s263 = smul.u32 4, %s23
      %v264 = vld [vmem:[%s253] sm:$0xff]
      %v265 = vld [vmem:[%s253 + $0x8] sm:$0xff]
      %v266 = vld [vmem:[%s253 + $0x10] sm:$0xff]
      %v267 = vld [vmem:[%s253 + $0x18] sm:$0xff]
      %v268 = vld [vmem:[%s1] sm:$0xff]
      %v269 = vld [vmem:[%s1 + $0x8] sm:$0xff]
      %v270 = vld [vmem:[%s1 + $0x10] sm:$0xff]
      %v271 = vld [vmem:[%s1 + $0x18] sm:$0xff]
      %v272 = vld [vmem:[%s1 + $0x20] sm:$0xff]
      %v273 = vld [vmem:[%s1 + $0x28] sm:$0xff]
      %v274 = vld [vmem:[%s1 + $0x30] sm:$0xff]
      %v275 = vld [vmem:[%s1 + $0x38] sm:$0xff]
      %v276 = vld [vmem:[%s1 + $0x40] sm:$0xff]
      %v277 = vld [vmem:[%s1 + $0x48] sm:$0xff]
      %v278 = vld [vmem:[%s1 + $0x50] sm:$0xff]
      %v279 = vld [vmem:[%s1 + $0x58] sm:$0xff]
      %v280 = vld [vmem:[%s1 + $0x60] sm:$0xff]
      %v281 = vld [vmem:[%s1 + $0x68] sm:$0xff]
      %v282 = vld [vmem:[%s1 + $0x70] sm:$0xff]
      %v283 = vld [vmem:[%s1 + $0x78] sm:$0xff]
      %v284 = vld [vmem:[%s2] sm:$0xff]
      %v285 = vld [vmem:[%s2 + $0x8] sm:$0xff]
      %v286 = vld [vmem:[%s2 + $0x10] sm:$0xff]
      %v287 = vld [vmem:[%s2 + $0x18] sm:$0xff]
      %v288 = vld [vmem:[%s2 + $0x20] sm:$0xff]
      %v289 = vld [vmem:[%s2 + $0x28] sm:$0xff]
      %v290 = vld [vmem:[%s2 + $0x30] sm:$0xff]
      %v291 = vld [vmem:[%s2 + $0x38] sm:$0xff]
      %v292 = vld [vmem:[%s2 + $0x40] sm:$0xff]
      %v293 = vld [vmem:[%s2 + $0x48] sm:$0xff]
      %v294 = vld [vmem:[%s2 + $0x50] sm:$0xff]
      %v295 = vld [vmem:[%s2 + $0x58] sm:$0xff]
      %v296 = vld [vmem:[%s2 + $0x60] sm:$0xff]
      %v297 = vld [vmem:[%s2 + $0x68] sm:$0xff]
      %v298 = vld [vmem:[%s2 + $0x70] sm:$0xff]
      %v299 = vld [vmem:[%s2 + $0x78] sm:$0xff]
      %301 = vset.pattern.permute.xlu0 0
      %302 = vperm.xlu0 %301, %v284
      %v303 = vpop.permute.xlu0 %302
      %306 = vset.pattern.permute.xlu0 0
      %307 = vperm.xlu0 %306, %v285
      %v308 = vpop.permute.xlu0 %307
      %311 = vset.pattern.permute.xlu0 0
      %312 = vperm.xlu0 %311, %v286
      %v313 = vpop.permute.xlu0 %312
      %316 = vset.pattern.permute.xlu0 0
      %317 = vperm.xlu0 %316, %v287
      %v318 = vpop.permute.xlu0 %317
      %321 = vset.pattern.permute.xlu0 0
      %322 = vperm.xlu0 %321, %v288
      %v323 = vpop.permute.xlu0 %322
      %326 = vset.pattern.permute.xlu0 0
      %327 = vperm.xlu0 %326, %v289
      %v328 = vpop.permute.xlu0 %327
      %331 = vset.pattern.permute.xlu0 0
      %332 = vperm.xlu0 %331, %v290
      %v333 = vpop.permute.xlu0 %332
      %336 = vset.pattern.permute.xlu0 0
      %337 = vperm.xlu0 %336, %v291
      %v338 = vpop.permute.xlu0 %337
      %341 = vset.pattern.permute.xlu0 0
      %342 = vperm.xlu0 %341, %v292
      %v343 = vpop.permute.xlu0 %342
      %346 = vset.pattern.permute.xlu0 0
      %347 = vperm.xlu0 %346, %v293
      %v348 = vpop.permute.xlu0 %347
      %351 = vset.pattern.permute.xlu0 0
      %352 = vperm.xlu0 %351, %v294
      %v353 = vpop.permute.xlu0 %352
      %356 = vset.pattern.permute.xlu0 0
      %357 = vperm.xlu0 %356, %v295
      %v358 = vpop.permute.xlu0 %357
      %361 = vset.pattern.permute.xlu0 0
      %362 = vperm.xlu0 %361, %v296
      %v363 = vpop.permute.xlu0 %362
      %366 = vset.pattern.permute.xlu0 0
      %367 = vperm.xlu0 %366, %v297
      %v368 = vpop.permute.xlu0 %367
      %371 = vset.pattern.permute.xlu0 0
      %372 = vperm.xlu0 %371, %v298
      %v373 = vpop.permute.xlu0 %372
      %376 = vset.pattern.permute.xlu0 0
      %377 = vperm.xlu0 %376, %v299
      %v378 = vpop.permute.xlu0 %377
      %vm380 = vcmask 64512
      %v382 = vsel %vm380, %v268, 0
      %v385 = vsel %vm380, %v269, 0
      %v388 = vsel %vm380, %v270, 0
      %v391 = vsel %vm380, %v271, 0
      %v394 = vsel %vm380, %v272, 0
      %v397 = vsel %vm380, %v273, 0
      %v400 = vsel %vm380, %v274, 0
      %v403 = vsel %vm380, %v275, 0
      %v406 = vsel %vm380, %v276, 0
      %v409 = vsel %vm380, %v277, 0
      %v412 = vsel %vm380, %v278, 0
      %v415 = vsel %vm380, %v279, 0
      %v418 = vsel %vm380, %v280, 0
      %v421 = vsel %vm380, %v281, 0
      %v424 = vsel %vm380, %v282, 0
      %v427 = vsel %vm380, %v283, 0
      %429 = vmatprep.subr.mxu0 %v265
      %430 = vmatpush1.msra.mxu0 %v264
      %431 = vmatprep.subr.mxu0 0.0
      %432 = vmatpush1.msra.mxu0 0.0
      %433 = vmatprep.subr.mxu0 0.0
      %434 = vmatpush1.msra.mxu0 0.0
      %435 = vmatprep.subr.mxu0 0.0
      %436 = vmatpush1.msra.mxu0 0.0
      %437 = vmatprep.subr.mxu0 0.0
      %438 = vmatpush1.msra.mxu0 0.0
      %439 = vmatprep.subr.mxu0 0.0
      %440 = vmatpush1.msra.mxu0 0.0
      %441 = vmatprep.subr.mxu0 0.0
      %442 = vmatpush1.msra.mxu0 0.0
      %443 = vmatprep.subr.mxu0 0.0
      %444 = vmatpush1.msra.mxu0 0.0
      %445 = vmatprep.subr.mxu0 0.0
      %446 = vmatpush1.msra.mxu0 0.0
      %447 = vmatprep.subr.mxu0 0.0
      %448 = vmatpush1.msra.mxu0 0.0
      %449 = vmatprep.subr.mxu0 0.0
      %450 = vmatpush1.msra.mxu0 0.0
      %451 = vmatprep.subr.mxu0 0.0
      %452 = vmatpush1.msra.mxu0 0.0
      %453 = vmatprep.subr.mxu0 0.0
      %454 = vmatpush1.msra.mxu0 0.0
      %455 = vmatprep.subr.mxu0 0.0
      %456 = vmatpush1.msra.mxu0 0.0
      %457 = vmatprep.subr.mxu0 0.0
      %458 = vmatpush1.msra.mxu0 0.0
      %459 = vmatprep.subr.mxu0 0.0
      %460 = vmatpush1.msra.mxu0 0.0
      %461 = vmatprep.subr.mxu0 0.0
      %462 = vmatpush1.msra.mxu0 0.0
      %463 = vmatprep.subr.mxu0 0.0
      %464 = vmatpush1.msra.mxu0 0.0
      %465 = vmatprep.subr.mxu0 0.0
      %466 = vmatpush1.msra.mxu0 0.0
      %467 = vmatprep.subr.mxu0 0.0
      %468 = vmatpush1.msra.mxu0 0.0
      %469 = vmatprep.subr.mxu0 0.0
      %470 = vmatpush1.msra.mxu0 0.0
      %471 = vmatprep.subr.mxu0 0.0
      %472 = vmatpush1.msra.mxu0 0.0
      %473 = vmatprep.subr.mxu0 0.0
      %474 = vmatpush1.msra.mxu0 0.0
      %475 = vmatprep.subr.mxu0 0.0
      %476 = vmatpush1.msra.mxu0 0.0
      %477 = vmatprep.subr.mxu0 0.0
      %478 = vmatpush1.msra.mxu0 0.0
      %479 = vmatprep.subr.mxu0 0.0
      %480 = vmatpush1.msra.mxu0 0.0
      %481 = vmatprep.subr.mxu0 0.0
      %482 = vmatpush1.msra.mxu0 0.0
      %483 = vmatprep.subr.mxu0 0.0
      %484 = vmatpush1.msra.mxu0 0.0
      %485 = vmatprep.subr.mxu0 0.0
      %486 = vmatpush1.msra.mxu0 0.0
      %487 = vmatprep.subr.mxu0 0.0
      %488 = vmatpush1.msra.mxu0 0.0
      %489 = vmatprep.subr.mxu0 0.0
      %490 = vmatpush1.msra.mxu0 0.0
      %491 = vmatprep.subr.mxu0 0.0
      %492 = vmatpush1.msra.mxu0 0.0
      %493 = vmatprep.mubr.f32.mxu0 0.0
      %494 = vmatmul.mubr.f32.gmra.mrb[0].mxu0 %v382
      %v495 = vpop.f32.mrb[0].mxu0
      %v496 = vadd.f32 %v303, %v495
      %v497 = vpop.f32.mrb[0].mxu0
      %v498 = vadd.f32 %v303, %v497
      %499 = vmatprep.mubr.f32.mxu0 0.0
      %500 = vmatmul.mubr.f32.gmra.mrb[0].mxu0 %v385
      %v501 = vpop.f32.mrb[0].mxu0
      %v502 = vadd.f32 %v308, %v501
      %v503 = vpop.f32.mrb[0].mxu0
      %v504 = vadd.f32 %v308, %v503
      %505 = vmatprep.mubr.f32.mxu0 0.0
      %506 = vmatmul.mubr.f32.gmra.mrb[0].mxu0 %v388
      %v507 = vpop.f32.mrb[0].mxu0
      %v508 = vadd.f32 %v313, %v507
      %v509 = vpop.f32.mrb[0].mxu0
      %v510 = vadd.f32 %v313, %v509
      %511 = vmatprep.mubr.f32.mxu0 0.0
      %512 = vmatmul.mubr.f32.gmra.mrb[0].mxu0 %v391
      %v513 = vpop.f32.mrb[0].mxu0
      %v514 = vadd.f32 %v318, %v513
      %v515 = vpop.f32.mrb[0].mxu0
      %v516 = vadd.f32 %v318, %v515
      %517 = vmatprep.mubr.f32.mxu0 0.0
      %518 = vmatmul.mubr.f32.gmra.mrb[0].mxu0 %v394
      %v519 = vpop.f32.mrb[0].mxu0
      %v520 = vadd.f32 %v323, %v519
      %v521 = vpop.f32.mrb[0].mxu0
      %v522 = vadd.f32 %v323, %v521
      %523 = vmatprep.mubr.f32.mxu0 0.0
      %524 = vmatmul.mubr.f32.gmra.mrb[0].mxu0 %v397
      %v525 = vpop.f32.mrb[0].mxu0
      %v526 = vadd.f32 %v328, %v525
      %v527 = vpop.f32.mrb[0].mxu0
      %v528 = vadd.f32 %v328, %v527
      %529 = vmatprep.mubr.f32.mxu0 0.0
      %530 = vmatmul.mubr.f32.gmra.mrb[0].mxu0 %v400
      %v531 = vpop.f32.mrb[0].mxu0
      %v532 = vadd.f32 %v333, %v531
      %v533 = vpop.f32.mrb[0].mxu0
      %v534 = vadd.f32 %v333, %v533
      %535 = vmatprep.mubr.f32.mxu0 0.0
      %536 = vmatmul.mubr.f32.gmra.mrb[0].mxu0 %v403
      %v537 = vpop.f32.mrb[0].mxu0
      %v538 = vadd.f32 %v338, %v537
      %v539 = vpop.f32.mrb[0].mxu0
      %v540 = vadd.f32 %v338, %v539
      %541 = vmatprep.mubr.f32.mxu0 0.0
      %542 = vmatmul.mubr.f32.gmra.mrb[0].mxu0 %v406
      %v543 = vpop.f32.mrb[0].mxu0
      %v544 = vadd.f32 %v343, %v543
      %v545 = vpop.f32.mrb[0].mxu0
      %v546 = vadd.f32 %v343, %v545
      %547 = vmatprep.mubr.f32.mxu0 0.0
      %548 = vmatmul.mubr.f32.gmra.mrb[0].mxu0 %v409
      %v549 = vpop.f32.mrb[0].mxu0
      %v550 = vadd.f32 %v348, %v549
      %v551 = vpop.f32.mrb[0].mxu0
      %v552 = vadd.f32 %v348, %v551
      %553 = vmatprep.mubr.f32.mxu0 0.0
      %554 = vmatmul.mubr.f32.gmra.mrb[0].mxu0 %v412
      %v555 = vpop.f32.mrb[0].mxu0
      %v556 = vadd.f32 %v353, %v555
      %v557 = vpop.f32.mrb[0].mxu0
      %v558 = vadd.f32 %v353, %v557
      %559 = vmatprep.mubr.f32.mxu0 0.0
      %560 = vmatmul.mubr.f32.gmra.mrb[0].mxu0 %v415
      %v561 = vpop.f32.mrb[0].mxu0
      %v562 = vadd.f32 %v358, %v561
      %v563 = vpop.f32.mrb[0].mxu0
      %v564 = vadd.f32 %v358, %v563
      %565 = vmatprep.mubr.f32.mxu0 0.0
      %566 = vmatmul.mubr.f32.gmra.mrb[0].mxu0 %v418
      %v567 = vpop.f32.mrb[0].mxu0
      %v568 = vadd.f32 %v363, %v567
      %v569 = vpop.f32.mrb[0].mxu0
      %v570 = vadd.f32 %v363, %v569
      %571 = vmatprep.mubr.f32.mxu0 0.0
      %572 = vmatmul.mubr.f32.gmra.mrb[0].mxu0 %v421
      %v573 = vpop.f32.mrb[0].mxu0
      %v574 = vadd.f32 %v368, %v573
      %v575 = vpop.f32.mrb[0].mxu0
      %v576 = vadd.f32 %v368, %v575
      %577 = vmatprep.mubr.f32.mxu0 0.0
      %578 = vmatmul.mubr.f32.gmra.mrb[0].mxu0 %v424
      %v579 = vpop.f32.mrb[0].mxu0
      %v580 = vadd.f32 %v373, %v579
      %v581 = vpop.f32.mrb[0].mxu0
      %v582 = vadd.f32 %v373, %v581
      %583 = vmatprep.mubr.f32.mxu0 0.0
      %584 = vmatmul.mubr.f32.gmra.mrb[0].mxu0 %v427
      %v585 = vpop.f32.mrb[0].mxu0
      %v586 = vadd.f32 %v378, %v585
      %v587 = vpop.f32.mrb[0].mxu0
      %v588 = vadd.f32 %v378, %v587
      %589 = vdwg.mxu0
      %590 = vmatprep.subr.mxu0 %v267
      %591 = vmatpush1.msra.mxu0 %v266
      %592 = vmatprep.subr.mxu0 0.0
      %593 = vmatpush1.msra.mxu0 0.0
      %594 = vmatprep.subr.mxu0 0.0
      %595 = vmatpush1.msra.mxu0 0.0
      %596 = vmatprep.subr.mxu0 0.0
      %597 = vmatpush1.msra.mxu0 0.0
      %598 = vmatprep.subr.mxu0 0.0
      %599 = vmatpush1.msra.mxu0 0.0
      %600 = vmatprep.subr.mxu0 0.0
      %601 = vmatpush1.msra.mxu0 0.0
      %602 = vmatprep.subr.mxu0 0.0
      %603 = vmatpush1.msra.mxu0 0.0
      %604 = vmatprep.subr.mxu0 0.0
      %605 = vmatpush1.msra.mxu0 0.0
      %606 = vmatprep.subr.mxu0 0.0
      %607 = vmatpush1.msra.mxu0 0.0
      %608 = vmatprep.subr.mxu0 0.0
      %609 = vmatpush1.msra.mxu0 0.0
      %610 = vmatprep.subr.mxu0 0.0
      %611 = vmatpush1.msra.mxu0 0.0
      %612 = vmatprep.subr.mxu0 0.0
      %613 = vmatpush1.msra.mxu0 0.0
      %614 = vmatprep.subr.mxu0 0.0
      %615 = vmatpush1.msra.mxu0 0.0
      %616 = vmatprep.subr.mxu0 0.0
      %617 = vmatpush1.msra.mxu0 0.0
      %618 = vmatprep.subr.mxu0 0.0
      %619 = vmatpush1.msra.mxu0 0.0
      %620 = vmatprep.subr.mxu0 0.0
      %621 = vmatpush1.msra.mxu0 0.0
      %622 = vmatprep.subr.mxu0 0.0
      %623 = vmatpush1.msra.mxu0 0.0
      %624 = vmatprep.subr.mxu0 0.0
      %625 = vmatpush1.msra.mxu0 0.0
      %626 = vmatprep.subr.mxu0 0.0
      %627 = vmatpush1.msra.mxu0 0.0
      %628 = vmatprep.subr.mxu0 0.0
      %629 = vmatpush1.msra.mxu0 0.0
      %630 = vmatprep.subr.mxu0 0.0
      %631 = vmatpush1.msra.mxu0 0.0
      %632 = vmatprep.subr.mxu0 0.0
      %633 = vmatpush1.msra.mxu0 0.0
      %634 = vmatprep.subr.mxu0 0.0
      %635 = vmatpush1.msra.mxu0 0.0
      %636 = vmatprep.subr.mxu0 0.0
      %637 = vmatpush1.msra.mxu0 0.0
      %638 = vmatprep.subr.mxu0 0.0
      %639 = vmatpush1.msra.mxu0 0.0
      %640 = vmatprep.subr.mxu0 0.0
      %641 = vmatpush1.msra.mxu0 0.0
      %642 = vmatprep.subr.mxu0 0.0
      %643 = vmatpush1.msra.mxu0 0.0
      %644 = vmatprep.subr.mxu0 0.0
      %645 = vmatpush1.msra.mxu0 0.0
      %646 = vmatprep.subr.mxu0 0.0
      %647 = vmatpush1.msra.mxu0 0.0
      %648 = vmatprep.subr.mxu0 0.0
      %649 = vmatpush1.msra.mxu0 0.0
      %650 = vmatprep.subr.mxu0 0.0
      %651 = vmatpush1.msra.mxu0 0.0
      %652 = vmatprep.subr.mxu0 0.0
      %653 = vmatpush1.msra.mxu0 0.0
      %654 = vmatprep.mubr.f32.mxu0 0.0
      %655 = vmatmul.mubr.f32.gmra.mrb[0].mxu0 %v382
      %v656 = vpop.f32.mrb[0].mxu0
      %v657 = vadd.f32 %v303, %v656
      %v658 = vpop.f32.mrb[0].mxu0
      %v659 = vadd.f32 %v303, %v658
      %660 = vmatprep.mubr.f32.mxu0 0.0
      %661 = vmatmul.mubr.f32.gmra.mrb[0].mxu0 %v385
      %v662 = vpop.f32.mrb[0].mxu0
      %v663 = vadd.f32 %v308, %v662
      %v664 = vpop.f32.mrb[0].mxu0
      %v665 = vadd.f32 %v308, %v664
      %666 = vmatprep.mubr.f32.mxu0 0.0
      %667 = vmatmul.mubr.f32.gmra.mrb[0].mxu0 %v388
      %v668 = vpop.f32.mrb[0].mxu0
      %v669 = vadd.f32 %v313, %v668
      %v670 = vpop.f32.mrb[0].mxu0
      %v671 = vadd.f32 %v313, %v670
      %672 = vmatprep.mubr.f32.mxu0 0.0
      %673 = vmatmul.mubr.f32.gmra.mrb[0].mxu0 %v391
      %v674 = vpop.f32.mrb[0].mxu0
      %v675 = vadd.f32 %v318, %v674
      %v676 = vpop.f32.mrb[0].mxu0
      %v677 = vadd.f32 %v318, %v676
      %678 = vmatprep.mubr.f32.mxu0 0.0
      %679 = vmatmul.mubr.f32.gmra.mrb[0].mxu0 %v394
      %v680 = vpop.f32.mrb[0].mxu0
      %v681 = vadd.f32 %v323, %v680
      %v682 = vpop.f32.mrb[0].mxu0
      %v683 = vadd.f32 %v323, %v682
      %684 = vmatprep.mubr.f32.mxu0 0.0
      %685 = vmatmul.mubr.f32.gmra.mrb[0].mxu0 %v397
      %v686 = vpop.f32.mrb[0].mxu0
      %v687 = vadd.f32 %v328, %v686
      %v688 = vpop.f32.mrb[0].mxu0
      %v689 = vadd.f32 %v328, %v688
      %690 = vmatprep.mubr.f32.mxu0 0.0
      %691 = vmatmul.mubr.f32.gmra.mrb[0].mxu0 %v400
      %v692 = vpop.f32.mrb[0].mxu0
      %v693 = vadd.f32 %v333, %v692
      %v694 = vpop.f32.mrb[0].mxu0
      %v695 = vadd.f32 %v333, %v694
      %696 = vmatprep.mubr.f32.mxu0 0.0
      %697 = vmatmul.mubr.f32.gmra.mrb[0].mxu0 %v403
      %v698 = vpop.f32.mrb[0].mxu0
      %v699 = vadd.f32 %v338, %v698
      %v700 = vpop.f32.mrb[0].mxu0
      %v701 = vadd.f32 %v338, %v700
      %702 = vmatprep.mubr.f32.mxu0 0.0
      %703 = vmatmul.mubr.f32.gmra.mrb[0].mxu0 %v406
      %v704 = vpop.f32.mrb[0].mxu0
      %v705 = vadd.f32 %v343, %v704
      %v706 = vpop.f32.mrb[0].mxu0
      %v707 = vadd.f32 %v343, %v706
      %708 = vmatprep.mubr.f32.mxu0 0.0
      %709 = vmatmul.mubr.f32.gmra.mrb[0].mxu0 %v409
      %v710 = vpop.f32.mrb[0].mxu0
      %v711 = vadd.f32 %v348, %v710
      %v712 = vpop.f32.mrb[0].mxu0
      %v713 = vadd.f32 %v348, %v712
      %714 = vmatprep.mubr.f32.mxu0 0.0
      %715 = vmatmul.mubr.f32.gmra.mrb[0].mxu0 %v412
      %v716 = vpop.f32.mrb[0].mxu0
      %v717 = vadd.f32 %v353, %v716
      %v718 = vpop.f32.mrb[0].mxu0
      %v719 = vadd.f32 %v353, %v718
      %720 = vmatprep.mubr.f32.mxu0 0.0
      %721 = vmatmul.mubr.f32.gmra.mrb[0].mxu0 %v415
      %v722 = vpop.f32.mrb[0].mxu0
      %v723 = vadd.f32 %v358, %v722
      %v724 = vpop.f32.mrb[0].mxu0
      %v725 = vadd.f32 %v358, %v724
      %726 = vmatprep.mubr.f32.mxu0 0.0
      %727 = vmatmul.mubr.f32.gmra.mrb[0].mxu0 %v418
      %v728 = vpop.f32.mrb[0].mxu0
      %v729 = vadd.f32 %v363, %v728
      %v730 = vpop.f32.mrb[0].mxu0
      %v731 = vadd.f32 %v363, %v730
      %732 = vmatprep.mubr.f32.mxu0 0.0
      %733 = vmatmul.mubr.f32.gmra.mrb[0].mxu0 %v421
      %v734 = vpop.f32.mrb[0].mxu0
      %v735 = vadd.f32 %v368, %v734
      %v736 = vpop.f32.mrb[0].mxu0
      %v737 = vadd.f32 %v368, %v736
      %738 = vmatprep.mubr.f32.mxu0 0.0
      %739 = vmatmul.mubr.f32.gmra.mrb[0].mxu0 %v424
      %v740 = vpop.f32.mrb[0].mxu0
      %v741 = vadd.f32 %v373, %v740
      %v742 = vpop.f32.mrb[0].mxu0
      %v743 = vadd.f32 %v373, %v742
      %744 = vmatprep.mubr.f32.mxu0 0.0
      %745 = vmatmul.mubr.f32.gmra.mrb[0].mxu0 %v427
      %v746 = vpop.f32.mrb[0].mxu0
      %v747 = vadd.f32 %v378, %v746
      %v748 = vpop.f32.mrb[0].mxu0
      %v749 = vadd.f32 %v378, %v748
      %750 = vdwg.mxu0
      %v751 = vmax.f32 %v496, 0.0
      %v752 = vmax.f32 %v498, 0.0
      %v753 = vmax.f32 %v657, 0.0
      %v754 = vmax.f32 %v659, 0.0
      %v755 = vmax.f32 %v502, 0.0
      %v756 = vmax.f32 %v504, 0.0
      %v757 = vmax.f32 %v663, 0.0
      %v758 = vmax.f32 %v665, 0.0
      %v759 = vmax.f32 %v508, 0.0
      %v760 = vmax.f32 %v510, 0.0
      %v761 = vmax.f32 %v669, 0.0
      %v762 = vmax.f32 %v671, 0.0
      %v763 = vmax.f32 %v514, 0.0
      %v764 = vmax.f32 %v516, 0.0
      %v765 = vmax.f32 %v675, 0.0
      %v766 = vmax.f32 %v677, 0.0
      %v767 = vmax.f32 %v520, 0.0
      %v768 = vmax.f32 %v522, 0.0
      %v769 = vmax.f32 %v681, 0.0
      %v770 = vmax.f32 %v683, 0.0
      %v771 = vmax.f32 %v526, 0.0
      %v772 = vmax.f32 %v528, 0.0
      %v773 = vmax.f32 %v687, 0.0
      %v774 = vmax.f32 %v689, 0.0
      %v775 = vmax.f32 %v532, 0.0
      %v776 = vmax.f32 %v534, 0.0
      %v777 = vmax.f32 %v693, 0.0
      %v778 = vmax.f32 %v695, 0.0
      %v779 = vmax.f32 %v538, 0.0
      %v780 = vmax.f32 %v540, 0.0
      %v781 = vmax.f32 %v699, 0.0
      %v782 = vmax.f32 %v701, 0.0
      %v783 = vmax.f32 %v544, 0.0
      %v784 = vmax.f32 %v546, 0.0
      %v785 = vmax.f32 %v705, 0.0
      %v786 = vmax.f32 %v707, 0.0
      %v787 = vmax.f32 %v550, 0.0
      %v788 = vmax.f32 %v552, 0.0
      %v789 = vmax.f32 %v711, 0.0
      %v790 = vmax.f32 %v713, 0.0
      %v791 = vmax.f32 %v556, 0.0
      %v792 = vmax.f32 %v558, 0.0
      %v793 = vmax.f32 %v717, 0.0
      %v794 = vmax.f32 %v719, 0.0
      %v795 = vmax.f32 %v562, 0.0
      %v796 = vmax.f32 %v564, 0.0
      %v797 = vmax.f32 %v723, 0.0
      %v798 = vmax.f32 %v725, 0.0
      %v799 = vmax.f32 %v568, 0.0
      %v800 = vmax.f32 %v570, 0.0
      %v801 = vmax.f32 %v729, 0.0
      %v802 = vmax.f32 %v731, 0.0
      %v803 = vmax.f32 %v574, 0.0
      %v804 = vmax.f32 %v576, 0.0
      %v805 = vmax.f32 %v735, 0.0
      %v806 = vmax.f32 %v737, 0.0
      %v807 = vmax.f32 %v580, 0.0
      %v808 = vmax.f32 %v582, 0.0
      %v809 = vmax.f32 %v741, 0.0
      %v810 = vmax.f32 %v743, 0.0
      %v811 = vmax.f32 %v586, 0.0
      %v812 = vmax.f32 %v588, 0.0
      %v813 = vmax.f32 %v747, 0.0
      %v814 = vmax.f32 %v749, 0.0
      %v815 = vld [vmem:[%s3] sm:$0xff]
      %v816 = vld [vmem:[%s3 + $0x8] sm:$0xff]
      %v817 = vld [vmem:[%s3 + $0x10] sm:$0xff]
      %v818 = vld [vmem:[%s3 + $0x18] sm:$0xff]
      %v819 = vld [vmem:[%s3 + $0x20] sm:$0xff]
      %v820 = vld [vmem:[%s3 + $0x28] sm:$0xff]
      %v821 = vld [vmem:[%s3 + $0x30] sm:$0xff]
      %v822 = vld [vmem:[%s3 + $0x38] sm:$0xff]
      %v823 = vld [vmem:[%s3 + $0x40] sm:$0xff]
      %v824 = vld [vmem:[%s3 + $0x48] sm:$0xff]
      %v825 = vld [vmem:[%s3 + $0x50] sm:$0xff]
      %v826 = vld [vmem:[%s3 + $0x58] sm:$0xff]
      %v827 = vld [vmem:[%s3 + $0x60] sm:$0xff]
      %v828 = vld [vmem:[%s3 + $0x68] sm:$0xff]
      %v829 = vld [vmem:[%s3 + $0x70] sm:$0xff]
      %v830 = vld [vmem:[%s3 + $0x78] sm:$0xff]
      %832 = vset.pattern.permute.xlu0 0
      %833 = vperm.xlu0 %832, %v815
      %v834 = vpop.permute.xlu0 %833
      %837 = vset.pattern.permute.xlu0 0
      %838 = vperm.xlu0 %837, %v816
      %v839 = vpop.permute.xlu0 %838
      %842 = vset.pattern.permute.xlu0 0
      %843 = vperm.xlu0 %842, %v817
      %v844 = vpop.permute.xlu0 %843
      %847 = vset.pattern.permute.xlu0 0
      %848 = vperm.xlu0 %847, %v818
      %v849 = vpop.permute.xlu0 %848
      %852 = vset.pattern.permute.xlu0 0
      %853 = vperm.xlu0 %852, %v819
      %v854 = vpop.permute.xlu0 %853
      %857 = vset.pattern.permute.xlu0 0
      %858 = vperm.xlu0 %857, %v820
      %v859 = vpop.permute.xlu0 %858
      %862 = vset.pattern.permute.xlu0 0
      %863 = vperm.xlu0 %862, %v821
      %v864 = vpop.permute.xlu0 %863
      %867 = vset.pattern.permute.xlu0 0
      %868 = vperm.xlu0 %867, %v822
      %v869 = vpop.permute.xlu0 %868
      %872 = vset.pattern.permute.xlu0 0
      %873 = vperm.xlu0 %872, %v823
      %v874 = vpop.permute.xlu0 %873
      %877 = vset.pattern.permute.xlu0 0
      %878 = vperm.xlu0 %877, %v824
      %v879 = vpop.permute.xlu0 %878
      %882 = vset.pattern.permute.xlu0 0
      %883 = vperm.xlu0 %882, %v825
      %v884 = vpop.permute.xlu0 %883
      %887 = vset.pattern.permute.xlu0 0
      %888 = vperm.xlu0 %887, %v826
      %v889 = vpop.permute.xlu0 %888
      %892 = vset.pattern.permute.xlu0 0
      %893 = vperm.xlu0 %892, %v827
      %v894 = vpop.permute.xlu0 %893
      %897 = vset.pattern.permute.xlu0 0
      %898 = vperm.xlu0 %897, %v828
      %v899 = vpop.permute.xlu0 %898
      %902 = vset.pattern.permute.xlu0 0
      %903 = vperm.xlu0 %902, %v829
      %v904 = vpop.permute.xlu0 %903
      %907 = vset.pattern.permute.xlu0 0
      %908 = vperm.xlu0 %907, %v830
      %v909 = vpop.permute.xlu0 %908
      %v911 = vmul.f32 %v834, %v751
      %v912 = vmul.f32 %v834, %v752
      %v913 = vmul.f32 %v834, %v753
      %v914 = vmul.f32 %v834, %v754
      %v915 = vmul.f32 %v839, %v755
      %v916 = vmul.f32 %v839, %v756
      %v917 = vmul.f32 %v839, %v757
      %v918 = vmul.f32 %v839, %v758
      %v919 = vmul.f32 %v844, %v759
      %v920 = vmul.f32 %v844, %v760
      %v921 = vmul.f32 %v844, %v761
      %v922 = vmul.f32 %v844, %v762
      %v923 = vmul.f32 %v849, %v763
      %v924 = vmul.f32 %v849, %v764
      %v925 = vmul.f32 %v849, %v765
      %v926 = vmul.f32 %v849, %v766
      %v927 = vmul.f32 %v854, %v767
      %v928 = vmul.f32 %v854, %v768
      %v929 = vmul.f32 %v854, %v769
      %v930 = vmul.f32 %v854, %v770
      %v931 = vmul.f32 %v859, %v771
      %v932 = vmul.f32 %v859, %v772
      %v933 = vmul.f32 %v859, %v773
      %v934 = vmul.f32 %v859, %v774
      %v935 = vmul.f32 %v864, %v775
      %v936 = vmul.f32 %v864, %v776
      %v937 = vmul.f32 %v864, %v777
      %v938 = vmul.f32 %v864, %v778
      %v939 = vmul.f32 %v869, %v779
      %v940 = vmul.f32 %v869, %v780
      %v941 = vmul.f32 %v869, %v781
      %v942 = vmul.f32 %v869, %v782
      %v943 = vmul.f32 %v874, %v783
      %v944 = vmul.f32 %v874, %v784
      %v945 = vmul.f32 %v874, %v785
      %v946 = vmul.f32 %v874, %v786
      %v947 = vmul.f32 %v879, %v787
      %v948 = vmul.f32 %v879, %v788
      %v949 = vmul.f32 %v879, %v789
      %v950 = vmul.f32 %v879, %v790
      %v951 = vmul.f32 %v884, %v791
      %v952 = vmul.f32 %v884, %v792
      %v953 = vmul.f32 %v884, %v793
      %v954 = vmul.f32 %v884, %v794
      %v955 = vmul.f32 %v889, %v795
      %v956 = vmul.f32 %v889, %v796
      %v957 = vmul.f32 %v889, %v797
      %v958 = vmul.f32 %v889, %v798
      %v959 = vmul.f32 %v894, %v799
      %v960 = vmul.f32 %v894, %v800
      %v961 = vmul.f32 %v894, %v801
      %v962 = vmul.f32 %v894, %v802
      %v963 = vmul.f32 %v899, %v803
      %v964 = vmul.f32 %v899, %v804
      %v965 = vmul.f32 %v899, %v805
      %v966 = vmul.f32 %v899, %v806
      %v967 = vmul.f32 %v904, %v807
      %v968 = vmul.f32 %v904, %v808
      %v969 = vmul.f32 %v904, %v809
      %v970 = vmul.f32 %v904, %v810
      %v971 = vmul.f32 %v909, %v811
      %v972 = vmul.f32 %v909, %v812
      %v973 = vmul.f32 %v909, %v813
      %v974 = vmul.f32 %v909, %v814
      %v975 = vadd.f32 %v911, %v915
      %v976 = vadd.f32 %v975, %v919
      %v977 = vadd.f32 %v976, %v923
      %v978 = vadd.f32 %v977, %v927
      %v979 = vadd.f32 %v978, %v931
      %v980 = vadd.f32 %v979, %v935
      %v981 = vadd.f32 %v980, %v939
      %v982 = vadd.f32 %v981, %v943
      %v983 = vadd.f32 %v982, %v947
      %v984 = vadd.f32 %v983, %v951
      %v985 = vadd.f32 %v984, %v955
      %v986 = vadd.f32 %v985, %v959
      %v987 = vadd.f32 %v986, %v963
      %v988 = vadd.f32 %v987, %v967
      %v989 = vadd.f32 %v988, %v971
      %v990 = vrot.slane %v989, 4
      %v991 = vadd.f32 %v989, %v990
      %v992 = vrot.slane %v991, 2
      %v993 = vadd.f32 %v991, %v992
      %v994 = vrot.slane %v993, 1
      %v995 = vadd.f32 %v993, %v994
      %v996 = vadd.f32 %v912, %v916
      %v997 = vadd.f32 %v996, %v920
      %v998 = vadd.f32 %v997, %v924
      %v999 = vadd.f32 %v998, %v928
      %v1000 = vadd.f32 %v999, %v932
      %v1001 = vadd.f32 %v1000, %v936
      %v1002 = vadd.f32 %v1001, %v940
      %v1003 = vadd.f32 %v1002, %v944
      %v1004 = vadd.f32 %v1003, %v948
      %v1005 = vadd.f32 %v1004, %v952
      %v1006 = vadd.f32 %v1005, %v956
      %v1007 = vadd.f32 %v1006, %v960
      %v1008 = vadd.f32 %v1007, %v964
      %v1009 = vadd.f32 %v1008, %v968
      %v1010 = vadd.f32 %v1009, %v972
      %v1011 = vrot.slane %v1010, 4
      %v1012 = vadd.f32 %v1010, %v1011
      %v1013 = vrot.slane %v1012, 2
      %v1014 = vadd.f32 %v1012, %v1013
      %v1015 = vrot.slane %v1014, 1
      %v1016 = vadd.f32 %v1014, %v1015
      %v1017 = vadd.f32 %v913, %v917
      %v1018 = vadd.f32 %v1017, %v921
      %v1019 = vadd.f32 %v1018, %v925
      %v1020 = vadd.f32 %v1019, %v929
      %v1021 = vadd.f32 %v1020, %v933
      %v1022 = vadd.f32 %v1021, %v937
      %v1023 = vadd.f32 %v1022, %v941
      %v1024 = vadd.f32 %v1023, %v945
      %v1025 = vadd.f32 %v1024, %v949
      %v1026 = vadd.f32 %v1025, %v953
      %v1027 = vadd.f32 %v1026, %v957
      %v1028 = vadd.f32 %v1027, %v961
      %v1029 = vadd.f32 %v1028, %v965
      %v1030 = vadd.f32 %v1029, %v969
      %v1031 = vadd.f32 %v1030, %v973
      %v1032 = vrot.slane %v1031, 4
      %v1033 = vadd.f32 %v1031, %v1032
      %v1034 = vrot.slane %v1033, 2
      %v1035 = vadd.f32 %v1033, %v1034
      %v1036 = vrot.slane %v1035, 1
      %v1037 = vadd.f32 %v1035, %v1036
      %v1038 = vadd.f32 %v914, %v918
      %v1039 = vadd.f32 %v1038, %v922
      %v1040 = vadd.f32 %v1039, %v926
      %v1041 = vadd.f32 %v1040, %v930
      %v1042 = vadd.f32 %v1041, %v934
      %v1043 = vadd.f32 %v1042, %v938
      %v1044 = vadd.f32 %v1043, %v942
      %v1045 = vadd.f32 %v1044, %v946
      %v1046 = vadd.f32 %v1045, %v950
      %v1047 = vadd.f32 %v1046, %v954
      %v1048 = vadd.f32 %v1047, %v958
      %v1049 = vadd.f32 %v1048, %v962
      %v1050 = vadd.f32 %v1049, %v966
      %v1051 = vadd.f32 %v1050, %v970
      %v1052 = vadd.f32 %v1051, %v974
      %v1053 = vrot.slane %v1052, 4
      %v1054 = vadd.f32 %v1052, %v1053
      %v1055 = vrot.slane %v1054, 2
      %v1056 = vadd.f32 %v1054, %v1055
      %v1057 = vrot.slane %v1056, 1
      %v1058 = vadd.f32 %v1056, %v1057
      %v1059 = vld [vmem:[#allocation2] sm:$0x1]
      %1061 = vset.pattern.permute.xlu0 0
      %1062 = vperm.xlu0 %1061, %v1059
      %v1063 = vpop.permute.xlu0 %1062
      %v1065 = vlaneseq
      %v1066 = vshrl.u32 %v1065, 7
      %v1067 = vsub.s32 0, %v1066
      %v1068 = vrot.slane %v1063, %v1067
      %v1069 = vadd.f32 %v995, %v1068
      %v1070 = vadd.f32 %v1016, %v1068
      %v1071 = vadd.f32 %v1037, %v1068
      %v1072 = vadd.f32 %v1058, %v1068
      %v1077 = vcombine.low %v1069, %v1070
      %v1078 = vcombine.low %v1071, %v1072
      %v1080 = vunpack.c.l.s4 1966171168
      %v1081 = vunpack.c.0.s8 %v1080
      %v1082 = vlaneseq
      %v1083 = vshrl.u32 %v1082, 7
      %v1084 = vsub.s32 %v1081, %v1083
      %v1085 = vrot.slane %v1077, %v1084
      %v1087 = vunpack.c.l.s4 1966171168
      %v1088 = vunpack.c.0.s8 %v1087
      %v1089 = vlaneseq
      %v1090 = vshrl.u32 %v1089, 7
      %v1091 = vsub.s32 %v1088, %v1090
      %v1092 = vrot.slane %v1078, %v1091
      %v1093 = vcombine.low %v1085, %v1092
      %v1095 = vunpack.c.l.s4 1966171168
      %v1096 = vunpack.c.0.s8 %v1095
      %v1097 = vlaneseq
      %v1098 = vshrl.u32 %v1097, 7
      %v1099 = vsub.s32 %v1096, %v1098
      %v1100 = vrot.slane %v1093, %v1099
      %v1102 = vlaneseq
      %vm1103 = vcmp.ge.s32.totalorder %v1102, 0
      %vm1104 = vcmp.lt.s32.totalorder %v1102, 512
      %vm1105 = vmand %vm1103, %vm1104
      %1106 = vst.msk [vmem:[%s262] sm:$0xf] %vm1105, %v1100
      %s1107 = smul.u32 4, %s23
      %p1108 = scmp.lt.s32.totalorder %s22, 1
      %s1109 = scalar_select %p1108, %s22, 1
      %p1110 = scmp.lt.s32.totalorder %s1107, 3
      %s1111 = scalar_select %p1110, %s1107, 3
      %s1112 = smul.addr %s1109, 4
      %s1113 = sadd.s32 %s1111, %s1112
      %s1114 = scalar_lea.vmem %s5, %s1113
      // Predicated region
      $region41: #{simple_block_forward.19} parent=39 // pred_check
        %p1115 = pneg %p162
      $region42: #{simple_block_forward.19} parent=39 // pred_check_branch
        %1117 = sbr.rel (%p1115) target = $region44
      $region43: #{simple_block_forward.19} parent=39 // pred_region
        %s1118 = smul.u32 4, %s23
      $region44: #{simple_block_forward.19} parent=39 // pred_fallthru
        _
    $region40: #{simple_block_forward.19} parent=5 // pred_fallthru
      _
    %p1119 = scmp.le.s32.totalorder 2, %s13
    // Predicated region
    $region45: #{simple_block_forward.19} parent=5 // pred_check
      %p1120 = pneg %p1119
    $region46: #{simple_block_forward.19} parent=5 // pred_check_branch
      %1122 = sbr.rel (%p1120) target = $region48
    $region47: #{simple_block_forward.19} parent=5 // pred_region
      %s1123 = ssub.s32 %s13, 2
      // Predicated region
      $region49: #{simple_block_forward.19} parent=47 // pred_check
        %p1124 = pneg %p168
      $region50: #{simple_block_forward.19} parent=47 // pred_check_branch
        %1126 = sbr.rel (%p1124) target = $region52
      $region51: #{simple_block_forward.19} parent=47 // pred_region
        %s1127 = smul.u32 4, %s25
        %p1128 = scmp.lt.s32.totalorder %s24, 1
        %s1129 = scalar_select %p1128, %s24, 1
        %p1130 = scmp.lt.s32.totalorder %s1127, 3
        %s1131 = scalar_select %p1130, %s1127, 3
        %s1132 = smul.addr %s1129, 4
        %s1133 = sadd.s32 %s1131, %s1132
        %s1134 = scalar_lea.vmem %s5, %s1133
      $region52: #{simple_block_forward.19} parent=47 // pred_fallthru
        _
    $region48: #{simple_block_forward.19} parent=5 // pred_fallthru
      _
  $region6: #{simple_block_forward.19} parent=0 // loop_footer
    %s17 = sadd.s32 1, %s13
  $region7: #{simple_block_forward.19} parent=0 // loop_footer_branch
    %12 = sbr.rel target = $region3
  $region8: #{simple_block_forward.19} parent=0 // loop_exit
    _

</llo_original>
